<compile_context>
chip_gen: v6e
topology: v6e:2x2x1
jax: 0.10.0
libtpu: 0.0.40
codegen_flags: <defaults>
</compile_context>

<pallas_src>
import math
import functools

import jax
import jax.numpy as jnp
from jax.experimental import pallas as pl
from jax.experimental.pallas import tpu as pltpu

EPS = 1e-6
F32 = jnp.float32
BF16 = jnp.bfloat16


def _rmsnorm(x, g):
    ms = jnp.mean(x * x, axis=-1, keepdims=True)
    return x * jax.lax.rsqrt(ms + EPS) * g


# --------------------------------------------------------------------------
# Pass 1: RMSNorm + Q/K/V projection, head-major bf16 caches.
# --------------------------------------------------------------------------
def _qkv_kernel(num_heads,
                x_ref, g_ref, wq_ref, bq_ref, wk_ref, bk_ref, wv_ref, bv_ref,
                xn_ref, q_ref, k_ref, v_ref):
    H = num_heads
    x = x_ref[0]                                              # (tp, D) f32
    D = x.shape[-1]
    Dh = D // H

    xn = _rmsnorm(x, g_ref[0]).astype(BF16)                   # (tp, D) bf16
    xn_ref[0] = xn

    q = jnp.dot(xn, wq_ref[...], preferred_element_type=F32) + bq_ref[0]  # scale folded
    k = jnp.dot(xn, wk_ref[...], preferred_element_type=F32) + bk_ref[0]
    v = jnp.dot(xn, wv_ref[...], preferred_element_type=F32) + bv_ref[0]

    # One head-major relayout here (per token, once) instead of per-head
    # slicing once per (q-tile, kv-tile) in the flash loop.
    for h in range(H):
        sl = slice(h * Dh, (h + 1) * Dh)
        q_ref[0, h] = q[:, sl].astype(BF16)
        k_ref[0, h] = k[:, sl].astype(BF16)
        v_ref[0, h] = v[:, sl].astype(BF16)


# --------------------------------------------------------------------------
# Pass 2: flash attention over cached Q/K/V + W_O + residual.
# --------------------------------------------------------------------------
def _attn_kernel(exp_dtype,
                 x_ref, q_ref, k_ref, v_ref, wo_ref, bo_ref,
                 o_ref,
                 m_sc, l_sc, acc_sc, attn_sc):
    ki = pl.program_id(2)
    nk = pl.num_programs(2)
    H, tq, Dh = acc_sc.shape

    @pl.when(ki == 0)
    def _():
        m_sc[...] = jnp.full(m_sc.shape, -jnp.inf, F32)
        l_sc[...] = jnp.zeros(l_sc.shape, F32)
        acc_sc[...] = jnp.zeros(acc_sc.shape, F32)

    q = q_ref[0]                                              # (H, tq, Dh) bf16, pre-scaled
    k = k_ref[0]                                              # (H, tk, Dh) bf16
    v = v_ref[0]                                              # (H, tk, Dh) bf16

    # All heads in one batched contraction (no per-head Python unrolling).
    s = jnp.einsum("hqd,hkd->hqk", q, k,
                   preferred_element_type=F32)                # (H, tq, tk)
    m_prev = m_sc[...]
    m_new = jnp.maximum(m_prev, jnp.max(s, axis=-1, keepdims=True))
    alpha = jnp.exp(m_prev - m_new)                           # f32, tiny
    p = jnp.exp((s - m_new).astype(exp_dtype))                # bf16 EUP path on v6e/v7x
    l_sc[...] = alpha * l_sc[...] + jnp.sum(p.astype(F32), axis=-1, keepdims=True)
    acc_sc[...] = alpha * acc_sc[...] + jnp.einsum(
        "hqk,hkd->hqd", p.astype(BF16), v, preferred_element_type=F32)
    m_sc[...] = m_new

    @pl.when(ki == nk - 1)
    def _():
        inv_l = pl.reciprocal(l_sc[...], approx=True)         # EUP slot, deferred norm
        heads = (acc_sc[...] * inv_l).astype(BF16)            # (H, tq, Dh)
        for h in range(H):                                    # pack into lane-dense (tq, D)
            attn_sc[:, h * Dh:(h + 1) * Dh] = heads[h]
        attn_out = jnp.dot(attn_sc[...], wo_ref[...],         # one full-D MXU matmul
                           preferred_element_type=F32) + bo_ref[0]
        o_ref[0] = (x_ref[0] + attn_out).astype(o_ref.dtype)  # residual (dropout = id)


# --------------------------------------------------------------------------
# Pass 3: SwiGLU FFN streamed over F, accumulate onto the attention result.
# --------------------------------------------------------------------------
def _ffn_kernel(xn_ref, y_ref, w1_ref, w3_ref, w2_ref, o_ref, acc_sc):
    fi = pl.program_id(2)
    nf = pl.num_programs(2)

    @pl.when(fi == 0)
    def _():
        acc_sc[...] = jnp.zeros(acc_sc.shape, F32)

    xn = xn_ref[0]                                            # (tq, D) bf16
    h1 = jnp.dot(xn, w1_ref[...], preferred_element_type=F32)  # (tq, tf)
    h3 = jnp.dot(xn, w3_ref[...], preferred_element_type=F32)  # (tq, tf)
    gated = (h1 * jax.nn.sigmoid(h1) * h3).astype(BF16)        # SiLU(h1) * h3
    acc_sc[...] += jnp.dot(gated, w2_ref[...], preferred_element_type=F32)

    @pl.when(fi == nf - 1)
    def _():
        o_ref[0] = (y_ref[0] + acc_sc[...]).astype(o_ref.dtype)


# --------------------------------------------------------------------------
# Host-side wrapper.
# --------------------------------------------------------------------------
def _choose_row_tile(s, target):
    """Largest tile <= target dividing s (multiple of 8 when not full)."""
    if s <= target:
        return s
    t = (min(target, s) // 8) * 8
    while t >= 8:
        if s % t == 0:
            return t
        t -= 8
    return s


def _choose_lane_tile(f, target):
    """Last-dim tiles must be a multiple of 128 or the full extent."""
    if f <= target or f % 128 != 0:
        return f
    t = (min(target, f) // 128) * 128
    while t >= 128:
        if f % t == 0:
            return t
        t -= 128
    return f


def _vmem_limit_bytes(frac=7 / 8):
    """~7/8 of per-core VMEM: ~112 MiB on v5e/v6e, ~56 MiB on v7x."""
    cap = 64 * 1024 * 1024                      # safe fallback on every generation
    try:
        info = pltpu.get_tpu_info()
        c = int(getattr(info, "vmem_capacity_bytes", 0) or 0)
        if c >= 32 * 1024 * 1024:
            cap = c
    except Exception:
        pass
    return int(cap * frac)


def _const_spec(p, grid_rank):
    """Grid-constant tensor: DMA'd once, single-buffered (no wasted 2nd buffer)."""
    nd = p.ndim
    if grid_rank == 2:
        imap = lambda b, i, _nd=nd: (0,) * _nd
    else:
        imap = lambda b, i, j, _nd=nd: (0,) * _nd
    return pl.BlockSpec(p.shape, imap, pipeline_mode=pl.Buffered(1))


def parallel_transformer_block(x, params, num_heads,
                               q_tile=256, kv_tile=256, f_tile=1024,
                               exp_in_bf16=True):
    """Forward pass of ParallelTransformerBlock (eval mode, no mask)."""
    B, S, D = x.shape
    F = params["w1"].shape[1]
    H = num_heads
    assert D % H == 0
    Dh = D // H

    tp = _choose_row_tile(S, 256)     # projection pass tile
    tq = _choose_row_tile(S, q_tile)
    tk = _choose_row_tile(S, kv_tile)
    tf = _choose_lane_tile(F, f_tile)
    vmem = _vmem_limit_bytes()
    # Megacore note (v7x): keep B*(S//tq) even so both TensorCores get equal
    # q-tile work under the "parallel" grid axes.

    scale = 1.0 / math.sqrt(Dh)
    g = params["g"]
    wq = (params["wq"] * scale).astype(BF16)   # fold 1/sqrt(Dh) into Q projection
    bq = (params["bq"] * scale).astype(F32)
    wk = params["wk"].astype(BF16)
    wv = params["wv"].astype(BF16)
    wo = params["wo"].astype(BF16)
    w1 = params["w1"].astype(BF16)
    w3 = params["w3"].astype(BF16)
    w2 = params["w2"].astype(BF16)
    bk, bv, bo = params["bk"], params["bv"], params["bo"]

    # ---------------- Pass 1: QKV projection + xn cache ----------------
    qkv_cost = pl.CostEstimate(
        flops=int(6 * B * S * D * D),
        transcendentals=int(B * S),
        bytes_accessed=int(B * S * D * 4 + (3 * D * D + 5 * D) * 2
                           + 4 * B * S * D * 2))
    xn, qh, kh, vh = pl.pallas_call(
        functools.partial(_qkv_kernel, H),
        out_shape=(jax.ShapeDtypeStruct((B, S, D), BF16),        # xn
                   jax.ShapeDtypeStruct((B, H, S, Dh), BF16),    # q (pre-scaled)
                   jax.ShapeDtypeStruct((B, H, S, Dh), BF16),    # k
                   jax.ShapeDtypeStruct((B, H, S, Dh), BF16)),   # v
        grid=(B, S // tp),
        in_specs=[
            pl.BlockSpec((1, tp, D), lambda b, i: (b, i, 0)),
            _const_spec(g, 2), _const_spec(wq, 2), _const_spec(bq, 2),
            _const_spec(wk, 2), _const_spec(bk, 2),
            _const_spec(wv, 2), _const_spec(bv, 2),
        ],
        out_specs=[
            pl.BlockSpec((1, tp, D), lambda b, i: (b, i, 0)),
            pl.BlockSpec((1, H, tp, Dh), lambda b, i: (b, 0, i, 0)),
            pl.BlockSpec((1, H, tp, Dh), lambda b, i: (b, 0, i, 0)),
            pl.BlockSpec((1, H, tp, Dh), lambda b, i: (b, 0, i, 0)),
        ],
        compiler_params=pltpu.CompilerParams(
            dimension_semantics=("parallel", "parallel"),
            vmem_limit_bytes=vmem),
        cost_estimate=qkv_cost,
    )(x, g, wq, bq, wk, bk, wv, bv)

    # ---------------- Pass 2: flash attention + W_O + residual ----------------
    n_kv_sweeps = S // tq   # each kv tile is re-read once per q-tile
    attn_cost = pl.CostEstimate(
        flops=int(4 * B * S * S * D + 2 * B * S * D * D),
        transcendentals=int(B * H * S * S),
        bytes_accessed=int(B * S * D * 4                       # x (residual)
                           + B * S * D * 2                     # q cache
                           + 2 * B * S * D * 2 * n_kv_sweeps   # k/v re-streamed
                           + (D * D + D) * 2
                           + B * S * D * 4))                   # output
    exp_dtype = BF16 if exp_in_bf16 else F32
    y_attn = pl.pallas_call(
        functools.partial(_attn_kernel, exp_dtype),
        out_shape=jax.ShapeDtypeStruct((B, S, D), x.dtype),
        grid=(B, S // tq, S // tk),
        in_specs=[
            pl.BlockSpec((1, tq, D), lambda b, qi, ki: (b, qi, 0)),
            pl.BlockSpec((1, H, tq, Dh), lambda b, qi, ki: (b, 0, qi, 0)),
            pl.BlockSpec((1, H, tk, Dh), lambda b, qi, ki: (b, 0, ki, 0)),
            pl.BlockSpec((1, H, tk, Dh), lambda b, qi, ki: (b, 0, ki, 0)),
            _const_spec(wo, 3), _const_spec(bo, 3),
        ],
        out_specs=pl.BlockSpec((1, tq, D), lambda b, qi, ki: (b, qi, 0)),
        scratch_shapes=[
            pltpu.VMEM((H, tq, 1), F32),    # m: running max
            pltpu.VMEM((H, tq, 1), F32),    # l: running denom
            pltpu.VMEM((H, tq, Dh), F32),   # acc: running numerator
            pltpu.VMEM((tq, D), BF16),      # packed heads for the W_O matmul
        ],
        compiler_params=pltpu.CompilerParams(
            dimension_semantics=("parallel", "parallel", "arbitrary"),
            vmem_limit_bytes=vmem),
        cost_estimate=attn_cost,
    )(x, qh, kh, vh, wo, bo)

    # ---------------- Pass 3: SwiGLU FFN (streamed over F) + add ----------------
    n_f_sweeps = B * (S // tq)  # weight chunks are re-streamed once per q-tile
    ffn_cost = pl.CostEstimate(
        flops=int(6 * B * S * D * F),
        transcendentals=int(B * S * F),
        bytes_accessed=int(B * S * D * 2 + B * S * D * 4
                           + 3 * D * F * 2 * n_f_sweeps
                           + B * S * D * 4))
    out = pl.pallas_call(
        _ffn_kernel,
        out_shape=jax.ShapeDtypeStruct((B, S, D), x.dtype),
        grid=(B, S // tq, F // tf),
        in_specs=[
            pl.BlockSpec((1, tq, D), lambda b, qi, fi: (b, qi, 0)),   # xn
            pl.BlockSpec((1, tq, D), lambda b, qi, fi: (b, qi, 0)),   # y_attn
            pl.BlockSpec((D, tf), lambda b, qi, fi: (0, fi)),         # w1 chunk
            pl.BlockSpec((D, tf), lambda b, qi, fi: (0, fi)),         # w3 chunk
            pl.BlockSpec((tf, D), lambda b, qi, fi: (fi, 0)),         # w2 chunk
        ],
        out_specs=pl.BlockSpec((1, tq, D), lambda b, qi, fi: (b, qi, 0)),
        scratch_shapes=[pltpu.VMEM((tq, D), F32)],
        compiler_params=pltpu.CompilerParams(
            dimension_semantics=("parallel", "parallel", "arbitrary"),
            vmem_limit_bytes=vmem),
        cost_estimate=ffn_cost,
    )(xn, y_attn, w1, w3, w2)
    return out


# --------------------------------------------------------------------------
# Pure-JAX f32 reference mirroring the PyTorch forward (eval mode).
# --------------------------------------------------------------------------
def reference_block(x, params, num_heads):
    B, S, D = x.shape
    H = num_heads
    Dh = D // H
    ms = jnp.mean(x * x, axis=-1, keepdims=True)
    xn = x * jax.lax.rsqrt(ms + EPS) * params["g"][0]
    q = xn @ params["wq"] + params["bq"][0]
    k = xn @ params["wk"] + params["bk"][0]
    v = xn @ params["wv"] + params["bv"][0]
    qh = q.reshape(B, S, H, Dh).transpose(0, 2, 1, 3)
    kh = k.reshape(B, S, H, Dh).transpose(0, 2, 1, 3)
    vh = v.reshape(B, S, H, Dh).transpose(0, 2, 1, 3)
    s = jnp.einsum("bhqd,bhkd->bhqk", qh, kh) / math.sqrt(Dh)
    p = jax.nn.softmax(s, axis=-1)
    attn = jnp.einsum("bhqk,bhkd->bhqd", p, vh).transpose(0, 2, 1, 3).reshape(B, S, D)
    attn_out = attn @ params["wo"] + params["bo"][0]
    h1 = xn @ params["w1"]
    h3 = xn @ params["w3"]
    ffn_out = (jax.nn.silu(h1) * h3) @ params["w2"]
    return x + attn_out + ffn_out


def make_params(key, d_model, d_ff):
    ks = jax.random.split(key, 8)
    init = lambda k, shape: (0.05 * jax.random.normal(k, shape)).astype(jnp.float32)
    return {
        "g":  jnp.ones((1, d_model), jnp.float32),           # RMSNorm weight
        "wq": init(ks[0], (d_model, d_model)),
        "bq": jnp.zeros((1, d_model), jnp.float32),
        "wk": init(ks[1], (d_model, d_model)),
        "bk": jnp.zeros((1, d_model), jnp.float32),
        "wv": init(ks[2], (d_model, d_model)),
        "bv": jnp.zeros((1, d_model), jnp.float32),
        "wo": init(ks[3], (d_model, d_model)),
        "bo": jnp.zeros((1, d_model), jnp.float32),
        "w1": init(ks[4], (d_model, d_ff)),                   # SwiGLU up (SiLU-gated)
        "w3": init(ks[5], (d_model, d_ff)),                   # SwiGLU value
        "w2": init(ks[6], (d_ff, d_model)),                   # SwiGLU down
    }


if __name__ == "__main__":
    B, S, D, H, F = 2, 16, 32, 4, 64
    key = jax.random.PRNGKey(0)
    kx, kp = jax.random.split(key)
    x = jax.random.normal(kx, (B, S, D), jnp.float32)
    params = make_params(kp, D, F)

    fwd = jax.jit(parallel_transformer_block,
                  static_argnames=("num_heads", "q_tile", "kv_tile",
                                   "f_tile", "exp_in_bf16"))
    # Small tiles so the demo exercises the multi-tile flash path: grid (2,2,2).
    out = fwd(x, params, num_heads=H, q_tile=8, kv_tile=8)
    out = jax.block_until_ready(out)

    ref = jax.block_until_ready(reference_block(x, params, H))
    assert out.shape == (B, S, D)
    max_err = jnp.max(jnp.abs(out - ref))
    # bf16 MXU operands, bf16 exp, approx reciprocal => relaxed tolerance vs f32.
    assert jnp.allclose(out, ref, atol=2e-2, rtol=2e-2), (
        f"mismatch vs JAX reference (max abs err {max_err})")
    print("KERNEL_OK")
</pallas_src>

<mosaic_0001>
module attributes {stable_mosaic.version = 11 : i64} {
  func.func @_ffn_kernel(%arg0: i32, %arg1: i32, %arg2: i32, %arg3: memref<1x8x32xbf16, #tpu.memory_space<vmem>>, %arg4: memref<1x8x32xf32, #tpu.memory_space<vmem>>, %arg5: memref<32x64xbf16, #tpu.memory_space<vmem>>, %arg6: memref<32x64xbf16, #tpu.memory_space<vmem>>, %arg7: memref<64x32xbf16, #tpu.memory_space<vmem>>, %arg8: memref<1x8x32xf32, #tpu.memory_space<vmem>>, %arg9: memref<8x32xf32, #tpu.memory_space<vmem>>) attributes {dimension_semantics = [#tpu.dimension_semantics<parallel>, #tpu.dimension_semantics<parallel>, #tpu.dimension_semantics<arbitrary>], iteration_bounds = array<i64: 2, 2, 1>, scalar_prefetch = 0 : i64, scratch_operands = 1 : i64, tpu.core_type = #tpu.core_type<tc>, window_params = [{transform_indices = @transform_0, window_bounds = array<i64: 1, 8, 32>}, {transform_indices = @transform_1, window_bounds = array<i64: 1, 8, 32>}, {transform_indices = @transform_2, window_bounds = array<i64: 32, 64>}, {transform_indices = @transform_3, window_bounds = array<i64: 32, 64>}, {transform_indices = @transform_4, window_bounds = array<i64: 64, 32>}, {transform_indices = @transform_5, window_bounds = array<i64: 1, 8, 32>}]} {
    %c0_i32 = arith.constant 0 : i32
    %0 = arith.cmpi eq, %arg2, %c0_i32 : i32
    %1 = arith.extui %0 : i1 to i32
    %c0_i32_0 = arith.constant 0 : i32
    %2 = arith.cmpi ne, %1, %c0_i32_0 : i32
    scf.if %2 {
      %cst_18 = arith.constant 0.000000e+00 : f32
      %25 = vector.broadcast %cst_18 : f32 to vector<8x32xf32>
      %c0_19 = arith.constant 0 : index
      %c0_20 = arith.constant 0 : index
      %26 = vector.load %arg9[%c0_19, %c0_20] : memref<8x32xf32, #tpu.memory_space<vmem>>, vector<8x32xf32>
      tpu.vector_store %arg9[%c0_19, %c0_20], %25 {strides = array<i32>} : memref<8x32xf32, #tpu.memory_space<vmem>>, vector<8x32xf32>,
    } else {
    }
    %c0 = arith.constant 0 : index
    %c0_1 = arith.constant 0 : index
    %c0_2 = arith.constant 0 : index
    %3 = vector.load %arg3[%c0, %c0_1, %c0_2] : memref<1x8x32xbf16, #tpu.memory_space<vmem>>, vector<1x8x32xbf16>
    %4 = vector.shape_cast %3 : vector<1x8x32xbf16> to vector<8x32xbf16>
    %c0_3 = arith.constant 0 : index
    %c0_4 = arith.constant 0 : index
    %5 = vector.load %arg5[%c0_3, %c0_4] : memref<32x64xbf16, #tpu.memory_space<vmem>>, vector<32x64xbf16>
    %cst = arith.constant dense<0.000000e+00> : vector<8x64xf32>
    %6 = tpu.matmul %4, %5, %cst {dimension_numbers = #tpu.dot_dimension_numbers<[1], [0], [0], [1], [0, 0, 1, 1], [], []>} : vector<8x32xbf16>, vector<32x64xbf16>, vector<8x64xf32> -> vector<8x64xf32>
    %c0_5 = arith.constant 0 : index
    %c0_6 = arith.constant 0 : index
    %7 = vector.load %arg6[%c0_5, %c0_6] : memref<32x64xbf16, #tpu.memory_space<vmem>>, vector<32x64xbf16>
    %cst_7 = arith.constant dense<0.000000e+00> : vector<8x64xf32>
    %8 = tpu.matmul %4, %7, %cst_7 {dimension_numbers = #tpu.dot_dimension_numbers<[1], [0], [0], [1], [0, 0, 1, 1], [], []>} : vector<8x32xbf16>, vector<32x64xbf16>, vector<8x64xf32> -> vector<8x64xf32>
    %9 = arith.negf %6 : vector<8x64xf32>
    %10 = math.exp %9 : vector<8x64xf32>
    %cst_8 = arith.constant 1.000000e+00 : f32
    %11 = vector.broadcast %cst_8 : f32 to vector<8x64xf32>
    %12 = arith.addf %11, %10 : vector<8x64xf32>
    %13 = arith.divf %11, %12 : vector<8x64xf32>
    %14 = arith.mulf %6, %13 : vector<8x64xf32>
    %15 = arith.mulf %14, %8 : vector<8x64xf32>
    %16 = arith.truncf %15 : vector<8x64xf32> to vector<8x64xbf16>
    %c0_9 = arith.constant 0 : index
    %c0_10 = arith.constant 0 : index
    %17 = vector.load %arg9[%c0_9, %c0_10] : memref<8x32xf32, #tpu.memory_space<vmem>>, vector<8x32xf32>
    %c0_11 = arith.constant 0 : index
    %c0_12 = arith.constant 0 : index
    %18 = vector.load %arg7[%c0_11, %c0_12] : memref<64x32xbf16, #tpu.memory_space<vmem>>, vector<64x32xbf16>
    %cst_13 = arith.constant dense<0.000000e+00> : vector<8x32xf32>
    %19 = tpu.matmul %16, %18, %cst_13 {dimension_numbers = #tpu.dot_dimension_numbers<[1], [0], [0], [1], [0, 0, 1, 1], [], []>} : vector<8x64xbf16>, vector<64x32xbf16>, vector<8x32xf32> -> vector<8x32xf32>
    %20 = arith.addf %17, %19 : vector<8x32xf32>
    %c0_14 = arith.constant 0 : index
    %c0_15 = arith.constant 0 : index
    %21 = vector.load %arg9[%c0_14, %c0_15] : memref<8x32xf32, #tpu.memory_space<vmem>>, vector<8x32xf32>
    tpu.vector_store %arg9[%c0_14, %c0_15], %20 {strides = array<i32>} : memref<8x32xf32, #tpu.memory_space<vmem>>, vector<8x32xf32>,
    %c0_i32_16 = arith.constant 0 : i32
    %22 = arith.cmpi eq, %arg2, %c0_i32_16 : i32
    %23 = arith.extui %22 : i1 to i32
    %c0_i32_17 = arith.constant 0 : i32
    %24 = arith.cmpi ne, %23, %c0_i32_17 : i32
    scf.if %24 {
      %c0_18 = arith.constant 0 : index
      %c0_19 = arith.constant 0 : index
      %c0_20 = arith.constant 0 : index
      %25 = vector.load %arg4[%c0_18, %c0_19, %c0_20] : memref<1x8x32xf32, #tpu.memory_space<vmem>>, vector<1x8x32xf32>
      %26 = vector.shape_cast %25 : vector<1x8x32xf32> to vector<8x32xf32>
      %c0_21 = arith.constant 0 : index
      %c0_22 = arith.constant 0 : index
      %27 = vector.load %arg9[%c0_21, %c0_22] : memref<8x32xf32, #tpu.memory_space<vmem>>, vector<8x32xf32>
      %28 = arith.addf %26, %27 : vector<8x32xf32>
      %c0_23 = arith.constant 0 : index
      %c0_24 = arith.constant 0 : index
      %c0_25 = arith.constant 0 : index
      %29 = vector.load %arg8[%c0_23, %c0_24, %c0_25] : memref<1x8x32xf32, #tpu.memory_space<vmem>>, vector<1x8x32xf32>
      %30 = vector.shape_cast %29 : vector<1x8x32xf32> to vector<8x32xf32>
      %31 = vector.shape_cast %28 : vector<8x32xf32> to vector<1x8x32xf32>
      tpu.vector_store %arg8[%c0_23, %c0_24, %c0_25], %31 {strides = array<i32>} : memref<1x8x32xf32, #tpu.memory_space<vmem>>, vector<1x8x32xf32>,
    } else {
    }
    return
  }
  func.func @transform_0(%arg0: i32, %arg1: i32, %arg2: i32) -> (i32, i32, i32) {
    %c0_i32 = arith.constant 0 : i32
    %c0_i32_0 = arith.constant 0 : i32
    return %arg0, %arg1, %c0_i32 : i32, i32, i32
  }
  func.func @transform_1(%arg0: i32, %arg1: i32, %arg2: i32) -> (i32, i32, i32) {
    %c0_i32 = arith.constant 0 : i32
    %c0_i32_0 = arith.constant 0 : i32
    return %arg0, %arg1, %c0_i32 : i32, i32, i32
  }
  func.func @transform_2(%arg0: i32, %arg1: i32, %arg2: i32) -> (i32, i32) {
    %c0_i32 = arith.constant 0 : i32
    %c0_i32_0 = arith.constant 0 : i32
    return %c0_i32, %arg2 : i32, i32
  }
  func.func @transform_3(%arg0: i32, %arg1: i32, %arg2: i32) -> (i32, i32) {
    %c0_i32 = arith.constant 0 : i32
    %c0_i32_0 = arith.constant 0 : i32
    return %c0_i32, %arg2 : i32, i32
  }
  func.func @transform_4(%arg0: i32, %arg1: i32, %arg2: i32) -> (i32, i32) {
    %c0_i32 = arith.constant 0 : i32
    %c0_i32_0 = arith.constant 0 : i32
    return %arg2, %c0_i32 : i32, i32
  }
  func.func @transform_5(%arg0: i32, %arg1: i32, %arg2: i32) -> (i32, i32, i32) {
    %c0_i32 = arith.constant 0 : i32
    %c0_i32_0 = arith.constant 0 : i32
    return %arg0, %arg1, %c0_i32 : i32, i32, i32
  }
}

module attributes {stable_mosaic.version = 11 : i64} {
  func.func @_attn_kernel(%arg0: i32, %arg1: i32, %arg2: i32, %arg3: memref<1x8x32xf32, #tpu.memory_space<vmem>>, %arg4: memref<1x4x8x8xbf16, #tpu.memory_space<vmem>>, %arg5: memref<1x4x8x8xbf16, #tpu.memory_space<vmem>>, %arg6: memref<1x4x8x8xbf16, #tpu.memory_space<vmem>>, %arg7: memref<32x32xbf16, #tpu.memory_space<vmem>>, %arg8: memref<1x32xf32, #tpu.memory_space<vmem>>, %arg9: memref<1x8x32xf32, #tpu.memory_space<vmem>>, %arg10: memref<4x8x1xf32, #tpu.memory_space<vmem>>, %arg11: memref<4x8x1xf32, #tpu.memory_space<vmem>>, %arg12: memref<4x8x8xf32, #tpu.memory_space<vmem>>, %arg13: memref<8x32xbf16, #tpu.memory_space<vmem>>) attributes {dimension_semantics = [#tpu.dimension_semantics<parallel>, #tpu.dimension_semantics<parallel>, #tpu.dimension_semantics<arbitrary>], iteration_bounds = array<i64: 2, 2, 2>, scalar_prefetch = 0 : i64, scratch_operands = 4 : i64, tpu.core_type = #tpu.core_type<tc>, window_params = [{transform_indices = @transform_0, window_bounds = array<i64: 1, 8, 32>}, {transform_indices = @transform_1, window_bounds = array<i64: 1, 4, 8, 8>}, {transform_indices = @transform_2, window_bounds = array<i64: 1, 4, 8, 8>}, {transform_indices = @transform_3, window_bounds = array<i64: 1, 4, 8, 8>}, {pipeline_mode = #tpu.pipeline_mode<synchronous>, transform_indices = @transform_4, window_bounds = array<i64: 32, 32>}, {pipeline_mode = #tpu.pipeline_mode<synchronous>, transform_indices = @transform_5, window_bounds = array<i64: 1, 32>}, {transform_indices = @transform_6, window_bounds = array<i64: 1, 8, 32>}]} {
    %c0_i32 = arith.constant 0 : i32
    %0 = arith.cmpi eq, %arg2, %c0_i32 : i32
    %1 = arith.extui %0 : i1 to i32
    %c0_i32_0 = arith.constant 0 : i32
    %2 = arith.cmpi ne, %1, %c0_i32_0 : i32
    scf.if %2 {
      %cst_34 = arith.constant 0xFF800000 : f32
      %37 = vector.broadcast %cst_34 : f32 to vector<4x8x1xf32>
      %c0_35 = arith.constant 0 : index
      %c0_36 = arith.constant 0 : index
      %c0_37 = arith.constant 0 : index
      %38 = vector.load %arg10[%c0_35, %c0_36, %c0_37] : memref<4x8x1xf32, #tpu.memory_space<vmem>>, vector<4x8x1xf32>
      tpu.vector_store %arg10[%c0_35, %c0_36, %c0_37], %37 {strides = array<i32>} : memref<4x8x1xf32, #tpu.memory_space<vmem>>, vector<4x8x1xf32>,
      %cst_38 = arith.constant 0.000000e+00 : f32
      %39 = vector.broadcast %cst_38 : f32 to vector<4x8x1xf32>
      %c0_39 = arith.constant 0 : index
      %c0_40 = arith.constant 0 : index
      %c0_41 = arith.constant 0 : index
      %40 = vector.load %arg11[%c0_39, %c0_40, %c0_41] : memref<4x8x1xf32, #tpu.memory_space<vmem>>, vector<4x8x1xf32>
      tpu.vector_store %arg11[%c0_39, %c0_40, %c0_41], %39 {strides = array<i32>} : memref<4x8x1xf32, #tpu.memory_space<vmem>>, vector<4x8x1xf32>,
      %cst_42 = arith.constant 0.000000e+00 : f32
      %41 = vector.broadcast %cst_42 : f32 to vector<4x8x8xf32>
      %c0_43 = arith.constant 0 : index
      %c0_44 = arith.constant 0 : index
      %c0_45 = arith.constant 0 : index
      %42 = vector.load %arg12[%c0_43, %c0_44, %c0_45] : memref<4x8x8xf32, #tpu.memory_space<vmem>>, vector<4x8x8xf32>
      tpu.vector_store %arg12[%c0_43, %c0_44, %c0_45], %41 {strides = array<i32>} : memref<4x8x8xf32, #tpu.memory_space<vmem>>, vector<4x8x8xf32>,
    } else {
    }
    %c0 = arith.constant 0 : index
    %c0_1 = arith.constant 0 : index
    %c0_2 = arith.constant 0 : index
    %c0_3 = arith.constant 0 : index
    %3 = vector.load %arg4[%c0, %c0_1, %c0_2, %c0_3] : memref<1x4x8x8xbf16, #tpu.memory_space<vmem>>, vector<1x4x8x8xbf16>
    %4 = vector.shape_cast %3 : vector<1x4x8x8xbf16> to vector<4x8x8xbf16>
    %c0_4 = arith.constant 0 : index
    %c0_5 = arith.constant 0 : index
    %c0_6 = arith.constant 0 : index
    %c0_7 = arith.constant 0 : index
    %5 = vector.load %arg5[%c0_4, %c0_5, %c0_6, %c0_7] : memref<1x4x8x8xbf16, #tpu.memory_space<vmem>>, vector<1x4x8x8xbf16>
    %6 = vector.shape_cast %5 : vector<1x4x8x8xbf16> to vector<4x8x8xbf16>
    %c0_8 = arith.constant 0 : index
    %c0_9 = arith.constant 0 : index
    %c0_10 = arith.constant 0 : index
    %c0_11 = arith.constant 0 : index
    %7 = vector.load %arg6[%c0_8, %c0_9, %c0_10, %c0_11] : memref<1x4x8x8xbf16, #tpu.memory_space<vmem>>, vector<1x4x8x8xbf16>
    %8 = vector.shape_cast %7 : vector<1x4x8x8xbf16> to vector<4x8x8xbf16>
    "tpu.trace_start"() <{level = 10 : i32, message = "hqd,hkd->hqk"}> : () -> ()
    %cst = arith.constant dense<0.000000e+00> : vector<4x8x8xf32>
    %9 = tpu.matmul %4, %6, %cst {dimension_numbers = #tpu.dot_dimension_numbers<[2], [2], [1], [1], [0, 0, 0, 1, 1, 1], [0], [0]>} : vector<4x8x8xbf16>, vector<4x8x8xbf16>, vector<4x8x8xf32> -> vector<4x8x8xf32>
    "tpu.trace_stop"() : () -> ()
    %c0_12 = arith.constant 0 : index
    %c0_13 = arith.constant 0 : index
    %c0_14 = arith.constant 0 : index
    %10 = vector.load %arg10[%c0_12, %c0_13, %c0_14] : memref<4x8x1xf32, #tpu.memory_space<vmem>>, vector<4x8x1xf32>
    %cst_15 = arith.constant dense<0xFF800000> : vector<4x8xf32>
    %11 = vector.multi_reduction <maximumf>, %9, %cst_15 [2] : vector<4x8x8xf32> to vector<4x8xf32>
    %12 = vector.shape_cast %11 : vector<4x8xf32> to vector<4x8x1xf32>
    %13 = arith.maximumf %10, %12 : vector<4x8x1xf32>
    %14 = arith.subf %10, %13 : vector<4x8x1xf32>
    %15 = math.exp %14 : vector<4x8x1xf32>
    %16 = vector.broadcast %13 : vector<4x8x1xf32> to vector<4x8x8xf32>
    %17 = arith.subf %9, %16 : vector<4x8x8xf32>
    %18 = arith.truncf %17 : vector<4x8x8xf32> to vector<4x8x8xbf16>
    %19 = math.exp %18 : vector<4x8x8xbf16>
    %c0_16 = arith.constant 0 : index
    %c0_17 = arith.constant 0 : index
    %c0_18 = arith.constant 0 : index
    %20 = vector.load %arg11[%c0_16, %c0_17, %c0_18] : memref<4x8x1xf32, #tpu.memory_space<vmem>>, vector<4x8x1xf32>
    %21 = arith.mulf %15, %20 : vector<4x8x1xf32>
    %22 = arith.extf %19 : vector<4x8x8xbf16> to vector<4x8x8xf32>
    %cst_19 = arith.constant dense<0.000000e+00> : vector<4x8xf32>
    %23 = vector.multi_reduction <add>, %22, %cst_19 [2] : vector<4x8x8xf32> to vector<4x8xf32>
    %24 = vector.shape_cast %23 : vector<4x8xf32> to vector<4x8x1xf32>
    %25 = arith.addf %21, %24 : vector<4x8x1xf32>
    %c0_20 = arith.constant 0 : index
    %c0_21 = arith.constant 0 : index
    %c0_22 = arith.constant 0 : index
    %26 = vector.load %arg11[%c0_20, %c0_21, %c0_22] : memref<4x8x1xf32, #tpu.memory_space<vmem>>, vector<4x8x1xf32>
    tpu.vector_store %arg11[%c0_20, %c0_21, %c0_22], %25 {strides = array<i32>} : memref<4x8x1xf32, #tpu.memory_space<vmem>>, vector<4x8x1xf32>,
    %c0_23 = arith.constant 0 : index
    %c0_24 = arith.constant 0 : index
    %c0_25 = arith.constant 0 : index
    %27 = vector.load %arg12[%c0_23, %c0_24, %c0_25] : memref<4x8x8xf32, #tpu.memory_space<vmem>>, vector<4x8x8xf32>
    %28 = vector.broadcast %15 : vector<4x8x1xf32> to vector<4x8x8xf32>
    %29 = arith.mulf %28, %27 : vector<4x8x8xf32>
    "tpu.trace_start"() <{level = 10 : i32, message = "hqk,hkd->hqd"}> : () -> ()
    %cst_26 = arith.constant dense<0.000000e+00> : vector<4x8x8xf32>
    %30 = tpu.matmul %19, %8, %cst_26 {dimension_numbers = #tpu.dot_dimension_numbers<[2], [1], [1], [2], [0, 0, 0, 1, 1, 2], [0], [0]>} : vector<4x8x8xbf16>, vector<4x8x8xbf16>, vector<4x8x8xf32> -> vector<4x8x8xf32>
    "tpu.trace_stop"() : () -> ()
    %31 = arith.addf %29, %30 : vector<4x8x8xf32>
    %c0_27 = arith.constant 0 : index
    %c0_28 = arith.constant 0 : index
    %c0_29 = arith.constant 0 : index
    %32 = vector.load %arg12[%c0_27, %c0_28, %c0_29] : memref<4x8x8xf32, #tpu.memory_space<vmem>>, vector<4x8x8xf32>
    tpu.vector_store %arg12[%c0_27, %c0_28, %c0_29], %31 {strides = array<i32>} : memref<4x8x8xf32, #tpu.memory_space<vmem>>, vector<4x8x8xf32>,
    %c0_30 = arith.constant 0 : index
    %c0_31 = arith.constant 0 : index
    %c0_32 = arith.constant 0 : index
    %33 = vector.load %arg10[%c0_30, %c0_31, %c0_32] : memref<4x8x1xf32, #tpu.memory_space<vmem>>, vector<4x8x1xf32>
    tpu.vector_store %arg10[%c0_30, %c0_31, %c0_32], %13 {strides = array<i32>} : memref<4x8x1xf32, #tpu.memory_space<vmem>>, vector<4x8x1xf32>,
    %c1_i32 = arith.constant 1 : i32
    %34 = arith.cmpi eq, %arg2, %c1_i32 : i32
    %35 = arith.extui %34 : i1 to i32
    %c0_i32_33 = arith.constant 0 : i32
    %36 = arith.cmpi ne, %35, %c0_i32_33 : i32
    scf.if %36 {
      %c0_34 = arith.constant 0 : index
      %c0_35 = arith.constant 0 : index
      %c0_36 = arith.constant 0 : index
      %37 = vector.load %arg11[%c0_34, %c0_35, %c0_36] : memref<4x8x1xf32, #tpu.memory_space<vmem>>, vector<4x8x1xf32>
      %38 = tpu.reciprocal %37 {approx = true} : vector<4x8x1xf32> -> vector<4x8x1xf32>
      %c0_37 = arith.constant 0 : index
      %c0_38 = arith.constant 0 : index
      %c0_39 = arith.constant 0 : index
      %39 = vector.load %arg12[%c0_37, %c0_38, %c0_39] : memref<4x8x8xf32, #tpu.memory_space<vmem>>, vector<4x8x8xf32>
      %40 = vector.broadcast %38 : vector<4x8x1xf32> to vector<4x8x8xf32>
      %41 = arith.mulf %39, %40 : vector<4x8x8xf32>
      %42 = arith.truncf %41 : vector<4x8x8xf32> to vector<4x8x8xbf16>
      %43 = vector.extract_strided_slice %42 {offsets = [0, 0, 0], sizes = [1, 8, 8], strides = [1, 1, 1]} : vector<4x8x8xbf16> to vector<1x8x8xbf16>
      %44 = vector.shape_cast %43 : vector<1x8x8xbf16> to vector<8x8xbf16>
      %c0_40 = arith.constant 0 : index
      %c0_41 = arith.constant 0 : index
      %45 = vector.load %arg13[%c0_40, %c0_41] : memref<8x32xbf16, #tpu.memory_space<vmem>>, vector<8x8xbf16>
      tpu.vector_store %arg13[%c0_40, %c0_41], %44 {strides = array<i32>} : memref<8x32xbf16, #tpu.memory_space<vmem>>, vector<8x8xbf16>,
      %46 = vector.extract_strided_slice %42 {offsets = [1, 0, 0], sizes = [1, 8, 8], strides = [1, 1, 1]} : vector<4x8x8xbf16> to vector<1x8x8xbf16>
      %47 = vector.shape_cast %46 : vector<1x8x8xbf16> to vector<8x8xbf16>
      %c0_42 = arith.constant 0 : index
      %c8 = arith.constant 8 : index
      %48 = vector.load %arg13[%c0_42, %c8] : memref<8x32xbf16, #tpu.memory_space<vmem>>, vector<8x8xbf16>
      tpu.vector_store %arg13[%c0_42, %c8], %47 {strides = array<i32>} : memref<8x32xbf16, #tpu.memory_space<vmem>>, vector<8x8xbf16>,
      %49 = vector.extract_strided_slice %42 {offsets = [2, 0, 0], sizes = [1, 8, 8], strides = [1, 1, 1]} : vector<4x8x8xbf16> to vector<1x8x8xbf16>
      %50 = vector.shape_cast %49 : vector<1x8x8xbf16> to vector<8x8xbf16>
      %c0_43 = arith.constant 0 : index
      %c16 = arith.constant 16 : index
      %51 = vector.load %arg13[%c0_43, %c16] : memref<8x32xbf16, #tpu.memory_space<vmem>>, vector<8x8xbf16>
      tpu.vector_store %arg13[%c0_43, %c16], %50 {strides = array<i32>} : memref<8x32xbf16, #tpu.memory_space<vmem>>, vector<8x8xbf16>,
      %52 = vector.extract_strided_slice %42 {offsets = [3, 0, 0], sizes = [1, 8, 8], strides = [1, 1, 1]} : vector<4x8x8xbf16> to vector<1x8x8xbf16>
      %53 = vector.shape_cast %52 : vector<1x8x8xbf16> to vector<8x8xbf16>
      %c0_44 = arith.constant 0 : index
      %c24 = arith.constant 24 : index
      %54 = vector.load %arg13[%c0_44, %c24] : memref<8x32xbf16, #tpu.memory_space<vmem>>, vector<8x8xbf16>
      tpu.vector_store %arg13[%c0_44, %c24], %53 {strides = array<i32>} : memref<8x32xbf16, #tpu.memory_space<vmem>>, vector<8x8xbf16>,
      %c0_45 = arith.constant 0 : index
      %c0_46 = arith.constant 0 : index
      %55 = vector.load %arg13[%c0_45, %c0_46] : memref<8x32xbf16, #tpu.memory_space<vmem>>, vector<8x32xbf16>
      %c0_47 = arith.constant 0 : index
      %c0_48 = arith.constant 0 : index
      %56 = vector.load %arg7[%c0_47, %c0_48] : memref<32x32xbf16, #tpu.memory_space<vmem>>, vector<32x32xbf16>
      %cst_49 = arith.constant dense<0.000000e+00> : vector<8x32xf32>
      %57 = tpu.matmul %55, %56, %cst_49 {dimension_numbers = #tpu.dot_dimension_numbers<[1], [0], [0], [1], [0, 0, 1, 1], [], []>} : vector<8x32xbf16>, vector<32x32xbf16>, vector<8x32xf32> -> vector<8x32xf32>
      %c0_50 = arith.constant 0 : index
      %c0_51 = arith.constant 0 : index
      %58 = vector.load %arg8[%c0_50, %c0_51] : memref<1x32xf32, #tpu.memory_space<vmem>>, vector<1x32xf32>
      %59 = vector.shape_cast %58 : vector<1x32xf32> to vector<32xf32>
      %60 = vector.shape_cast %59 : vector<32xf32> to vector<1x32xf32>
      %61 = vector.broadcast %60 : vector<1x32xf32> to vector<8x32xf32>
      %62 = arith.addf %57, %61 : vector<8x32xf32>
      %c0_52 = arith.constant 0 : index
      %c0_53 = arith.constant 0 : index
      %c0_54 = arith.constant 0 : index
      %63 = vector.load %arg3[%c0_52, %c0_53, %c0_54] : memref<1x8x32xf32, #tpu.memory_space<vmem>>, vector<1x8x32xf32>
      %64 = vector.shape_cast %63 : vector<1x8x32xf32> to vector<8x32xf32>
      %65 = arith.addf %64, %62 : vector<8x32xf32>
      %c0_55 = arith.constant 0 : index
      %c0_56 = arith.constant 0 : index
      %c0_57 = arith.constant 0 : index
      %66 = vector.load %arg9[%c0_55, %c0_56, %c0_57] : memref<1x8x32xf32, #tpu.memory_space<vmem>>, vector<1x8x32xf32>
      %67 = vector.shape_cast %66 : vector<1x8x32xf32> to vector<8x32xf32>
      %68 = vector.shape_cast %65 : vector<8x32xf32> to vector<1x8x32xf32>
      tpu.vector_store %arg9[%c0_55, %c0_56, %c0_57], %68 {strides = array<i32>} : memref<1x8x32xf32, #tpu.memory_space<vmem>>, vector<1x8x32xf32>,
    } else {
    }
    return
  }
  func.func @transform_0(%arg0: i32, %arg1: i32, %arg2: i32) -> (i32, i32, i32) {
    %c0_i32 = arith.constant 0 : i32
    %c0_i32_0 = arith.constant 0 : i32
    return %arg0, %arg1, %c0_i32 : i32, i32, i32
  }
  func.func @transform_1(%arg0: i32, %arg1: i32, %arg2: i32) -> (i32, i32, i32, i32) {
    %c0_i32 = arith.constant 0 : i32
    %c0_i32_0 = arith.constant 0 : i32
    %c0_i32_1 = arith.constant 0 : i32
    return %arg0, %c0_i32, %arg1, %c0_i32_0 : i32, i32, i32, i32
  }
  func.func @transform_2(%arg0: i32, %arg1: i32, %arg2: i32) -> (i32, i32, i32, i32) {
    %c0_i32 = arith.constant 0 : i32
    %c0_i32_0 = arith.constant 0 : i32
    %c0_i32_1 = arith.constant 0 : i32
    return %arg0, %c0_i32, %arg2, %c0_i32_0 : i32, i32, i32, i32
  }
  func.func @transform_3(%arg0: i32, %arg1: i32, %arg2: i32) -> (i32, i32, i32, i32) {
    %c0_i32 = arith.constant 0 : i32
    %c0_i32_0 = arith.constant 0 : i32
    %c0_i32_1 = arith.constant 0 : i32
    return %arg0, %c0_i32, %arg2, %c0_i32_0 : i32, i32, i32, i32
  }
  func.func @transform_4(%arg0: i32, %arg1: i32, %arg2: i32) -> (i32, i32) {
    %c0_i32 = arith.constant 0 : i32
    %c0_i32_0 = arith.constant 0 : i32
    %c0_i32_1 = arith.constant 0 : i32
    return %c0_i32, %c0_i32_0 : i32, i32
  }
  func.func @transform_5(%arg0: i32, %arg1: i32, %arg2: i32) -> (i32, i32) {
    %c0_i32 = arith.constant 0 : i32
    %c0_i32_0 = arith.constant 0 : i32
    %c0_i32_1 = arith.constant 0 : i32
    return %c0_i32, %c0_i32_0 : i32, i32
  }
  func.func @transform_6(%arg0: i32, %arg1: i32, %arg2: i32) -> (i32, i32, i32) {
    %c0_i32 = arith.constant 0 : i32
    %c0_i32_0 = arith.constant 0 : i32
    return %arg0, %arg1, %c0_i32 : i32, i32, i32
  }
}

module attributes {stable_mosaic.version = 11 : i64} {
  func.func @_qkv_kernel(%arg0: i32, %arg1: i32, %arg2: memref<1x16x32xf32, #tpu.memory_space<vmem>>, %arg3: memref<1x32xf32, #tpu.memory_space<vmem>>, %arg4: memref<32x32xbf16, #tpu.memory_space<vmem>>, %arg5: memref<1x32xf32, #tpu.memory_space<vmem>>, %arg6: memref<32x32xbf16, #tpu.memory_space<vmem>>, %arg7: memref<1x32xf32, #tpu.memory_space<vmem>>, %arg8: memref<32x32xbf16, #tpu.memory_space<vmem>>, %arg9: memref<1x32xf32, #tpu.memory_space<vmem>>, %arg10: memref<1x16x32xbf16, #tpu.memory_space<vmem>>, %arg11: memref<1x4x16x8xbf16, #tpu.memory_space<vmem>>, %arg12: memref<1x4x16x8xbf16, #tpu.memory_space<vmem>>, %arg13: memref<1x4x16x8xbf16, #tpu.memory_space<vmem>>) attributes {dimension_semantics = [#tpu.dimension_semantics<parallel>, #tpu.dimension_semantics<parallel>], iteration_bounds = array<i64: 2, 1>, scalar_prefetch = 0 : i64, scratch_operands = 0 : i64, tpu.core_type = #tpu.core_type<tc>, window_params = [{transform_indices = @transform_0, window_bounds = array<i64: 1, 16, 32>}, {pipeline_mode = #tpu.pipeline_mode<synchronous>, transform_indices = @transform_1, window_bounds = array<i64: 1, 32>}, {pipeline_mode = #tpu.pipeline_mode<synchronous>, transform_indices = @transform_2, window_bounds = array<i64: 32, 32>}, {pipeline_mode = #tpu.pipeline_mode<synchronous>, transform_indices = @transform_3, window_bounds = array<i64: 1, 32>}, {pipeline_mode = #tpu.pipeline_mode<synchronous>, transform_indices = @transform_4, window_bounds = array<i64: 32, 32>}, {pipeline_mode = #tpu.pipeline_mode<synchronous>, transform_indices = @transform_5, window_bounds = array<i64: 1, 32>}, {pipeline_mode = #tpu.pipeline_mode<synchronous>, transform_indices = @transform_6, window_bounds = array<i64: 32, 32>}, {pipeline_mode = #tpu.pipeline_mode<synchronous>, transform_indices = @transform_7, window_bounds = array<i64: 1, 32>}, {transform_indices = @transform_8, window_bounds = array<i64: 1, 16, 32>}, {transform_indices = @transform_9, window_bounds = array<i64: 1, 4, 16, 8>}, {transform_indices = @transform_10, window_bounds = array<i64: 1, 4, 16, 8>}, {transform_indices = @transform_11, window_bounds = array<i64: 1, 4, 16, 8>}]} {
    %c0 = arith.constant 0 : index
    %c0_0 = arith.constant 0 : index
    %c0_1 = arith.constant 0 : index
    %0 = vector.load %arg2[%c0, %c0_0, %c0_1] : memref<1x16x32xf32, #tpu.memory_space<vmem>>, vector<1x16x32xf32>
    %1 = vector.shape_cast %0 : vector<1x16x32xf32> to vector<16x32xf32>
    %c0_2 = arith.constant 0 : index
    %c0_3 = arith.constant 0 : index
    %2 = vector.load %arg3[%c0_2, %c0_3] : memref<1x32xf32, #tpu.memory_space<vmem>>, vector<1x32xf32>
    %3 = vector.shape_cast %2 : vector<1x32xf32> to vector<32xf32>
    %4 = arith.mulf %1, %1 : vector<16x32xf32>
    %cst = arith.constant dense<0.000000e+00> : vector<16xf32>
    %5 = vector.multi_reduction <add>, %4, %cst [1] : vector<16x32xf32> to vector<16xf32>
    %6 = vector.shape_cast %5 : vector<16xf32> to vector<16x1xf32>
    %cst_4 = arith.constant 3.200000e+01 : f32
    %7 = vector.broadcast %cst_4 : f32 to vector<16x1xf32>
    %8 = arith.divf %6, %7 : vector<16x1xf32>
    %cst_5 = arith.constant 9.99999997E-7 : f32
    %9 = vector.broadcast %cst_5 : f32 to vector<16x1xf32>
    %10 = arith.addf %8, %9 : vector<16x1xf32>
    %11 = math.rsqrt %10 : vector<16x1xf32>
    %12 = vector.broadcast %11 : vector<16x1xf32> to vector<16x32xf32>
    %13 = arith.mulf %1, %12 : vector<16x32xf32>
    %14 = vector.shape_cast %3 : vector<32xf32> to vector<1x32xf32>
    %15 = vector.broadcast %14 : vector<1x32xf32> to vector<16x32xf32>
    %16 = arith.mulf %13, %15 : vector<16x32xf32>
    %17 = arith.truncf %16 : vector<16x32xf32> to vector<16x32xbf16>
    %c0_6 = arith.constant 0 : index
    %c0_7 = arith.constant 0 : index
    %c0_8 = arith.constant 0 : index
    %18 = vector.load %arg10[%c0_6, %c0_7, %c0_8] : memref<1x16x32xbf16, #tpu.memory_space<vmem>>, vector<1x16x32xbf16>
    %19 = vector.shape_cast %18 : vector<1x16x32xbf16> to vector<16x32xbf16>
    %20 = vector.shape_cast %17 : vector<16x32xbf16> to vector<1x16x32xbf16>
    tpu.vector_store %arg10[%c0_6, %c0_7, %c0_8], %20 {strides = array<i32>} : memref<1x16x32xbf16, #tpu.memory_space<vmem>>, vector<1x16x32xbf16>,
    %c0_9 = arith.constant 0 : index
    %c0_10 = arith.constant 0 : index
    %21 = vector.load %arg4[%c0_9, %c0_10] : memref<32x32xbf16, #tpu.memory_space<vmem>>, vector<32x32xbf16>
    %cst_11 = arith.constant dense<0.000000e+00> : vector<16x32xf32>
    %22 = tpu.matmul %17, %21, %cst_11 {dimension_numbers = #tpu.dot_dimension_numbers<[1], [0], [0], [1], [0, 0, 1, 1], [], []>} : vector<16x32xbf16>, vector<32x32xbf16>, vector<16x32xf32> -> vector<16x32xf32>
    %c0_12 = arith.constant 0 : index
    %c0_13 = arith.constant 0 : index
    %23 = vector.load %arg5[%c0_12, %c0_13] : memref<1x32xf32, #tpu.memory_space<vmem>>, vector<1x32xf32>
    %24 = vector.shape_cast %23 : vector<1x32xf32> to vector<32xf32>
    %25 = vector.shape_cast %24 : vector<32xf32> to vector<1x32xf32>
    %26 = vector.broadcast %25 : vector<1x32xf32> to vector<16x32xf32>
    %27 = arith.addf %22, %26 : vector<16x32xf32>
    %c0_14 = arith.constant 0 : index
    %c0_15 = arith.constant 0 : index
    %28 = vector.load %arg6[%c0_14, %c0_15] : memref<32x32xbf16, #tpu.memory_space<vmem>>, vector<32x32xbf16>
    %cst_16 = arith.constant dense<0.000000e+00> : vector<16x32xf32>
    %29 = tpu.matmul %17, %28, %cst_16 {dimension_numbers = #tpu.dot_dimension_numbers<[1], [0], [0], [1], [0, 0, 1, 1], [], []>} : vector<16x32xbf16>, vector<32x32xbf16>, vector<16x32xf32> -> vector<16x32xf32>
    %c0_17 = arith.constant 0 : index
    %c0_18 = arith.constant 0 : index
    %30 = vector.load %arg7[%c0_17, %c0_18] : memref<1x32xf32, #tpu.memory_space<vmem>>, vector<1x32xf32>
    %31 = vector.shape_cast %30 : vector<1x32xf32> to vector<32xf32>
    %32 = vector.shape_cast %31 : vector<32xf32> to vector<1x32xf32>
    %33 = vector.broadcast %32 : vector<1x32xf32> to vector<16x32xf32>
    %34 = arith.addf %29, %33 : vector<16x32xf32>
    %c0_19 = arith.constant 0 : index
    %c0_20 = arith.constant 0 : index
    %35 = vector.load %arg8[%c0_19, %c0_20] : memref<32x32xbf16, #tpu.memory_space<vmem>>, vector<32x32xbf16>
    %cst_21 = arith.constant dense<0.000000e+00> : vector<16x32xf32>
    %36 = tpu.matmul %17, %35, %cst_21 {dimension_numbers = #tpu.dot_dimension_numbers<[1], [0], [0], [1], [0, 0, 1, 1], [], []>} : vector<16x32xbf16>, vector<32x32xbf16>, vector<16x32xf32> -> vector<16x32xf32>
    %c0_22 = arith.constant 0 : index
    %c0_23 = arith.constant 0 : index
    %37 = vector.load %arg9[%c0_22, %c0_23] : memref<1x32xf32, #tpu.memory_space<vmem>>, vector<1x32xf32>
    %38 = vector.shape_cast %37 : vector<1x32xf32> to vector<32xf32>
    %39 = vector.shape_cast %38 : vector<32xf32> to vector<1x32xf32>
    %40 = vector.broadcast %39 : vector<1x32xf32> to vector<16x32xf32>
    %41 = arith.addf %36, %40 : vector<16x32xf32>
    %42 = vector.extract_strided_slice %27 {offsets = [0, 0], sizes = [16, 8], strides = [1, 1]} : vector<16x32xf32> to vector<16x8xf32>
    %43 = arith.truncf %42 : vector<16x8xf32> to vector<16x8xbf16>
    %c0_24 = arith.constant 0 : index
    %c0_25 = arith.constant 0 : index
    %c0_26 = arith.constant 0 : index
    %c0_27 = arith.constant 0 : index
    %44 = vector.load %arg11[%c0_24, %c0_25, %c0_26, %c0_27] : memref<1x4x16x8xbf16, #tpu.memory_space<vmem>>, vector<1x1x16x8xbf16>
    %45 = vector.shape_cast %44 : vector<1x1x16x8xbf16> to vector<16x8xbf16>
    %46 = vector.shape_cast %43 : vector<16x8xbf16> to vector<1x1x16x8xbf16>
    tpu.vector_store %arg11[%c0_24, %c0_25, %c0_26, %c0_27], %46 {strides = array<i32>} : memref<1x4x16x8xbf16, #tpu.memory_space<vmem>>, vector<1x1x16x8xbf16>,
    %47 = vector.extract_strided_slice %34 {offsets = [0, 0], sizes = [16, 8], strides = [1, 1]} : vector<16x32xf32> to vector<16x8xf32>
    %48 = arith.truncf %47 : vector<16x8xf32> to vector<16x8xbf16>
    %c0_28 = arith.constant 0 : index
    %c0_29 = arith.constant 0 : index
    %c0_30 = arith.constant 0 : index
    %c0_31 = arith.constant 0 : index
    %49 = vector.load %arg12[%c0_28, %c0_29, %c0_30, %c0_31] : memref<1x4x16x8xbf16, #tpu.memory_space<vmem>>, vector<1x1x16x8xbf16>
    %50 = vector.shape_cast %49 : vector<1x1x16x8xbf16> to vector<16x8xbf16>
    %51 = vector.shape_cast %48 : vector<16x8xbf16> to vector<1x1x16x8xbf16>
    tpu.vector_store %arg12[%c0_28, %c0_29, %c0_30, %c0_31], %51 {strides = array<i32>} : memref<1x4x16x8xbf16, #tpu.memory_space<vmem>>, vector<1x1x16x8xbf16>,
    %52 = vector.extract_strided_slice %41 {offsets = [0, 0], sizes = [16, 8], strides = [1, 1]} : vector<16x32xf32> to vector<16x8xf32>
    %53 = arith.truncf %52 : vector<16x8xf32> to vector<16x8xbf16>
    %c0_32 = arith.constant 0 : index
    %c0_33 = arith.constant 0 : index
    %c0_34 = arith.constant 0 : index
    %c0_35 = arith.constant 0 : index
    %54 = vector.load %arg13[%c0_32, %c0_33, %c0_34, %c0_35] : memref<1x4x16x8xbf16, #tpu.memory_space<vmem>>, vector<1x1x16x8xbf16>
    %55 = vector.shape_cast %54 : vector<1x1x16x8xbf16> to vector<16x8xbf16>
    %56 = vector.shape_cast %53 : vector<16x8xbf16> to vector<1x1x16x8xbf16>
    tpu.vector_store %arg13[%c0_32, %c0_33, %c0_34, %c0_35], %56 {strides = array<i32>} : memref<1x4x16x8xbf16, #tpu.memory_space<vmem>>, vector<1x1x16x8xbf16>,
    %57 = vector.extract_strided_slice %27 {offsets = [0, 8], sizes = [16, 8], strides = [1, 1]} : vector<16x32xf32> to vector<16x8xf32>
    %58 = arith.truncf %57 : vector<16x8xf32> to vector<16x8xbf16>
    %c0_36 = arith.constant 0 : index
    %c1 = arith.constant 1 : index
    %c0_37 = arith.constant 0 : index
    %c0_38 = arith.constant 0 : index
    %59 = vector.load %arg11[%c0_36, %c1, %c0_37, %c0_38] : memref<1x4x16x8xbf16, #tpu.memory_space<vmem>>, vector<1x1x16x8xbf16>
    %60 = vector.shape_cast %59 : vector<1x1x16x8xbf16> to vector<16x8xbf16>
    %61 = vector.shape_cast %58 : vector<16x8xbf16> to vector<1x1x16x8xbf16>
    tpu.vector_store %arg11[%c0_36, %c1, %c0_37, %c0_38], %61 {strides = array<i32>} : memref<1x4x16x8xbf16, #tpu.memory_space<vmem>>, vector<1x1x16x8xbf16>,
    %62 = vector.extract_strided_slice %34 {offsets = [0, 8], sizes = [16, 8], strides = [1, 1]} : vector<16x32xf32> to vector<16x8xf32>
    %63 = arith.truncf %62 : vector<16x8xf32> to vector<16x8xbf16>
    %c0_39 = arith.constant 0 : index
    %c1_40 = arith.constant 1 : index
    %c0_41 = arith.constant 0 : index
    %c0_42 = arith.constant 0 : index
    %64 = vector.load %arg12[%c0_39, %c1_40, %c0_41, %c0_42] : memref<1x4x16x8xbf16, #tpu.memory_space<vmem>>, vector<1x1x16x8xbf16>
    %65 = vector.shape_cast %64 : vector<1x1x16x8xbf16> to vector<16x8xbf16>
    %66 = vector.shape_cast %63 : vector<16x8xbf16> to vector<1x1x16x8xbf16>
    tpu.vector_store %arg12[%c0_39, %c1_40, %c0_41, %c0_42], %66 {strides = array<i32>} : memref<1x4x16x8xbf16, #tpu.memory_space<vmem>>, vector<1x1x16x8xbf16>,
    %67 = vector.extract_strided_slice %41 {offsets = [0, 8], sizes = [16, 8], strides = [1, 1]} : vector<16x32xf32> to vector<16x8xf32>
    %68 = arith.truncf %67 : vector<16x8xf32> to vector<16x8xbf16>
    %c0_43 = arith.constant 0 : index
    %c1_44 = arith.constant 1 : index
    %c0_45 = arith.constant 0 : index
    %c0_46 = arith.constant 0 : index
    %69 = vector.load %arg13[%c0_43, %c1_44, %c0_45, %c0_46] : memref<1x4x16x8xbf16, #tpu.memory_space<vmem>>, vector<1x1x16x8xbf16>
    %70 = vector.shape_cast %69 : vector<1x1x16x8xbf16> to vector<16x8xbf16>
    %71 = vector.shape_cast %68 : vector<16x8xbf16> to vector<1x1x16x8xbf16>
    tpu.vector_store %arg13[%c0_43, %c1_44, %c0_45, %c0_46], %71 {strides = array<i32>} : memref<1x4x16x8xbf16, #tpu.memory_space<vmem>>, vector<1x1x16x8xbf16>,
    %72 = vector.extract_strided_slice %27 {offsets = [0, 16], sizes = [16, 8], strides = [1, 1]} : vector<16x32xf32> to vector<16x8xf32>
    %73 = arith.truncf %72 : vector<16x8xf32> to vector<16x8xbf16>
    %c0_47 = arith.constant 0 : index
    %c2 = arith.constant 2 : index
    %c0_48 = arith.constant 0 : index
    %c0_49 = arith.constant 0 : index
    %74 = vector.load %arg11[%c0_47, %c2, %c0_48, %c0_49] : memref<1x4x16x8xbf16, #tpu.memory_space<vmem>>, vector<1x1x16x8xbf16>
    %75 = vector.shape_cast %74 : vector<1x1x16x8xbf16> to vector<16x8xbf16>
    %76 = vector.shape_cast %73 : vector<16x8xbf16> to vector<1x1x16x8xbf16>
    tpu.vector_store %arg11[%c0_47, %c2, %c0_48, %c0_49], %76 {strides = array<i32>} : memref<1x4x16x8xbf16, #tpu.memory_space<vmem>>, vector<1x1x16x8xbf16>,
    %77 = vector.extract_strided_slice %34 {offsets = [0, 16], sizes = [16, 8], strides = [1, 1]} : vector<16x32xf32> to vector<16x8xf32>
    %78 = arith.truncf %77 : vector<16x8xf32> to vector<16x8xbf16>
    %c0_50 = arith.constant 0 : index
    %c2_51 = arith.constant 2 : index
    %c0_52 = arith.constant 0 : index
    %c0_53 = arith.constant 0 : index
    %79 = vector.load %arg12[%c0_50, %c2_51, %c0_52, %c0_53] : memref<1x4x16x8xbf16, #tpu.memory_space<vmem>>, vector<1x1x16x8xbf16>
    %80 = vector.shape_cast %79 : vector<1x1x16x8xbf16> to vector<16x8xbf16>
    %81 = vector.shape_cast %78 : vector<16x8xbf16> to vector<1x1x16x8xbf16>
    tpu.vector_store %arg12[%c0_50, %c2_51, %c0_52, %c0_53], %81 {strides = array<i32>} : memref<1x4x16x8xbf16, #tpu.memory_space<vmem>>, vector<1x1x16x8xbf16>,
    %82 = vector.extract_strided_slice %41 {offsets = [0, 16], sizes = [16, 8], strides = [1, 1]} : vector<16x32xf32> to vector<16x8xf32>
    %83 = arith.truncf %82 : vector<16x8xf32> to vector<16x8xbf16>
    %c0_54 = arith.constant 0 : index
    %c2_55 = arith.constant 2 : index
    %c0_56 = arith.constant 0 : index
    %c0_57 = arith.constant 0 : index
    %84 = vector.load %arg13[%c0_54, %c2_55, %c0_56, %c0_57] : memref<1x4x16x8xbf16, #tpu.memory_space<vmem>>, vector<1x1x16x8xbf16>
    %85 = vector.shape_cast %84 : vector<1x1x16x8xbf16> to vector<16x8xbf16>
    %86 = vector.shape_cast %83 : vector<16x8xbf16> to vector<1x1x16x8xbf16>
    tpu.vector_store %arg13[%c0_54, %c2_55, %c0_56, %c0_57], %86 {strides = array<i32>} : memref<1x4x16x8xbf16, #tpu.memory_space<vmem>>, vector<1x1x16x8xbf16>,
    %87 = vector.extract_strided_slice %27 {offsets = [0, 24], sizes = [16, 8], strides = [1, 1]} : vector<16x32xf32> to vector<16x8xf32>
    %88 = arith.truncf %87 : vector<16x8xf32> to vector<16x8xbf16>
    %c0_58 = arith.constant 0 : index
    %c3 = arith.constant 3 : index
    %c0_59 = arith.constant 0 : index
    %c0_60 = arith.constant 0 : index
    %89 = vector.load %arg11[%c0_58, %c3, %c0_59, %c0_60] : memref<1x4x16x8xbf16, #tpu.memory_space<vmem>>, vector<1x1x16x8xbf16>
    %90 = vector.shape_cast %89 : vector<1x1x16x8xbf16> to vector<16x8xbf16>
    %91 = vector.shape_cast %88 : vector<16x8xbf16> to vector<1x1x16x8xbf16>
    tpu.vector_store %arg11[%c0_58, %c3, %c0_59, %c0_60], %91 {strides = array<i32>} : memref<1x4x16x8xbf16, #tpu.memory_space<vmem>>, vector<1x1x16x8xbf16>,
    %92 = vector.extract_strided_slice %34 {offsets = [0, 24], sizes = [16, 8], strides = [1, 1]} : vector<16x32xf32> to vector<16x8xf32>
    %93 = arith.truncf %92 : vector<16x8xf32> to vector<16x8xbf16>
    %c0_61 = arith.constant 0 : index
    %c3_62 = arith.constant 3 : index
    %c0_63 = arith.constant 0 : index
    %c0_64 = arith.constant 0 : index
    %94 = vector.load %arg12[%c0_61, %c3_62, %c0_63, %c0_64] : memref<1x4x16x8xbf16, #tpu.memory_space<vmem>>, vector<1x1x16x8xbf16>
    %95 = vector.shape_cast %94 : vector<1x1x16x8xbf16> to vector<16x8xbf16>
    %96 = vector.shape_cast %93 : vector<16x8xbf16> to vector<1x1x16x8xbf16>
    tpu.vector_store %arg12[%c0_61, %c3_62, %c0_63, %c0_64], %96 {strides = array<i32>} : memref<1x4x16x8xbf16, #tpu.memory_space<vmem>>, vector<1x1x16x8xbf16>,
    %97 = vector.extract_strided_slice %41 {offsets = [0, 24], sizes = [16, 8], strides = [1, 1]} : vector<16x32xf32> to vector<16x8xf32>
    %98 = arith.truncf %97 : vector<16x8xf32> to vector<16x8xbf16>
    %c0_65 = arith.constant 0 : index
    %c3_66 = arith.constant 3 : index
    %c0_67 = arith.constant 0 : index
    %c0_68 = arith.constant 0 : index
    %99 = vector.load %arg13[%c0_65, %c3_66, %c0_67, %c0_68] : memref<1x4x16x8xbf16, #tpu.memory_space<vmem>>, vector<1x1x16x8xbf16>
    %100 = vector.shape_cast %99 : vector<1x1x16x8xbf16> to vector<16x8xbf16>
    %101 = vector.shape_cast %98 : vector<16x8xbf16> to vector<1x1x16x8xbf16>
    tpu.vector_store %arg13[%c0_65, %c3_66, %c0_67, %c0_68], %101 {strides = array<i32>} : memref<1x4x16x8xbf16, #tpu.memory_space<vmem>>, vector<1x1x16x8xbf16>,
    return
  }
  func.func @transform_0(%arg0: i32, %arg1: i32) -> (i32, i32, i32) {
    %c0_i32 = arith.constant 0 : i32
    %c0_i32_0 = arith.constant 0 : i32
    return %arg0, %arg1, %c0_i32 : i32, i32, i32
  }
  func.func @transform_1(%arg0: i32, %arg1: i32) -> (i32, i32) {
    %c0_i32 = arith.constant 0 : i32
    %c0_i32_0 = arith.constant 0 : i32
    %c0_i32_1 = arith.constant 0 : i32
    return %c0_i32, %c0_i32_0 : i32, i32
  }
  func.func @transform_2(%arg0: i32, %arg1: i32) -> (i32, i32) {
    %c0_i32 = arith.constant 0 : i32
    %c0_i32_0 = arith.constant 0 : i32
    %c0_i32_1 = arith.constant 0 : i32
    return %c0_i32, %c0_i32_0 : i32, i32
  }
  func.func @transform_3(%arg0: i32, %arg1: i32) -> (i32, i32) {
    %c0_i32 = arith.constant 0 : i32
    %c0_i32_0 = arith.constant 0 : i32
    %c0_i32_1 = arith.constant 0 : i32
    return %c0_i32, %c0_i32_0 : i32, i32
  }
  func.func @transform_4(%arg0: i32, %arg1: i32) -> (i32, i32) {
    %c0_i32 = arith.constant 0 : i32
    %c0_i32_0 = arith.constant 0 : i32
    %c0_i32_1 = arith.constant 0 : i32
    return %c0_i32, %c0_i32_0 : i32, i32
  }
  func.func @transform_5(%arg0: i32, %arg1: i32) -> (i32, i32) {
    %c0_i32 = arith.constant 0 : i32
    %c0_i32_0 = arith.constant 0 : i32
    %c0_i32_1 = arith.constant 0 : i32
    return %c0_i32, %c0_i32_0 : i32, i32
  }
  func.func @transform_6(%arg0: i32, %arg1: i32) -> (i32, i32) {
    %c0_i32 = arith.constant 0 : i32
    %c0_i32_0 = arith.constant 0 : i32
    %c0_i32_1 = arith.constant 0 : i32
    return %c0_i32, %c0_i32_0 : i32, i32
  }
  func.func @transform_7(%arg0: i32, %arg1: i32) -> (i32, i32) {
    %c0_i32 = arith.constant 0 : i32
    %c0_i32_0 = arith.constant 0 : i32
    %c0_i32_1 = arith.constant 0 : i32
    return %c0_i32, %c0_i32_0 : i32, i32
  }
  func.func @transform_8(%arg0: i32, %arg1: i32) -> (i32, i32, i32) {
    %c0_i32 = arith.constant 0 : i32
    %c0_i32_0 = arith.constant 0 : i32
    return %arg0, %arg1, %c0_i32 : i32, i32, i32
  }
  func.func @transform_9(%arg0: i32, %arg1: i32) -> (i32, i32, i32, i32) {
    %c0_i32 = arith.constant 0 : i32
    %c0_i32_0 = arith.constant 0 : i32
    %c0_i32_1 = arith.constant 0 : i32
    return %arg0, %c0_i32, %arg1, %c0_i32_0 : i32, i32, i32, i32
  }
  func.func @transform_10(%arg0: i32, %arg1: i32) -> (i32, i32, i32, i32) {
    %c0_i32 = arith.constant 0 : i32
    %c0_i32_0 = arith.constant 0 : i32
    %c0_i32_1 = arith.constant 0 : i32
    return %arg0, %c0_i32, %arg1, %c0_i32_0 : i32, i32, i32, i32
  }
  func.func @transform_11(%arg0: i32, %arg1: i32) -> (i32, i32, i32, i32) {
    %c0_i32 = arith.constant 0 : i32
    %c0_i32_0 = arith.constant 0 : i32
    %c0_i32_1 = arith.constant 0 : i32
    return %arg0, %c0_i32, %arg1, %c0_i32_0 : i32, i32, i32, i32
  }
}

</mosaic_0001>

<llo_original>
// kernel: parallel_transformer_block.5
$region0: #{parallel_transformer_block.5}
  #allocation0 [shape = 'u32[]', space=smem, size = 0x4, offset = 0x4, fixed_abs, tag = 'smem constant byte address 0x4 - core index']
  #allocation1 [shape = 'u32[144,128]{1,0:T(1,128)}', space=vmem, size = 0x12000, scoped, tag = 'internal scratch']
  #allocation2 [shape = 'f32[8,32]{1,0:T(8,128)}', space=vmem, size = 0x1000, scoped, tag = 'scratch operand']
  %s0 = inlined_call_operand.vmem [shape: bf16[2,16,32], index: 0, kind: input, shape index: {}]
  %s1 = inlined_call_operand.vmem [shape: f32[2,16,32], index: 1, kind: input, shape index: {}]
  %s2 = inlined_call_operand.vmem [shape: bf16[32,64], index: 2, kind: input, shape index: {}]
  %s3 = inlined_call_operand.vmem [shape: bf16[32,64], index: 3, kind: input, shape index: {}]
  %s4 = inlined_call_operand.vmem [shape: bf16[64,32], index: 4, kind: input, shape index: {}]
  %s5 = inlined_call_operand.hbm [shape: f32[2,16,32], index: 5, kind: output, shape index: {}]
  %s6 = sld [smem:[#allocation0]]
  $region61: #{parallel_transformer_block.5} parent=0
    _
  %s8 = ssub.s32 1, %s6
  %s9 = scalar_select 0, %s8, %s6
  $region1: #{parallel_transformer_block.5} parent=0
    #allocation3 [shape = 'u8[8192]{0}', space=vmem, size = 0x2000, scoped, tag = 'output window, operand 0']
    #allocation4 [shape = 's32[2]{0}', space=sflag, size = 0x8, scoped, tag = 'scoped memory for parallel_transformer_block.5']
    %10 = vsyncpa [#allocation4], 0
    %s11 = scalar_lea.sflag [#allocation4], 1
    %12 = vsyncpa %s11, 0
    loop: start=0, step=1, limit=6
    $region2: #{parallel_transformer_block.5} parent=1 // loop_pre_header
      _
    $region3: #{parallel_transformer_block.5} parent=1 // loop_header
      %s14 = sphi 0, %s18
      %p15 = scmp.ge.s32.totalorder %s14, 6
      %s21 = sphi 0, %s40
      %s22 = sphi 0, %s36
      %s23 = sphi 0, %s32
      %s24 = sphi 0, %s21
      %s25 = sphi 0, %s22
      %s26 = sphi 0, %s23
      %s27 = sphi 0, %s24
      %s28 = sphi 0, %s25
      %s29 = sphi 0, %s26
      %s45 = sphi 0, %s47
      %s48 = sphi 0, %s45
      %s49 = sphi 0, %s48
      %s65 = sphi 0, %s49
      %s73 = sphi 0, %s75
      %s76 = sphi 0, %s73
      %s77 = sphi 0, %s76
      %s93 = sphi 0, %s77
      %s99 = sphi 0, %s101
      %s102 = sphi 0, %s99
      %s103 = sphi 0, %s102
      %s119 = sphi 0, %s103
      %s125 = sphi 0, %s127
      %s128 = sphi 0, %s125
      %s129 = sphi 0, %s128
      %s145 = sphi 0, %s129
      %s151 = sphi 0, %s153
      %s154 = sphi 0, %s151
      %s155 = sphi 0, %s154
      %s171 = sphi 0, %s155
      %s179 = sphi 0, %s181
      %s182 = sphi 0, %s179
      %s183 = sphi 0, %s182
      %s199 = sphi 0, %s183
    $region4: #{parallel_transformer_block.5} parent=1 // loop_header_branch
      %17 = sbr.rel (%p15) target = $region8
    $region5: #{parallel_transformer_block.5} parent=1 // loop_body
      %s19 = ssub.s32 %s14, 1
      %s20 = ssub.s32 %s14, 2
      %s30 = sadd.s32 1, %s23
      %p31 = scmp.ge.s32.totalorder %s30, 1
      %s32 = scalar_select %p31, 0, %s30
      %s33 = sadd.s32 1, %s22
      %s34 = scalar_select %p31, %s33, %s22
      %p35 = scmp.ge.s32.totalorder %s34, 2
      %s36 = scalar_select %p35, 0, %s34
      %s37 = sadd.s32 1, %s21
      %s38 = scalar_select %p35, %s37, %s21
      %p39 = scmp.ge.s32.totalorder %s38, 2
      %s40 = scalar_select %p39, 0, %s38
      %s41 = ssub.s32 %s21, %s40
      %s42 = ssub.s32 %s22, %s36
      %s43 = sor.u32 %s41, %s42
      %p44 = scmp.eq.s32.totalorder %s43, 0
      %s46 = sadd.s32 %s45, 1
      %s47 = scalar_select %p44, %s45, %s46
      %p50 = pneg %p44
      %p51 = scmp.eq.s32.totalorder %s14, 3
      %p52 = por %p50, %p51
      %p53 = scmp.ne.s32.totalorder %s45, %s48
      %p54 = scmp.eq.s32.totalorder %s14, 0
      %p55 = por %p53, %p54
      %p56 = scmp.ne.s32.totalorder %s45, %s48
      %p57 = scmp.eq.s32.totalorder %s19, 3
      %p58 = por %p56, %p57
      %p59 = scmp.ne.s32.totalorder %s48, %s49
      %p60 = scmp.eq.s32.totalorder %s19, 0
      %p61 = por %p59, %p60
      %p62 = scmp.ne.s32.totalorder %s48, %s49
      %p63 = scmp.eq.s32.totalorder %s20, 3
      %p64 = por %p62, %p63
      %p66 = scmp.ne.s32.totalorder %s49, %s65
      %p67 = scmp.eq.s32.totalorder %s20, 0
      %p68 = por %p66, %p67
      %s69 = ssub.s32 %s21, %s40
      %s70 = ssub.s32 %s22, %s36
      %s71 = sor.u32 %s69, %s70
      %p72 = scmp.eq.s32.totalorder %s71, 0
      %s74 = sadd.s32 %s73, 1
      %s75 = scalar_select %p72, %s73, %s74
      %p78 = pneg %p72
      %p79 = scmp.eq.s32.totalorder %s14, 3
      %p80 = por %p78, %p79
      %p81 = scmp.ne.s32.totalorder %s73, %s76
      %p82 = scmp.eq.s32.totalorder %s14, 0
      %p83 = por %p81, %p82
      %p84 = scmp.ne.s32.totalorder %s73, %s76
      %p85 = scmp.eq.s32.totalorder %s19, 3
      %p86 = por %p84, %p85
      %p87 = scmp.ne.s32.totalorder %s76, %s77
      %p88 = scmp.eq.s32.totalorder %s19, 0
      %p89 = por %p87, %p88
      %p90 = scmp.ne.s32.totalorder %s76, %s77
      %p91 = scmp.eq.s32.totalorder %s20, 3
      %p92 = por %p90, %p91
      %p94 = scmp.ne.s32.totalorder %s77, %s93
      %p95 = scmp.eq.s32.totalorder %s20, 0
      %p96 = por %p94, %p95
      %s97 = ssub.s32 %s23, %s32
      %p98 = scmp.eq.s32.totalorder %s97, 0
      %s100 = sadd.s32 %s99, 1
      %s101 = scalar_select %p98, %s99, %s100
      %p104 = pneg %p98
      %p105 = scmp.eq.s32.totalorder %s14, 3
      %p106 = por %p104, %p105
      %p107 = scmp.ne.s32.totalorder %s99, %s102
      %p108 = scmp.eq.s32.totalorder %s14, 0
      %p109 = por %p107, %p108
      %p110 = scmp.ne.s32.totalorder %s99, %s102
      %p111 = scmp.eq.s32.totalorder %s19, 3
      %p112 = por %p110, %p111
      %p113 = scmp.ne.s32.totalorder %s102, %s103
      %p114 = scmp.eq.s32.totalorder %s19, 0
      %p115 = por %p113, %p114
      %p116 = scmp.ne.s32.totalorder %s102, %s103
      %p117 = scmp.eq.s32.totalorder %s20, 3
      %p118 = por %p116, %p117
      %p120 = scmp.ne.s32.totalorder %s103, %s119
      %p121 = scmp.eq.s32.totalorder %s20, 0
      %p122 = por %p120, %p121
      %s123 = ssub.s32 %s23, %s32
      %p124 = scmp.eq.s32.totalorder %s123, 0
      %s126 = sadd.s32 %s125, 1
      %s127 = scalar_select %p124, %s125, %s126
      %p130 = pneg %p124
      %p131 = scmp.eq.s32.totalorder %s14, 3
      %p132 = por %p130, %p131
      %p133 = scmp.ne.s32.totalorder %s125, %s128
      %p134 = scmp.eq.s32.totalorder %s14, 0
      %p135 = por %p133, %p134
      %p136 = scmp.ne.s32.totalorder %s125, %s128
      %p137 = scmp.eq.s32.totalorder %s19, 3
      %p138 = por %p136, %p137
      %p139 = scmp.ne.s32.totalorder %s128, %s129
      %p140 = scmp.eq.s32.totalorder %s19, 0
      %p141 = por %p139, %p140
      %p142 = scmp.ne.s32.totalorder %s128, %s129
      %p143 = scmp.eq.s32.totalorder %s20, 3
      %p144 = por %p142, %p143
      %p146 = scmp.ne.s32.totalorder %s129, %s145
      %p147 = scmp.eq.s32.totalorder %s20, 0
      %p148 = por %p146, %p147
      %s149 = ssub.s32 %s23, %s32
      %p150 = scmp.eq.s32.totalorder %s149, 0
      %s152 = sadd.s32 %s151, 1
      %s153 = scalar_select %p150, %s151, %s152
      %p156 = pneg %p150
      %p157 = scmp.eq.s32.totalorder %s14, 3
      %p158 = por %p156, %p157
      %p159 = scmp.ne.s32.totalorder %s151, %s154
      %p160 = scmp.eq.s32.totalorder %s14, 0
      %p161 = por %p159, %p160
      %p162 = scmp.ne.s32.totalorder %s151, %s154
      %p163 = scmp.eq.s32.totalorder %s19, 3
      %p164 = por %p162, %p163
      %p165 = scmp.ne.s32.totalorder %s154, %s155
      %p166 = scmp.eq.s32.totalorder %s19, 0
      %p167 = por %p165, %p166
      %p168 = scmp.ne.s32.totalorder %s154, %s155
      %p169 = scmp.eq.s32.totalorder %s20, 3
      %p170 = por %p168, %p169
      %p172 = scmp.ne.s32.totalorder %s155, %s171
      %p173 = scmp.eq.s32.totalorder %s20, 0
      %p174 = por %p172, %p173
      %s175 = ssub.s32 %s21, %s40
      %s176 = ssub.s32 %s22, %s36
      %s177 = sor.u32 %s175, %s176
      %p178 = scmp.eq.s32.totalorder %s177, 0
      %s180 = sadd.s32 %s179, 1
      %s181 = scalar_select %p178, %s179, %s180
      %p184 = pneg %p178
      %p185 = scmp.eq.s32.totalorder %s14, 3
      %p186 = por %p184, %p185
      %p187 = scmp.ne.s32.totalorder %s179, %s182
      %p188 = scmp.eq.s32.totalorder %s14, 0
      %p189 = por %p187, %p188
      %p190 = scmp.ne.s32.totalorder %s179, %s182
      %p191 = scmp.eq.s32.totalorder %s19, 3
      %p192 = por %p190, %p191
      %p193 = scmp.ne.s32.totalorder %s182, %s183
      %p194 = scmp.eq.s32.totalorder %s19, 0
      %p195 = por %p193, %p194
      %p196 = scmp.ne.s32.totalorder %s182, %s183
      %p197 = scmp.eq.s32.totalorder %s20, 3
      %p198 = por %p196, %p197
      %p200 = scmp.ne.s32.totalorder %s183, %s199
      %p201 = scmp.eq.s32.totalorder %s20, 0
      %p202 = por %p200, %p201
      %p203 = scmp.le.s32.totalorder 1, %s14
      %p204 = scmp.lt.s32.totalorder %s14, 5
      %p205 = pnand %p203, %p204
      %p206 = pneg %p205
      // Predicated region
      $region9: #{parallel_transformer_block.5} parent=5 // pred_check
        _
      $region10: #{parallel_transformer_block.5} parent=5 // pred_check_branch
        %208 = sbr.rel (%p205) target = $region12
      $region11: #{parallel_transformer_block.5} parent=5 // pred_region
        %s209 = ssub.s32 %s14, 1
        // Predicated region
        $region13: #{parallel_transformer_block.5} parent=11 // pred_check
          %p210 = pneg %p115
        $region14: #{parallel_transformer_block.5} parent=11 // pred_check_branch
          %212 = sbr.rel (%p210) target = $region16
        $region15: #{parallel_transformer_block.5} parent=11 // pred_region
          %p213 = scmp.lt.s32.totalorder %s26, 0
          %s214 = scalar_select %p213, %s26, 0
          %s215 = smul.addr %s214, 4
          %s216 = scalar_lea.vmem %s2, %s215
        $region16: #{parallel_transformer_block.5} parent=11 // pred_fallthru
          _
        // Predicated region
        $region17: #{parallel_transformer_block.5} parent=11 // pred_check
          %p217 = pneg %p141
        $region18: #{parallel_transformer_block.5} parent=11 // pred_check_branch
          %219 = sbr.rel (%p217) target = $region20
        $region19: #{parallel_transformer_block.5} parent=11 // pred_region
          %p220 = scmp.lt.s32.totalorder %s26, 0
          %s221 = scalar_select %p220, %s26, 0
          %s222 = smul.addr %s221, 4
          %s223 = scalar_lea.vmem %s3, %s222
        $region20: #{parallel_transformer_block.5} parent=11 // pred_fallthru
          _
        // Predicated region
        $region21: #{parallel_transformer_block.5} parent=11 // pred_check
          %p224 = pneg %p167
        $region22: #{parallel_transformer_block.5} parent=11 // pred_check_branch
          %226 = sbr.rel (%p224) target = $region24
        $region23: #{parallel_transformer_block.5} parent=11 // pred_region
          %s227 = smul.u32 8, %s26
          %p228 = scmp.lt.s32.totalorder %s227, 7
          %s229 = scalar_select %p228, %s227, 7
          %s230 = smul.addr %s229, 4
          %s231 = scalar_lea.vmem %s4, %s230
          %s232 = smul.u32 8, %s26
        $region24: #{parallel_transformer_block.5} parent=11 // pred_fallthru
          _
      $region12: #{parallel_transformer_block.5} parent=5 // pred_fallthru
        _
      %p233 = scmp.lt.s32.totalorder %s14, 4
      // Predicated region
      $region25: #{parallel_transformer_block.5} parent=5 // pred_check
        %p234 = pneg %p233
      $region26: #{parallel_transformer_block.5} parent=5 // pred_check_branch
        %236 = sbr.rel (%p234) target = $region28
      $region27: #{parallel_transformer_block.5} parent=5 // pred_region
        // Predicated region
        $region29: #{parallel_transformer_block.5} parent=27 // pred_check
          %p237 = pneg %p55
        $region30: #{parallel_transformer_block.5} parent=27 // pred_check_branch
          %239 = sbr.rel (%p237) target = $region32
        $region31: #{parallel_transformer_block.5} parent=27 // pred_region
          %p240 = scmp.lt.s32.totalorder %s21, 1
          %s241 = scalar_select %p240, %s21, 1
          %p242 = scmp.lt.s32.totalorder %s22, 1
          %s243 = scalar_select %p242, %s22, 1
          %s244 = smul.addr %s241, 2
          %s245 = sadd.s32 %s243, %s244
          %s246 = smul.addr %s245, 4
          %s247 = scalar_lea.vmem %s0, %s246
        $region32: #{parallel_transformer_block.5} parent=27 // pred_fallthru
          _
        // Predicated region
        $region33: #{parallel_transformer_block.5} parent=27 // pred_check
          %p248 = pneg %p83
        $region34: #{parallel_transformer_block.5} parent=27 // pred_check_branch
          %250 = sbr.rel (%p248) target = $region36
        $region35: #{parallel_transformer_block.5} parent=27 // pred_region
          %p251 = scmp.lt.s32.totalorder %s21, 1
          %s252 = scalar_select %p251, %s21, 1
          %p253 = scmp.lt.s32.totalorder %s22, 1
          %s254 = scalar_select %p253, %s22, 1
          %s255 = smul.addr %s252, 2
          %s256 = sadd.s32 %s254, %s255
          %s257 = smul.addr %s256, 8
          %s258 = scalar_lea.vmem %s1, %s257
        $region36: #{parallel_transformer_block.5} parent=27 // pred_fallthru
          _
      $region28: #{parallel_transformer_block.5} parent=5 // pred_fallthru
        _
      %p259 = scmp.le.s32.totalorder 1, %s14
      %p260 = scmp.lt.s32.totalorder %s14, 5
      %p261 = pnand %p259, %p260
      %p262 = pneg %p261
      // Predicated region
      $region37: #{parallel_transformer_block.5} parent=5 // pred_check
        _
      $region38: #{parallel_transformer_block.5} parent=5 // pred_check_branch
        %264 = sbr.rel (%p261) target = $region40
      $region39: #{parallel_transformer_block.5} parent=5 // pred_region
        %s265 = ssub.s32 %s14, 1
        %p266 = scmp.lt.s32.totalorder %s24, 1
        %s267 = scalar_select %p266, %s24, 1
        %p268 = scmp.lt.s32.totalorder %s25, 1
        %s269 = scalar_select %p268, %s25, 1
        %s270 = smul.addr %s267, 2
        %s271 = sadd.s32 %s269, %s270
        %s272 = smul.addr %s271, 4
        %s273 = scalar_lea.vmem %s0, %s272
        %p274 = pneg %p61
        %p275 = pneg %p58
        %p276 = scmp.lt.s32.totalorder %s24, 1
        %s277 = scalar_select %p276, %s24, 1
        %p278 = scmp.lt.s32.totalorder %s25, 1
        %s279 = scalar_select %p278, %s25, 1
        %s280 = smul.addr %s277, 2
        %s281 = sadd.s32 %s279, %s280
        %s282 = smul.addr %s281, 8
        %s283 = scalar_lea.vmem %s1, %s282
        %p284 = pneg %p89
        %p285 = pneg %p86
        %p286 = scmp.lt.s32.totalorder %s26, 0
        %s287 = scalar_select %p286, %s26, 0
        %s288 = smul.addr %s287, 4
        %s289 = scalar_lea.vmem %s2, %s288
        %p290 = pneg %p115
        %p291 = pneg %p112
        %p292 = scmp.lt.s32.totalorder %s26, 0
        %s293 = scalar_select %p292, %s26, 0
        %s294 = smul.addr %s293, 4
        %s295 = scalar_lea.vmem %s3, %s294
        %p296 = pneg %p141
        %p297 = pneg %p138
        %s298 = smul.u32 8, %s26
        %p299 = scmp.lt.s32.totalorder %s298, 7
        %s300 = scalar_select %p299, %s298, 7
        %s301 = smul.addr %s300, 4
        %s302 = scalar_lea.vmem %s4, %s301
        %p303 = pneg %p167
        %p304 = pneg %p164
        %p305 = pneg %p195
        %p306 = pneg %p192
        %s307 = sand.u32 %s182, 1
        %s308 = scalar_lea.sflag [#allocation4], %s307
        %s309 = sand.u32 %s182, 1
        %s310 = smul.addr %s309, 8
        %s311 = scalar_lea.vmem [#allocation3], %s310
        %p312 = scmp.lt.s32.totalorder %s24, 1
        %s313 = scalar_select %p312, %s24, 1
        %p314 = scmp.lt.s32.totalorder %s25, 1
        %s315 = scalar_select %p314, %s25, 1
        %s316 = smul.addr %s313, 2
        %s317 = sadd.s32 %s315, %s316
        %s318 = smul.addr %s317, 4
        %s319 = scalar_lea.vmem %s0, %s318
        %p320 = scmp.lt.s32.totalorder %s24, 1
        %s321 = scalar_select %p320, %s24, 1
        %p322 = scmp.lt.s32.totalorder %s25, 1
        %s323 = scalar_select %p322, %s25, 1
        %s324 = smul.addr %s321, 2
        %s325 = sadd.s32 %s323, %s324
        %s326 = smul.addr %s325, 8
        %s327 = scalar_lea.vmem %s1, %s326
        %p328 = scmp.lt.s32.totalorder %s26, 0
        %s329 = scalar_select %p328, %s26, 0
        %s330 = smul.addr %s329, 4
        %s331 = scalar_lea.vmem %s2, %s330
        %p332 = scmp.lt.s32.totalorder %s26, 0
        %s333 = scalar_select %p332, %s26, 0
        %s334 = smul.addr %s333, 4
        %s335 = scalar_lea.vmem %s3, %s334
        %s336 = smul.u32 8, %s26
        %p337 = scmp.lt.s32.totalorder %s336, 7
        %s338 = scalar_select %p337, %s336, 7
        %s339 = smul.addr %s338, 4
        %s340 = scalar_lea.vmem %s4, %s339
        %s341 = smul.u32 8, %s26
        %p343 = scmp.eq.s32.totalorder %s26, 0
        // Predicated region
        $region41: #{parallel_transformer_block.5} parent=39 // pred_check
          %p344 = pneg %p343
        $region42: #{parallel_transformer_block.5} parent=39 // pred_check_branch
          %346 = sbr.rel (%p344) target = $region44
        $region43: #{parallel_transformer_block.5} parent=39 // pred_region
          %vm347 = vcmask 261120
          %348 = vst.msk [vmem:[#allocation2] sm:$0xff] %vm347, 0.0
        $region44: #{parallel_transformer_block.5} parent=39 // pred_fallthru
          _
        %v349 = vld [vmem:[%s319] sm:$0xf]
        %v350 = vld [vmem:[%s331] sm:$0xf]
        %v351 = vld [vmem:[%s331 + $0x4] sm:$0xf]
        %v352 = vld [vmem:[%s331 + $0x8] sm:$0xf]
        %v353 = vld [vmem:[%s331 + $0xc] sm:$0xf]
        %v358 = vunpack.c.l.b16 %v350
        %v359 = vunpack.c.l.b16 %v351
        %v360 = vunpack.c.l.b16 %v352
        %v361 = vunpack.c.l.b16 %v353
        %v362 = vpack.c.b16 %v359, %v358
        %v363 = vpack.c.b16 %v361, %v360
        %vm366 = vcmask 261120
        %v368 = vsel %vm366, %v349, 0
        %370 = vmatprep.subr.bf16.mxu0 0
        %371 = vmatpush1.bf16.msra.mxu0 0
        %372 = vmatprep.subr.bf16.mxu0 0
        %373 = vmatpush1.bf16.msra.mxu0 0
        %374 = vmatprep.subr.bf16.mxu0 0
        %375 = vmatpush1.bf16.msra.mxu0 0
        %376 = vmatprep.subr.bf16.mxu0 0
        %377 = vmatpush1.bf16.msra.mxu0 0
        %378 = vmatprep.subr.bf16.mxu0 0
        %379 = vmatpush1.bf16.msra.mxu0 0
        %380 = vmatprep.subr.bf16.mxu0 0
        %381 = vmatpush1.bf16.msra.mxu0 0
        %382 = vmatprep.subr.bf16.mxu0 0
        %383 = vmatpush1.bf16.msra.mxu0 %v363
        %384 = vmatprep.subr.bf16.mxu0 0
        %385 = vmatpush1.bf16.msra.mxu0 %v362
        %386 = vmatprep.subr.bf16.mxu0 0
        %387 = vmatpush2.bf16.msra.mxu0 0
        %388 = vmatprep.subr.bf16.mxu0 0
        %389 = vmatpush2.bf16.msra.mxu0 0
        %390 = vmatprep.subr.bf16.mxu0 0
        %391 = vmatpush2.bf16.msra.mxu0 0
        %392 = vmatprep.subr.bf16.mxu0 0
        %393 = vmatpush2.bf16.msra.mxu0 0
        %394 = vmatprep.subr.bf16.mxu0 0
        %395 = vmatpush2.bf16.msra.mxu0 0
        %396 = vmatprep.subr.bf16.mxu0 0
        %397 = vmatpush2.bf16.msra.mxu0 0
        %398 = vmatprep.subr.bf16.mxu0 0
        %399 = vmatpush2.bf16.msra.mxu0 0
        %400 = vmatprep.subr.bf16.mxu0 0
        %401 = vmatpush2.bf16.msra.mxu0 0
        %402 = vmatprep.mubr.bf16.mxu0 0
        %403 = vmatmul.mubr.bf16.gmra.mxu0 %v368
        %v404 = vpop.f32.mrf.mxu0
        %v405 = vadd.f32 0.0, %v404
        %v406 = vpop.f32.mrf.mxu0
        %v407 = vpop.f32.mrf.mxu0
        %v408 = vpop.f32.mrf.mxu0
        %409 = vdwg.mxu0
        %v410 = vld [vmem:[%s335] sm:$0xf]
        %v411 = vld [vmem:[%s335 + $0x4] sm:$0xf]
        %v412 = vld [vmem:[%s335 + $0x8] sm:$0xf]
        %v413 = vld [vmem:[%s335 + $0xc] sm:$0xf]
        %v418 = vunpack.c.l.b16 %v410
        %v419 = vunpack.c.l.b16 %v411
        %v420 = vunpack.c.l.b16 %v412
        %v421 = vunpack.c.l.b16 %v413
        %v422 = vpack.c.b16 %v419, %v418
        %v423 = vpack.c.b16 %v421, %v420
        %426 = vmatprep.subr.bf16.mxu0 0
        %427 = vmatpush1.bf16.msra.mxu0 0
        %428 = vmatprep.subr.bf16.mxu0 0
        %429 = vmatpush1.bf16.msra.mxu0 0
        %430 = vmatprep.subr.bf16.mxu0 0
        %431 = vmatpush1.bf16.msra.mxu0 0
        %432 = vmatprep.subr.bf16.mxu0 0
        %433 = vmatpush1.bf16.msra.mxu0 0
        %434 = vmatprep.subr.bf16.mxu0 0
        %435 = vmatpush1.bf16.msra.mxu0 0
        %436 = vmatprep.subr.bf16.mxu0 0
        %437 = vmatpush1.bf16.msra.mxu0 0
        %438 = vmatprep.subr.bf16.mxu0 0
        %439 = vmatpush1.bf16.msra.mxu0 %v423
        %440 = vmatprep.subr.bf16.mxu0 0
        %441 = vmatpush1.bf16.msra.mxu0 %v422
        %442 = vmatprep.subr.bf16.mxu0 0
        %443 = vmatpush2.bf16.msra.mxu0 0
        %444 = vmatprep.subr.bf16.mxu0 0
        %445 = vmatpush2.bf16.msra.mxu0 0
        %446 = vmatprep.subr.bf16.mxu0 0
        %447 = vmatpush2.bf16.msra.mxu0 0
        %448 = vmatprep.subr.bf16.mxu0 0
        %449 = vmatpush2.bf16.msra.mxu0 0
        %450 = vmatprep.subr.bf16.mxu0 0
        %451 = vmatpush2.bf16.msra.mxu0 0
        %452 = vmatprep.subr.bf16.mxu0 0
        %453 = vmatpush2.bf16.msra.mxu0 0
        %454 = vmatprep.subr.bf16.mxu0 0
        %455 = vmatpush2.bf16.msra.mxu0 0
        %456 = vmatprep.subr.bf16.mxu0 0
        %457 = vmatpush2.bf16.msra.mxu0 0
        %458 = vmatprep.mubr.bf16.mxu0 0
        %459 = vmatmul.mubr.bf16.gmra.mxu0 %v368
        %v460 = vpop.f32.mrf.mxu0
        %v461 = vadd.f32 0.0, %v460
        %v462 = vpop.f32.mrf.mxu0
        %v463 = vpop.f32.mrf.mxu0
        %v464 = vpop.f32.mrf.mxu0
        %465 = vdwg.mxu0
        %v466 = vxor.u32 %v405, 2147483648
        %v467 = vmul.f32 %v466, 1.442695
        %v468 = vpow.pop %v467
        %v469 = vadd.f32 %v468, 1.0
        %v470 = vrcp.pop %v469
        %v471 = vmul.f32 1.0, %v470
        %v472 = vmul.f32 %v405, %v471
        %v473 = vmul.f32 %v472, %v461
        %v474 = vpack.c.bf16 %v473, %v473
        %v475 = vld [vmem:[#allocation2] sm:$0xff]
        %v476 = vld [vmem:[%s340] sm:$0xf]
        %v477 = vld [vmem:[%s340 + $0x4] sm:$0xf]
        %v478 = vld [vmem:[%s340 + $0x8] sm:$0xf]
        %v479 = vld [vmem:[%s340 + $0xc] sm:$0xf]
        %v480 = vld [vmem:[%s340 + $0x10] sm:$0xf]
        %v481 = vld [vmem:[%s340 + $0x14] sm:$0xf]
        %v482 = vld [vmem:[%s340 + $0x18] sm:$0xf]
        %v483 = vld [vmem:[%s340 + $0x1c] sm:$0xf]
        %v492 = vunpack.c.l.b16 %v476
        %v493 = vunpack.c.l.b16 %v477
        %v494 = vunpack.c.l.b16 %v478
        %v495 = vunpack.c.l.b16 %v479
        %v496 = vunpack.c.l.b16 %v480
        %v497 = vunpack.c.l.b16 %v481
        %v498 = vunpack.c.l.b16 %v482
        %v499 = vunpack.c.l.b16 %v483
        %v500 = vpack.c.b16 %v493, %v492
        %v501 = vpack.c.b16 %v495, %v494
        %v502 = vpack.c.b16 %v497, %v496
        %v503 = vpack.c.b16 %v499, %v498
        %vm508 = vcmask 523264
        %v510 = vsel %vm508, %v474, 0
        %512 = vmatprep.subr.bf16.mxu0 0
        %513 = vmatpush1.bf16.msra.mxu0 0
        %514 = vmatprep.subr.bf16.mxu0 0
        %515 = vmatpush1.bf16.msra.mxu0 0
        %516 = vmatprep.subr.bf16.mxu0 0
        %517 = vmatpush1.bf16.msra.mxu0 0
        %518 = vmatprep.subr.bf16.mxu0 0
        %519 = vmatpush1.bf16.msra.mxu0 0
        %520 = vmatprep.subr.bf16.mxu0 0
        %521 = vmatpush1.bf16.msra.mxu0 %v503
        %522 = vmatprep.subr.bf16.mxu0 0
        %523 = vmatpush1.bf16.msra.mxu0 %v502
        %524 = vmatprep.subr.bf16.mxu0 0
        %525 = vmatpush1.bf16.msra.mxu0 %v501
        %526 = vmatprep.subr.bf16.mxu0 0
        %527 = vmatpush1.bf16.msra.mxu0 %v500
        %528 = vmatprep.subr.bf16.mxu0 0
        %529 = vmatpush2.bf16.msra.mxu0 0
        %530 = vmatprep.subr.bf16.mxu0 0
        %531 = vmatpush2.bf16.msra.mxu0 0
        %532 = vmatprep.subr.bf16.mxu0 0
        %533 = vmatpush2.bf16.msra.mxu0 0
        %534 = vmatprep.subr.bf16.mxu0 0
        %535 = vmatpush2.bf16.msra.mxu0 0
        %536 = vmatprep.subr.bf16.mxu0 0
        %537 = vmatpush2.bf16.msra.mxu0 0
        %538 = vmatprep.subr.bf16.mxu0 0
        %539 = vmatpush2.bf16.msra.mxu0 0
        %540 = vmatprep.subr.bf16.mxu0 0
        %541 = vmatpush2.bf16.msra.mxu0 0
        %542 = vmatprep.subr.bf16.mxu0 0
        %543 = vmatpush2.bf16.msra.mxu0 0
        %544 = vmatprep.mubr.bf16.mxu0 0
        %545 = vmatmul.mubr.bf16.gmra.mxu0 %v510
        %v546 = vpop.f32.mrf.mxu0
        %v547 = vadd.f32 0.0, %v546
        %v548 = vpop.f32.mrf.mxu0
        %v549 = vpop.f32.mrf.mxu0
        %v550 = vpop.f32.mrf.mxu0
        %551 = vdwg.mxu0
        %v552 = vadd.f32 %v475, %v547
        %553 = vst.msk [vmem:[#allocation2] sm:$0xff] %vm366, %v552
        // Predicated region
        $region45: #{parallel_transformer_block.5} parent=39 // pred_check
          %p554 = pneg %p343
        $region46: #{parallel_transformer_block.5} parent=39 // pred_check_branch
          %556 = sbr.rel (%p554) target = $region48
        $region47: #{parallel_transformer_block.5} parent=39 // pred_region
          %v557 = vld [vmem:[%s327] sm:$0xff]
          %v558 = vld [vmem:[#allocation2] sm:$0xff]
          %v559 = vadd.f32 %v557, %v558
          %560 = vst.msk [vmem:[%s311] sm:$0xff] %vm366, %v559
        $region48: #{parallel_transformer_block.5} parent=39 // pred_fallthru
          _
        %s561 = sand.u32 %s182, 1
        %s562 = scalar_lea.sflag [#allocation4], %s561
        %s563 = sand.u32 %s182, 1
        %s564 = smul.addr %s563, 8
        %s565 = scalar_lea.vmem [#allocation3], %s564
        // Predicated region
        $region49: #{parallel_transformer_block.5} parent=39 // pred_check
          %p566 = pneg %p192
        $region50: #{parallel_transformer_block.5} parent=39 // pred_check_branch
          %568 = sbr.rel (%p566) target = $region52
        $region51: #{parallel_transformer_block.5} parent=39 // pred_region
          %s570 = ssub.s32 128, 128
          %571 = vsyncadd %s562, %s570
          %s572 = smul.addr %s24, 2
          %s573 = sadd.s32 %s25, %s572
          %s574 = smul.addr %s573, 128
          %s575 = scalar_lea.hbm %s5, %s574
          %s577 = sshll.u32 %s565, 4
          %s578 = int_to_ptr.vmem [resolvable:$true] %s577
          %580 = dma.vmem_to_hbm [thread:$0]  %s578, 128, %s575, %s562
        $region52: #{parallel_transformer_block.5} parent=39 // pred_fallthru
          _
      $region40: #{parallel_transformer_block.5} parent=5 // pred_fallthru
        _
      %p581 = scmp.le.s32.totalorder 2, %s14
      // Predicated region
      $region53: #{parallel_transformer_block.5} parent=5 // pred_check
        %p582 = pneg %p581
      $region54: #{parallel_transformer_block.5} parent=5 // pred_check_branch
        %584 = sbr.rel (%p582) target = $region56
      $region55: #{parallel_transformer_block.5} parent=5 // pred_region
        %s585 = ssub.s32 %s14, 2
        // Predicated region
        $region57: #{parallel_transformer_block.5} parent=55 // pred_check
          %p586 = pneg %p198
        $region58: #{parallel_transformer_block.5} parent=55 // pred_check_branch
          %588 = sbr.rel (%p586) target = $region60
        $region59: #{parallel_transformer_block.5} parent=55 // pred_region
          %s589 = sand.u32 %s183, 1
          %s590 = scalar_lea.sflag [#allocation4], %s589
          %s591 = sand.u32 %s183, 1
          %s592 = smul.addr %s591, 8
          %s593 = scalar_lea.vmem [#allocation3], %s592
          %594 = dma.done %s590, 128
        $region60: #{parallel_transformer_block.5} parent=55 // pred_fallthru
          _
      $region56: #{parallel_transformer_block.5} parent=5 // pred_fallthru
        _
    $region6: #{parallel_transformer_block.5} parent=1 // loop_footer
      %s18 = sadd.s32 1, %s14
    $region7: #{parallel_transformer_block.5} parent=1 // loop_footer_branch
      %13 = sbr.rel target = $region3
    $region8: #{parallel_transformer_block.5} parent=1 // loop_exit
      _
    %595 = vsyncpa [#allocation4], 1
    %s596 = scalar_lea.sflag [#allocation4], 1
    %597 = vsyncpa %s596, 1

// kernel: parallel_transformer_block.3
$region0: #{parallel_transformer_block.3}
  #allocation0 [shape = 'u32[]', space=smem, size = 0x4, offset = 0x4, fixed_abs, tag = 'smem constant byte address 0x4 - core index']
  #allocation1 [shape = 'u32[144,128]{1,0:T(1,128)}', space=vmem, size = 0x12000, scoped, tag = 'internal scratch']
  %s0 = inlined_call_operand.vmem [shape: f32[2,16,32], index: 0, kind: input, shape index: {}]
  %s1 = inlined_call_operand.vmem [shape: f32[1,32], index: 1, kind: input, shape index: {}]
  %s2 = inlined_call_operand.vmem [shape: bf16[32,32], index: 2, kind: input, shape index: {}]
  %s3 = inlined_call_operand.vmem [shape: f32[1,32], index: 3, kind: input, shape index: {}]
  %s4 = inlined_call_operand.vmem [shape: bf16[32,32], index: 4, kind: input, shape index: {}]
  %s5 = inlined_call_operand.vmem [shape: f32[1,32], index: 5, kind: input, shape index: {}]
  %s6 = inlined_call_operand.vmem [shape: bf16[32,32], index: 6, kind: input, shape index: {}]
  %s7 = inlined_call_operand.vmem [shape: f32[1,32], index: 7, kind: input, shape index: {}]
  %s8 = inlined_call_operand.vmem [shape: bf16[2,16,32], index: 8, kind: output, shape index: {0}]
  %s9 = inlined_call_operand.vmem [shape: bf16[2,4,16,8], index: 9, kind: output, shape index: {1}]
  %s10 = inlined_call_operand.vmem [shape: bf16[2,4,16,8], index: 10, kind: output, shape index: {2}]
  %s11 = inlined_call_operand.vmem [shape: bf16[2,4,16,8], index: 11, kind: output, shape index: {3}]
  %12 = xla_tuple %s8, %s9, %s10, %s11
  %s13 = sld [smem:[#allocation0]]
  $region89: #{parallel_transformer_block.3} parent=0
    _
  %s15 = ssub.s32 1, %s13
  %s16 = scalar_select 0, %s15, %s13
  loop: start=0, step=1, limit=4
  $region2: #{parallel_transformer_block.3} parent=0 // loop_pre_header
    _
  $region3: #{parallel_transformer_block.3} parent=0 // loop_header
    %s18 = sphi 0, %s22
    %p19 = scmp.ge.s32.totalorder %s18, 4
    %s25 = sphi 0, %s37
    %s26 = sphi 0, %s33
    %s27 = sphi 0, %s25
    %s28 = sphi 0, %s26
    %s29 = sphi 0, %s27
    %s30 = sphi 0, %s28
    %s42 = sphi 0, %s44
    %s45 = sphi 0, %s42
    %s46 = sphi 0, %s45
    %s62 = sphi 0, %s46
    %s66 = sphi 0, %s66
    %s68 = sphi 0, %s66
    %s69 = sphi 0, %s68
    %s83 = sphi 0, %s69
    %s87 = sphi 0, %s87
    %s89 = sphi 0, %s87
    %s90 = sphi 0, %s89
    %s104 = sphi 0, %s90
    %s108 = sphi 0, %s108
    %s110 = sphi 0, %s108
    %s111 = sphi 0, %s110
    %s125 = sphi 0, %s111
    %s129 = sphi 0, %s129
    %s131 = sphi 0, %s129
    %s132 = sphi 0, %s131
    %s146 = sphi 0, %s132
    %s150 = sphi 0, %s150
    %s152 = sphi 0, %s150
    %s153 = sphi 0, %s152
    %s167 = sphi 0, %s153
    %s171 = sphi 0, %s171
    %s173 = sphi 0, %s171
    %s174 = sphi 0, %s173
    %s188 = sphi 0, %s174
    %s192 = sphi 0, %s192
    %s194 = sphi 0, %s192
    %s195 = sphi 0, %s194
    %s209 = sphi 0, %s195
    %s217 = sphi 0, %s219
    %s220 = sphi 0, %s217
    %s221 = sphi 0, %s220
    %s237 = sphi 0, %s221
    %s245 = sphi 0, %s247
    %s248 = sphi 0, %s245
    %s249 = sphi 0, %s248
    %s265 = sphi 0, %s249
    %s273 = sphi 0, %s275
    %s276 = sphi 0, %s273
    %s277 = sphi 0, %s276
    %s293 = sphi 0, %s277
    %s301 = sphi 0, %s303
    %s304 = sphi 0, %s301
    %s305 = sphi 0, %s304
    %s321 = sphi 0, %s305
  $region4: #{parallel_transformer_block.3} parent=0 // loop_header_branch
    %21 = sbr.rel (%p19) target = $region8
  $region5: #{parallel_transformer_block.3} parent=0 // loop_body
    %s23 = ssub.s32 %s18, 1
    %s24 = ssub.s32 %s18, 2
    %s31 = sadd.s32 1, %s26
    %p32 = scmp.ge.s32.totalorder %s31, 1
    %s33 = scalar_select %p32, 0, %s31
    %s34 = sadd.s32 1, %s25
    %s35 = scalar_select %p32, %s34, %s25
    %p36 = scmp.ge.s32.totalorder %s35, 2
    %s37 = scalar_select %p36, 0, %s35
    %s38 = ssub.s32 %s25, %s37
    %s39 = ssub.s32 %s26, %s33
    %s40 = sor.u32 %s38, %s39
    %p41 = scmp.eq.s32.totalorder %s40, 0
    %s43 = sadd.s32 %s42, 1
    %s44 = scalar_select %p41, %s42, %s43
    %p47 = pneg %p41
    %p48 = scmp.eq.s32.totalorder %s18, 1
    %p49 = por %p47, %p48
    %p50 = scmp.ne.s32.totalorder %s42, %s45
    %p51 = scmp.eq.s32.totalorder %s18, 0
    %p52 = por %p50, %p51
    %p53 = scmp.ne.s32.totalorder %s42, %s45
    %p54 = scmp.eq.s32.totalorder %s23, 1
    %p55 = por %p53, %p54
    %p56 = scmp.ne.s32.totalorder %s45, %s46
    %p57 = scmp.eq.s32.totalorder %s23, 0
    %p58 = por %p56, %p57
    %p59 = scmp.ne.s32.totalorder %s45, %s46
    %p60 = scmp.eq.s32.totalorder %s24, 1
    %p61 = por %p59, %p60
    %p63 = scmp.ne.s32.totalorder %s46, %s62
    %p64 = scmp.eq.s32.totalorder %s24, 0
    %p65 = por %p63, %p64
    %s67 = sadd.s32 %s66, 1
    %p70 = scmp.eq.s32.totalorder %s18, 1
    %p71 = scmp.ne.s32.totalorder %s66, %s68
    %p72 = scmp.eq.s32.totalorder %s18, 0
    %p73 = por %p71, %p72
    %p74 = scmp.ne.s32.totalorder %s66, %s68
    %p75 = scmp.eq.s32.totalorder %s23, 1
    %p76 = por %p74, %p75
    %p77 = scmp.ne.s32.totalorder %s68, %s69
    %p78 = scmp.eq.s32.totalorder %s23, 0
    %p79 = por %p77, %p78
    %p80 = scmp.ne.s32.totalorder %s68, %s69
    %p81 = scmp.eq.s32.totalorder %s24, 1
    %p82 = por %p80, %p81
    %p84 = scmp.ne.s32.totalorder %s69, %s83
    %p85 = scmp.eq.s32.totalorder %s24, 0
    %p86 = por %p84, %p85
    %s88 = sadd.s32 %s87, 1
    %p91 = scmp.eq.s32.totalorder %s18, 1
    %p92 = scmp.ne.s32.totalorder %s87, %s89
    %p93 = scmp.eq.s32.totalorder %s18, 0
    %p94 = por %p92, %p93
    %p95 = scmp.ne.s32.totalorder %s87, %s89
    %p96 = scmp.eq.s32.totalorder %s23, 1
    %p97 = por %p95, %p96
    %p98 = scmp.ne.s32.totalorder %s89, %s90
    %p99 = scmp.eq.s32.totalorder %s23, 0
    %p100 = por %p98, %p99
    %p101 = scmp.ne.s32.totalorder %s89, %s90
    %p102 = scmp.eq.s32.totalorder %s24, 1
    %p103 = por %p101, %p102
    %p105 = scmp.ne.s32.totalorder %s90, %s104
    %p106 = scmp.eq.s32.totalorder %s24, 0
    %p107 = por %p105, %p106
    %s109 = sadd.s32 %s108, 1
    %p112 = scmp.eq.s32.totalorder %s18, 1
    %p113 = scmp.ne.s32.totalorder %s108, %s110
    %p114 = scmp.eq.s32.totalorder %s18, 0
    %p115 = por %p113, %p114
    %p116 = scmp.ne.s32.totalorder %s108, %s110
    %p117 = scmp.eq.s32.totalorder %s23, 1
    %p118 = por %p116, %p117
    %p119 = scmp.ne.s32.totalorder %s110, %s111
    %p120 = scmp.eq.s32.totalorder %s23, 0
    %p121 = por %p119, %p120
    %p122 = scmp.ne.s32.totalorder %s110, %s111
    %p123 = scmp.eq.s32.totalorder %s24, 1
    %p124 = por %p122, %p123
    %p126 = scmp.ne.s32.totalorder %s111, %s125
    %p127 = scmp.eq.s32.totalorder %s24, 0
    %p128 = por %p126, %p127
    %s130 = sadd.s32 %s129, 1
    %p133 = scmp.eq.s32.totalorder %s18, 1
    %p134 = scmp.ne.s32.totalorder %s129, %s131
    %p135 = scmp.eq.s32.totalorder %s18, 0
    %p136 = por %p134, %p135
    %p137 = scmp.ne.s32.totalorder %s129, %s131
    %p138 = scmp.eq.s32.totalorder %s23, 1
    %p139 = por %p137, %p138
    %p140 = scmp.ne.s32.totalorder %s131, %s132
    %p141 = scmp.eq.s32.totalorder %s23, 0
    %p142 = por %p140, %p141
    %p143 = scmp.ne.s32.totalorder %s131, %s132
    %p144 = scmp.eq.s32.totalorder %s24, 1
    %p145 = por %p143, %p144
    %p147 = scmp.ne.s32.totalorder %s132, %s146
    %p148 = scmp.eq.s32.totalorder %s24, 0
    %p149 = por %p147, %p148
    %s151 = sadd.s32 %s150, 1
    %p154 = scmp.eq.s32.totalorder %s18, 1
    %p155 = scmp.ne.s32.totalorder %s150, %s152
    %p156 = scmp.eq.s32.totalorder %s18, 0
    %p157 = por %p155, %p156
    %p158 = scmp.ne.s32.totalorder %s150, %s152
    %p159 = scmp.eq.s32.totalorder %s23, 1
    %p160 = por %p158, %p159
    %p161 = scmp.ne.s32.totalorder %s152, %s153
    %p162 = scmp.eq.s32.totalorder %s23, 0
    %p163 = por %p161, %p162
    %p164 = scmp.ne.s32.totalorder %s152, %s153
    %p165 = scmp.eq.s32.totalorder %s24, 1
    %p166 = por %p164, %p165
    %p168 = scmp.ne.s32.totalorder %s153, %s167
    %p169 = scmp.eq.s32.totalorder %s24, 0
    %p170 = por %p168, %p169
    %s172 = sadd.s32 %s171, 1
    %p175 = scmp.eq.s32.totalorder %s18, 1
    %p176 = scmp.ne.s32.totalorder %s171, %s173
    %p177 = scmp.eq.s32.totalorder %s18, 0
    %p178 = por %p176, %p177
    %p179 = scmp.ne.s32.totalorder %s171, %s173
    %p180 = scmp.eq.s32.totalorder %s23, 1
    %p181 = por %p179, %p180
    %p182 = scmp.ne.s32.totalorder %s173, %s174
    %p183 = scmp.eq.s32.totalorder %s23, 0
    %p184 = por %p182, %p183
    %p185 = scmp.ne.s32.totalorder %s173, %s174
    %p186 = scmp.eq.s32.totalorder %s24, 1
    %p187 = por %p185, %p186
    %p189 = scmp.ne.s32.totalorder %s174, %s188
    %p190 = scmp.eq.s32.totalorder %s24, 0
    %p191 = por %p189, %p190
    %s193 = sadd.s32 %s192, 1
    %p196 = scmp.eq.s32.totalorder %s18, 1
    %p197 = scmp.ne.s32.totalorder %s192, %s194
    %p198 = scmp.eq.s32.totalorder %s18, 0
    %p199 = por %p197, %p198
    %p200 = scmp.ne.s32.totalorder %s192, %s194
    %p201 = scmp.eq.s32.totalorder %s23, 1
    %p202 = por %p200, %p201
    %p203 = scmp.ne.s32.totalorder %s194, %s195
    %p204 = scmp.eq.s32.totalorder %s23, 0
    %p205 = por %p203, %p204
    %p206 = scmp.ne.s32.totalorder %s194, %s195
    %p207 = scmp.eq.s32.totalorder %s24, 1
    %p208 = por %p206, %p207
    %p210 = scmp.ne.s32.totalorder %s195, %s209
    %p211 = scmp.eq.s32.totalorder %s24, 0
    %p212 = por %p210, %p211
    %s213 = ssub.s32 %s25, %s37
    %s214 = ssub.s32 %s26, %s33
    %s215 = sor.u32 %s213, %s214
    %p216 = scmp.eq.s32.totalorder %s215, 0
    %s218 = sadd.s32 %s217, 1
    %s219 = scalar_select %p216, %s217, %s218
    %p222 = pneg %p216
    %p223 = scmp.eq.s32.totalorder %s18, 1
    %p224 = por %p222, %p223
    %p225 = scmp.ne.s32.totalorder %s217, %s220
    %p226 = scmp.eq.s32.totalorder %s18, 0
    %p227 = por %p225, %p226
    %p228 = scmp.ne.s32.totalorder %s217, %s220
    %p229 = scmp.eq.s32.totalorder %s23, 1
    %p230 = por %p228, %p229
    %p231 = scmp.ne.s32.totalorder %s220, %s221
    %p232 = scmp.eq.s32.totalorder %s23, 0
    %p233 = por %p231, %p232
    %p234 = scmp.ne.s32.totalorder %s220, %s221
    %p235 = scmp.eq.s32.totalorder %s24, 1
    %p236 = por %p234, %p235
    %p238 = scmp.ne.s32.totalorder %s221, %s237
    %p239 = scmp.eq.s32.totalorder %s24, 0
    %p240 = por %p238, %p239
    %s241 = ssub.s32 %s25, %s37
    %s242 = ssub.s32 %s26, %s33
    %s243 = sor.u32 %s241, %s242
    %p244 = scmp.eq.s32.totalorder %s243, 0
    %s246 = sadd.s32 %s245, 1
    %s247 = scalar_select %p244, %s245, %s246
    %p250 = pneg %p244
    %p251 = scmp.eq.s32.totalorder %s18, 1
    %p252 = por %p250, %p251
    %p253 = scmp.ne.s32.totalorder %s245, %s248
    %p254 = scmp.eq.s32.totalorder %s18, 0
    %p255 = por %p253, %p254
    %p256 = scmp.ne.s32.totalorder %s245, %s248
    %p257 = scmp.eq.s32.totalorder %s23, 1
    %p258 = por %p256, %p257
    %p259 = scmp.ne.s32.totalorder %s248, %s249
    %p260 = scmp.eq.s32.totalorder %s23, 0
    %p261 = por %p259, %p260
    %p262 = scmp.ne.s32.totalorder %s248, %s249
    %p263 = scmp.eq.s32.totalorder %s24, 1
    %p264 = por %p262, %p263
    %p266 = scmp.ne.s32.totalorder %s249, %s265
    %p267 = scmp.eq.s32.totalorder %s24, 0
    %p268 = por %p266, %p267
    %s269 = ssub.s32 %s25, %s37
    %s270 = ssub.s32 %s26, %s33
    %s271 = sor.u32 %s269, %s270
    %p272 = scmp.eq.s32.totalorder %s271, 0
    %s274 = sadd.s32 %s273, 1
    %s275 = scalar_select %p272, %s273, %s274
    %p278 = pneg %p272
    %p279 = scmp.eq.s32.totalorder %s18, 1
    %p280 = por %p278, %p279
    %p281 = scmp.ne.s32.totalorder %s273, %s276
    %p282 = scmp.eq.s32.totalorder %s18, 0
    %p283 = por %p281, %p282
    %p284 = scmp.ne.s32.totalorder %s273, %s276
    %p285 = scmp.eq.s32.totalorder %s23, 1
    %p286 = por %p284, %p285
    %p287 = scmp.ne.s32.totalorder %s276, %s277
    %p288 = scmp.eq.s32.totalorder %s23, 0
    %p289 = por %p287, %p288
    %p290 = scmp.ne.s32.totalorder %s276, %s277
    %p291 = scmp.eq.s32.totalorder %s24, 1
    %p292 = por %p290, %p291
    %p294 = scmp.ne.s32.totalorder %s277, %s293
    %p295 = scmp.eq.s32.totalorder %s24, 0
    %p296 = por %p294, %p295
    %s297 = ssub.s32 %s25, %s37
    %s298 = ssub.s32 %s26, %s33
    %s299 = sor.u32 %s297, %s298
    %p300 = scmp.eq.s32.totalorder %s299, 0
    %s302 = sadd.s32 %s301, 1
    %s303 = scalar_select %p300, %s301, %s302
    %p306 = pneg %p300
    %p307 = scmp.eq.s32.totalorder %s18, 1
    %p308 = por %p306, %p307
    %p309 = scmp.ne.s32.totalorder %s301, %s304
    %p310 = scmp.eq.s32.totalorder %s18, 0
    %p311 = por %p309, %p310
    %p312 = scmp.ne.s32.totalorder %s301, %s304
    %p313 = scmp.eq.s32.totalorder %s23, 1
    %p314 = por %p312, %p313
    %p315 = scmp.ne.s32.totalorder %s304, %s305
    %p316 = scmp.eq.s32.totalorder %s23, 0
    %p317 = por %p315, %p316
    %p318 = scmp.ne.s32.totalorder %s304, %s305
    %p319 = scmp.eq.s32.totalorder %s24, 1
    %p320 = por %p318, %p319
    %p322 = scmp.ne.s32.totalorder %s305, %s321
    %p323 = scmp.eq.s32.totalorder %s24, 0
    %p324 = por %p322, %p323
    %p325 = scmp.le.s32.totalorder 1, %s18
    %p326 = scmp.lt.s32.totalorder %s18, 3
    %p327 = pnand %p325, %p326
    %p328 = pneg %p327
    // Predicated region
    $region9: #{parallel_transformer_block.3} parent=5 // pred_check
      _
    $region10: #{parallel_transformer_block.3} parent=5 // pred_check_branch
      %330 = sbr.rel (%p327) target = $region12
    $region11: #{parallel_transformer_block.3} parent=5 // pred_region
      %s331 = ssub.s32 %s18, 1
      // Predicated region
      $region13: #{parallel_transformer_block.3} parent=11 // pred_check
        %p332 = pneg %p79
      $region14: #{parallel_transformer_block.3} parent=11 // pred_check_branch
        %334 = sbr.rel (%p332) target = $region16
      $region15: #{parallel_transformer_block.3} parent=11 // pred_region
        _
      $region16: #{parallel_transformer_block.3} parent=11 // pred_fallthru
        _
      // Predicated region
      $region17: #{parallel_transformer_block.3} parent=11 // pred_check
        %p335 = pneg %p100
      $region18: #{parallel_transformer_block.3} parent=11 // pred_check_branch
        %337 = sbr.rel (%p335) target = $region20
      $region19: #{parallel_transformer_block.3} parent=11 // pred_region
        _
      $region20: #{parallel_transformer_block.3} parent=11 // pred_fallthru
        _
      // Predicated region
      $region21: #{parallel_transformer_block.3} parent=11 // pred_check
        %p338 = pneg %p121
      $region22: #{parallel_transformer_block.3} parent=11 // pred_check_branch
        %340 = sbr.rel (%p338) target = $region24
      $region23: #{parallel_transformer_block.3} parent=11 // pred_region
        _
      $region24: #{parallel_transformer_block.3} parent=11 // pred_fallthru
        _
      // Predicated region
      $region25: #{parallel_transformer_block.3} parent=11 // pred_check
        %p341 = pneg %p142
      $region26: #{parallel_transformer_block.3} parent=11 // pred_check_branch
        %343 = sbr.rel (%p341) target = $region28
      $region27: #{parallel_transformer_block.3} parent=11 // pred_region
        _
      $region28: #{parallel_transformer_block.3} parent=11 // pred_fallthru
        _
      // Predicated region
      $region29: #{parallel_transformer_block.3} parent=11 // pred_check
        %p344 = pneg %p163
      $region30: #{parallel_transformer_block.3} parent=11 // pred_check_branch
        %346 = sbr.rel (%p344) target = $region32
      $region31: #{parallel_transformer_block.3} parent=11 // pred_region
        _
      $region32: #{parallel_transformer_block.3} parent=11 // pred_fallthru
        _
      // Predicated region
      $region33: #{parallel_transformer_block.3} parent=11 // pred_check
        %p347 = pneg %p184
      $region34: #{parallel_transformer_block.3} parent=11 // pred_check_branch
        %349 = sbr.rel (%p347) target = $region36
      $region35: #{parallel_transformer_block.3} parent=11 // pred_region
        _
      $region36: #{parallel_transformer_block.3} parent=11 // pred_fallthru
        _
      // Predicated region
      $region37: #{parallel_transformer_block.3} parent=11 // pred_check
        %p350 = pneg %p205
      $region38: #{parallel_transformer_block.3} parent=11 // pred_check_branch
        %352 = sbr.rel (%p350) target = $region40
      $region39: #{parallel_transformer_block.3} parent=11 // pred_region
        _
      $region40: #{parallel_transformer_block.3} parent=11 // pred_fallthru
        _
    $region12: #{parallel_transformer_block.3} parent=5 // pred_fallthru
      _
    %p353 = scmp.lt.s32.totalorder %s18, 2
    // Predicated region
    $region41: #{parallel_transformer_block.3} parent=5 // pred_check
      %p354 = pneg %p353
    $region42: #{parallel_transformer_block.3} parent=5 // pred_check_branch
      %356 = sbr.rel (%p354) target = $region44
    $region43: #{parallel_transformer_block.3} parent=5 // pred_region
      // Predicated region
      $region45: #{parallel_transformer_block.3} parent=43 // pred_check
        %p357 = pneg %p52
      $region46: #{parallel_transformer_block.3} parent=43 // pred_check_branch
        %359 = sbr.rel (%p357) target = $region48
      $region47: #{parallel_transformer_block.3} parent=43 // pred_region
        %s360 = smul.u32 2, %s26
        %p361 = scmp.lt.s32.totalorder %s25, 1
        %s362 = scalar_select %p361, %s25, 1
        %p363 = scmp.lt.s32.totalorder %s360, 1
        %s364 = scalar_select %p363, %s360, 1
        %s365 = smul.addr %s362, 2
        %s366 = sadd.s32 %s364, %s365
        %s367 = smul.addr %s366, 8
        %s368 = scalar_lea.vmem %s0, %s367
        %s369 = smul.u32 2, %s26
      $region48: #{parallel_transformer_block.3} parent=43 // pred_fallthru
        _
    $region44: #{parallel_transformer_block.3} parent=5 // pred_fallthru
      _
    %p370 = scmp.le.s32.totalorder 1, %s18
    %p371 = scmp.lt.s32.totalorder %s18, 3
    %p372 = pnand %p370, %p371
    %p373 = pneg %p372
    // Predicated region
    $region49: #{parallel_transformer_block.3} parent=5 // pred_check
      _
    $region50: #{parallel_transformer_block.3} parent=5 // pred_check_branch
      %375 = sbr.rel (%p372) target = $region52
    $region51: #{parallel_transformer_block.3} parent=5 // pred_region
      %s376 = ssub.s32 %s18, 1
      %s377 = smul.u32 2, %s28
      %p378 = scmp.lt.s32.totalorder %s27, 1
      %s379 = scalar_select %p378, %s27, 1
      %p380 = scmp.lt.s32.totalorder %s377, 1
      %s381 = scalar_select %p380, %s377, 1
      %s382 = smul.addr %s379, 2
      %s383 = sadd.s32 %s381, %s382
      %s384 = smul.addr %s383, 8
      %s385 = scalar_lea.vmem %s0, %s384
      %p386 = pneg %p58
      %p387 = pneg %p55
      %p388 = pneg %p79
      %p389 = pneg %p76
      %p390 = pneg %p100
      %p391 = pneg %p97
      %p392 = pneg %p121
      %p393 = pneg %p118
      %p394 = pneg %p142
      %p395 = pneg %p139
      %p396 = pneg %p163
      %p397 = pneg %p160
      %p398 = pneg %p184
      %p399 = pneg %p181
      %p400 = pneg %p205
      %p401 = pneg %p202
      %p402 = pneg %p233
      %p403 = pneg %p230
      %s404 = smul.u32 2, %s28
      %p405 = scmp.lt.s32.totalorder %s27, 1
      %s406 = scalar_select %p405, %s27, 1
      %p407 = scmp.lt.s32.totalorder %s404, 1
      %s408 = scalar_select %p407, %s404, 1
      %s409 = smul.addr %s406, 2
      %s410 = sadd.s32 %s408, %s409
      %s411 = smul.addr %s410, 4
      %s412 = scalar_lea.vmem %s8, %s411
      %p413 = pneg %p261
      %p414 = pneg %p258
      %s415 = smul.u32 2, %s28
      %p416 = scmp.lt.s32.totalorder %s27, 1
      %s417 = scalar_select %p416, %s27, 1
      %p418 = scmp.lt.s32.totalorder %s415, 1
      %s419 = scalar_select %p418, %s415, 1
      %s420 = smul.addr %s417, 8
      %s421 = sadd.s32 %s419, %s420
      %s422 = smul.addr %s421, 4
      %s423 = scalar_lea.vmem %s9, %s422
      %p424 = pneg %p289
      %p425 = pneg %p286
      %s426 = smul.u32 2, %s28
      %p427 = scmp.lt.s32.totalorder %s27, 1
      %s428 = scalar_select %p427, %s27, 1
      %p429 = scmp.lt.s32.totalorder %s426, 1
      %s430 = scalar_select %p429, %s426, 1
      %s431 = smul.addr %s428, 8
      %s432 = sadd.s32 %s430, %s431
      %s433 = smul.addr %s432, 4
      %s434 = scalar_lea.vmem %s10, %s433
      %p435 = pneg %p317
      %p436 = pneg %p314
      %s437 = smul.u32 2, %s28
      %p438 = scmp.lt.s32.totalorder %s27, 1
      %s439 = scalar_select %p438, %s27, 1
      %p440 = scmp.lt.s32.totalorder %s437, 1
      %s441 = scalar_select %p440, %s437, 1
      %s442 = smul.addr %s439, 8
      %s443 = sadd.s32 %s441, %s442
      %s444 = smul.addr %s443, 4
      %s445 = scalar_lea.vmem %s11, %s444
      %s446 = smul.u32 2, %s28
      %p447 = scmp.lt.s32.totalorder %s27, 1
      %s448 = scalar_select %p447, %s27, 1
      %p449 = scmp.lt.s32.totalorder %s446, 1
      %s450 = scalar_select %p449, %s446, 1
      %s451 = smul.addr %s448, 2
      %s452 = sadd.s32 %s450, %s451
      %s453 = smul.addr %s452, 8
      %s454 = scalar_lea.vmem %s0, %s453
      %s455 = smul.u32 2, %s28
      %s456 = smul.u32 2, %s28
      %p457 = scmp.lt.s32.totalorder %s27, 1
      %s458 = scalar_select %p457, %s27, 1
      %p459 = scmp.lt.s32.totalorder %s456, 1
      %s460 = scalar_select %p459, %s456, 1
      %s461 = smul.addr %s458, 2
      %s462 = sadd.s32 %s460, %s461
      %s463 = smul.addr %s462, 4
      %s464 = scalar_lea.vmem %s8, %s463
      %s465 = smul.u32 2, %s28
      %s466 = smul.u32 2, %s28
      %p467 = scmp.lt.s32.totalorder %s27, 1
      %s468 = scalar_select %p467, %s27, 1
      %p469 = scmp.lt.s32.totalorder %s466, 1
      %s470 = scalar_select %p469, %s466, 1
      %s471 = smul.addr %s468, 8
      %s472 = sadd.s32 %s470, %s471
      %s473 = smul.addr %s472, 4
      %s474 = scalar_lea.vmem %s9, %s473
      %s475 = smul.u32 2, %s28
      %s476 = smul.u32 2, %s28
      %p477 = scmp.lt.s32.totalorder %s27, 1
      %s478 = scalar_select %p477, %s27, 1
      %p479 = scmp.lt.s32.totalorder %s476, 1
      %s480 = scalar_select %p479, %s476, 1
      %s481 = smul.addr %s478, 8
      %s482 = sadd.s32 %s480, %s481
      %s483 = smul.addr %s482, 4
      %s484 = scalar_lea.vmem %s10, %s483
      %s485 = smul.u32 2, %s28
      %s486 = smul.u32 2, %s28
      %p487 = scmp.lt.s32.totalorder %s27, 1
      %s488 = scalar_select %p487, %s27, 1
      %p489 = scmp.lt.s32.totalorder %s486, 1
      %s490 = scalar_select %p489, %s486, 1
      %s491 = smul.addr %s488, 8
      %s492 = sadd.s32 %s490, %s491
      %s493 = smul.addr %s492, 4
      %s494 = scalar_lea.vmem %s11, %s493
      %s495 = smul.u32 2, %s28
      %v497 = vld [vmem:[%s454] sm:$0xff]
      %v498 = vld [vmem:[%s454 + $0x8] sm:$0xff]
      %v499 = vld [vmem:[%s1] sm:$0x1]
      %v500 = vmul.f32 %v497, %v497
      %v501 = vmul.f32 %v498, %v498
      %vm502 = vcmask 261120
      %v503 = vsel %vm502, %v500, 0.0
      %504 = vadd.xlane.f32.xlu0 %v503
      %v505 = vpop.xlane.xlu0 %504
      %v506 = vsel %vm502, %v501, 0.0
      %507 = vadd.xlane.f32.xlu0 %v506
      %v508 = vpop.xlane.xlu0 %507
      %v509 = vrcp.pop 32.0
      %v510 = vmul.f32 %v505, %v509
      %v511 = vmul.f32 %v508, %v509
      %v512 = vadd.f32 %v510, 1e-06
      %v513 = vadd.f32 %v511, 1e-06
      %v514 = vrsqrt.pop %v512
      %v515 = vrsqrt.pop %v513
      %v516 = vmul.f32 %v497, %v514
      %v517 = vmul.f32 %v498, %v515
      %v519 = vlaneseq
      %v520 = vshrl.u32 %v519, 7
      %v521 = vsub.s32 0, %v520
      %v522 = vrot.slane %v499, %v521
      %v524 = vmul.f32 %v516, %v522
      %v525 = vmul.f32 %v517, %v522
      %v526 = vpack.c.bf16 %v525, %v524
      %v528 = vunpack.c.l.b16 %v526
      %v529 = vunpack.c.h.b16 %v526
      %v530 = vpack.c.b16 %v528, %v528
      %v531 = vpack.c.b16 %v529, %v529
      %vm534 = vcmask 257024
      %535 = vst.msk [vmem:[%s464] sm:$0xf] %vm534, %v530
      %536 = vst.msk [vmem:[%s464 + $0x4] sm:$0xf] %vm534, %v531
      %v537 = vld [vmem:[%s2] sm:$0xf]
      %v538 = vld [vmem:[%s2 + $0x4] sm:$0xf]
      %v539 = vld [vmem:[%s2 + $0x8] sm:$0xf]
      %v540 = vld [vmem:[%s2 + $0xc] sm:$0xf]
      %v541 = vld [vmem:[%s3] sm:$0x1]
      %v543 = vlaneseq
      %v544 = vshrl.u32 %v543, 7
      %v545 = vsub.s32 0, %v544
      %v546 = vrot.slane %v541, %v545
      %v552 = vunpack.c.l.b16 %v537
      %v553 = vunpack.c.l.b16 %v538
      %v554 = vunpack.c.l.b16 %v539
      %v555 = vunpack.c.l.b16 %v540
      %v556 = vpack.c.b16 %v553, %v552
      %v557 = vpack.c.b16 %v555, %v554
      %v561 = vsel %vm502, %v526, 0
      %563 = vmatprep.subr.bf16.mxu0 0
      %564 = vmatpush1.bf16.msra.mxu0 0
      %565 = vmatprep.subr.bf16.mxu0 0
      %566 = vmatpush1.bf16.msra.mxu0 0
      %567 = vmatprep.subr.bf16.mxu0 0
      %568 = vmatpush1.bf16.msra.mxu0 0
      %569 = vmatprep.subr.bf16.mxu0 0
      %570 = vmatpush1.bf16.msra.mxu0 0
      %571 = vmatprep.subr.bf16.mxu0 0
      %572 = vmatpush1.bf16.msra.mxu0 0
      %573 = vmatprep.subr.bf16.mxu0 0
      %574 = vmatpush1.bf16.msra.mxu0 0
      %575 = vmatprep.subr.bf16.mxu0 0
      %576 = vmatpush1.bf16.msra.mxu0 %v557
      %577 = vmatprep.subr.bf16.mxu0 0
      %578 = vmatpush1.bf16.msra.mxu0 %v556
      %579 = vmatprep.subr.bf16.mxu0 0
      %580 = vmatpush2.bf16.msra.mxu0 0
      %581 = vmatprep.subr.bf16.mxu0 0
      %582 = vmatpush2.bf16.msra.mxu0 0
      %583 = vmatprep.subr.bf16.mxu0 0
      %584 = vmatpush2.bf16.msra.mxu0 0
      %585 = vmatprep.subr.bf16.mxu0 0
      %586 = vmatpush2.bf16.msra.mxu0 0
      %587 = vmatprep.subr.bf16.mxu0 0
      %588 = vmatpush2.bf16.msra.mxu0 0
      %589 = vmatprep.subr.bf16.mxu0 0
      %590 = vmatpush2.bf16.msra.mxu0 0
      %591 = vmatprep.subr.bf16.mxu0 0
      %592 = vmatpush2.bf16.msra.mxu0 0
      %593 = vmatprep.subr.bf16.mxu0 0
      %594 = vmatpush2.bf16.msra.mxu0 0
      %595 = vmatprep.mubr.bf16.mxu0 0
      %596 = vmatmul.mubr.bf16.gmra.mxu0 %v561
      %v597 = vpop.f32.mrf.mxu0
      %v598 = vadd.f32 %v546, %v597
      %v599 = vpop.f32.mrf.mxu0
      %v600 = vpop.f32.mrf.mxu0
      %v601 = vadd.f32 %v546, %v600
      %v602 = vpop.f32.mrf.mxu0
      %603 = vdwg.mxu0
      %v604 = vld [vmem:[%s4] sm:$0xf]
      %v605 = vld [vmem:[%s4 + $0x4] sm:$0xf]
      %v606 = vld [vmem:[%s4 + $0x8] sm:$0xf]
      %v607 = vld [vmem:[%s4 + $0xc] sm:$0xf]
      %v608 = vld [vmem:[%s5] sm:$0x1]
      %v610 = vlaneseq
      %v611 = vshrl.u32 %v610, 7
      %v612 = vsub.s32 0, %v611
      %v613 = vrot.slane %v608, %v612
      %v619 = vunpack.c.l.b16 %v604
      %v620 = vunpack.c.l.b16 %v605
      %v621 = vunpack.c.l.b16 %v606
      %v622 = vunpack.c.l.b16 %v607
      %v623 = vpack.c.b16 %v620, %v619
      %v624 = vpack.c.b16 %v622, %v621
      %627 = vmatprep.subr.bf16.mxu0 0
      %628 = vmatpush1.bf16.msra.mxu0 0
      %629 = vmatprep.subr.bf16.mxu0 0
      %630 = vmatpush1.bf16.msra.mxu0 0
      %631 = vmatprep.subr.bf16.mxu0 0
      %632 = vmatpush1.bf16.msra.mxu0 0
      %633 = vmatprep.subr.bf16.mxu0 0
      %634 = vmatpush1.bf16.msra.mxu0 0
      %635 = vmatprep.subr.bf16.mxu0 0
      %636 = vmatpush1.bf16.msra.mxu0 0
      %637 = vmatprep.subr.bf16.mxu0 0
      %638 = vmatpush1.bf16.msra.mxu0 0
      %639 = vmatprep.subr.bf16.mxu0 0
      %640 = vmatpush1.bf16.msra.mxu0 %v624
      %641 = vmatprep.subr.bf16.mxu0 0
      %642 = vmatpush1.bf16.msra.mxu0 %v623
      %643 = vmatprep.subr.bf16.mxu0 0
      %644 = vmatpush2.bf16.msra.mxu0 0
      %645 = vmatprep.subr.bf16.mxu0 0
      %646 = vmatpush2.bf16.msra.mxu0 0
      %647 = vmatprep.subr.bf16.mxu0 0
      %648 = vmatpush2.bf16.msra.mxu0 0
      %649 = vmatprep.subr.bf16.mxu0 0
      %650 = vmatpush2.bf16.msra.mxu0 0
      %651 = vmatprep.subr.bf16.mxu0 0
      %652 = vmatpush2.bf16.msra.mxu0 0
      %653 = vmatprep.subr.bf16.mxu0 0
      %654 = vmatpush2.bf16.msra.mxu0 0
      %655 = vmatprep.subr.bf16.mxu0 0
      %656 = vmatpush2.bf16.msra.mxu0 0
      %657 = vmatprep.subr.bf16.mxu0 0
      %658 = vmatpush2.bf16.msra.mxu0 0
      %659 = vmatprep.mubr.bf16.mxu0 0
      %660 = vmatmul.mubr.bf16.gmra.mxu0 %v561
      %v661 = vpop.f32.mrf.mxu0
      %v662 = vadd.f32 %v613, %v661
      %v663 = vpop.f32.mrf.mxu0
      %v664 = vpop.f32.mrf.mxu0
      %v665 = vadd.f32 %v613, %v664
      %v666 = vpop.f32.mrf.mxu0
      %667 = vdwg.mxu0
      %v668 = vld [vmem:[%s6] sm:$0xf]
      %v669 = vld [vmem:[%s6 + $0x4] sm:$0xf]
      %v670 = vld [vmem:[%s6 + $0x8] sm:$0xf]
      %v671 = vld [vmem:[%s6 + $0xc] sm:$0xf]
      %v672 = vld [vmem:[%s7] sm:$0x1]
      %v674 = vlaneseq
      %v675 = vshrl.u32 %v674, 7
      %v676 = vsub.s32 0, %v675
      %v677 = vrot.slane %v672, %v676
      %v683 = vunpack.c.l.b16 %v668
      %v684 = vunpack.c.l.b16 %v669
      %v685 = vunpack.c.l.b16 %v670
      %v686 = vunpack.c.l.b16 %v671
      %v687 = vpack.c.b16 %v684, %v683
      %v688 = vpack.c.b16 %v686, %v685
      %691 = vmatprep.subr.bf16.mxu0 0
      %692 = vmatpush1.bf16.msra.mxu0 0
      %693 = vmatprep.subr.bf16.mxu0 0
      %694 = vmatpush1.bf16.msra.mxu0 0
      %695 = vmatprep.subr.bf16.mxu0 0
      %696 = vmatpush1.bf16.msra.mxu0 0
      %697 = vmatprep.subr.bf16.mxu0 0
      %698 = vmatpush1.bf16.msra.mxu0 0
      %699 = vmatprep.subr.bf16.mxu0 0
      %700 = vmatpush1.bf16.msra.mxu0 0
      %701 = vmatprep.subr.bf16.mxu0 0
      %702 = vmatpush1.bf16.msra.mxu0 0
      %703 = vmatprep.subr.bf16.mxu0 0
      %704 = vmatpush1.bf16.msra.mxu0 %v688
      %705 = vmatprep.subr.bf16.mxu0 0
      %706 = vmatpush1.bf16.msra.mxu0 %v687
      %707 = vmatprep.subr.bf16.mxu0 0
      %708 = vmatpush2.bf16.msra.mxu0 0
      %709 = vmatprep.subr.bf16.mxu0 0
      %710 = vmatpush2.bf16.msra.mxu0 0
      %711 = vmatprep.subr.bf16.mxu0 0
      %712 = vmatpush2.bf16.msra.mxu0 0
      %713 = vmatprep.subr.bf16.mxu0 0
      %714 = vmatpush2.bf16.msra.mxu0 0
      %715 = vmatprep.subr.bf16.mxu0 0
      %716 = vmatpush2.bf16.msra.mxu0 0
      %717 = vmatprep.subr.bf16.mxu0 0
      %718 = vmatpush2.bf16.msra.mxu0 0
      %719 = vmatprep.subr.bf16.mxu0 0
      %720 = vmatpush2.bf16.msra.mxu0 0
      %721 = vmatprep.subr.bf16.mxu0 0
      %722 = vmatpush2.bf16.msra.mxu0 0
      %723 = vmatprep.mubr.bf16.mxu0 0
      %724 = vmatmul.mubr.bf16.gmra.mxu0 %v561
      %v725 = vpop.f32.mrf.mxu0
      %v726 = vadd.f32 %v677, %v725
      %v727 = vpop.f32.mrf.mxu0
      %v728 = vpop.f32.mrf.mxu0
      %v729 = vadd.f32 %v677, %v728
      %v730 = vpop.f32.mrf.mxu0
      %731 = vdwg.mxu0
      %v732 = vpack.c.bf16 %v601, %v598
      %v734 = vunpack.c.l.b16 %v732
      %v735 = vunpack.c.h.b16 %v732
      %v736 = vpack.c.b16 %v734, %v734
      %v737 = vpack.c.b16 %v735, %v735
      %vm740 = vcmask 60416
      %741 = vst.msk [vmem:[%s474] sm:$0xf] %vm740, %v736
      %742 = vst.msk [vmem:[%s474 + $0x4] sm:$0xf] %vm740, %v737
      %v743 = vpack.c.bf16 %v665, %v662
      %v745 = vunpack.c.l.b16 %v743
      %v746 = vunpack.c.h.b16 %v743
      %v747 = vpack.c.b16 %v745, %v745
      %v748 = vpack.c.b16 %v746, %v746
      %751 = vst.msk [vmem:[%s484] sm:$0xf] %vm740, %v747
      %752 = vst.msk [vmem:[%s484 + $0x4] sm:$0xf] %vm740, %v748
      %v753 = vpack.c.bf16 %v729, %v726
      %v755 = vunpack.c.l.b16 %v753
      %v756 = vunpack.c.h.b16 %v753
      %v757 = vpack.c.b16 %v755, %v755
      %v758 = vpack.c.b16 %v756, %v756
      %761 = vst.msk [vmem:[%s494] sm:$0xf] %vm740, %v757
      %762 = vst.msk [vmem:[%s494 + $0x4] sm:$0xf] %vm740, %v758
      %763 = vrot.lane.b32.xlu0 %v736, 120
      %v764 = vpop.permute.xlu0 %763
      %765 = vrot.lane.b32.xlu0 %v737, 120
      %v766 = vpop.permute.xlu0 %765
      %s769 = scalar_lea.vmem %s474, 8
      %770 = vst.msk [vmem:[%s769] sm:$0xf] %vm740, %v764
      %771 = vst.msk [vmem:[%s769 + $0x4] sm:$0xf] %vm740, %v766
      %772 = vrot.lane.b32.xlu0 %v747, 120
      %v773 = vpop.permute.xlu0 %772
      %774 = vrot.lane.b32.xlu0 %v748, 120
      %v775 = vpop.permute.xlu0 %774
      %s778 = scalar_lea.vmem %s484, 8
      %779 = vst.msk [vmem:[%s778] sm:$0xf] %vm740, %v773
      %780 = vst.msk [vmem:[%s778 + $0x4] sm:$0xf] %vm740, %v775
      %781 = vrot.lane.b32.xlu0 %v757, 120
      %v782 = vpop.permute.xlu0 %781
      %783 = vrot.lane.b32.xlu0 %v758, 120
      %v784 = vpop.permute.xlu0 %783
      %s787 = scalar_lea.vmem %s494, 8
      %788 = vst.msk [vmem:[%s787] sm:$0xf] %vm740, %v782
      %789 = vst.msk [vmem:[%s787 + $0x4] sm:$0xf] %vm740, %v784
      %790 = vrot.lane.b32.xlu0 %v736, 112
      %v791 = vpop.permute.xlu0 %790
      %792 = vrot.lane.b32.xlu0 %v737, 112
      %v793 = vpop.permute.xlu0 %792
      %s796 = scalar_lea.vmem %s474, 16
      %797 = vst.msk [vmem:[%s796] sm:$0xf] %vm740, %v791
      %798 = vst.msk [vmem:[%s796 + $0x4] sm:$0xf] %vm740, %v793
      %799 = vrot.lane.b32.xlu0 %v747, 112
      %v800 = vpop.permute.xlu0 %799
      %801 = vrot.lane.b32.xlu0 %v748, 112
      %v802 = vpop.permute.xlu0 %801
      %s805 = scalar_lea.vmem %s484, 16
      %806 = vst.msk [vmem:[%s805] sm:$0xf] %vm740, %v800
      %807 = vst.msk [vmem:[%s805 + $0x4] sm:$0xf] %vm740, %v802
      %808 = vrot.lane.b32.xlu0 %v757, 112
      %v809 = vpop.permute.xlu0 %808
      %810 = vrot.lane.b32.xlu0 %v758, 112
      %v811 = vpop.permute.xlu0 %810
      %s814 = scalar_lea.vmem %s494, 16
      %815 = vst.msk [vmem:[%s814] sm:$0xf] %vm740, %v809
      %816 = vst.msk [vmem:[%s814 + $0x4] sm:$0xf] %vm740, %v811
      %817 = vrot.lane.b32.xlu0 %v736, 104
      %v818 = vpop.permute.xlu0 %817
      %819 = vrot.lane.b32.xlu0 %v737, 104
      %v820 = vpop.permute.xlu0 %819
      %s823 = scalar_lea.vmem %s474, 24
      %824 = vst.msk [vmem:[%s823] sm:$0xf] %vm740, %v818
      %825 = vst.msk [vmem:[%s823 + $0x4] sm:$0xf] %vm740, %v820
      %826 = vrot.lane.b32.xlu0 %v747, 104
      %v827 = vpop.permute.xlu0 %826
      %828 = vrot.lane.b32.xlu0 %v748, 104
      %v829 = vpop.permute.xlu0 %828
      %s832 = scalar_lea.vmem %s484, 24
      %833 = vst.msk [vmem:[%s832] sm:$0xf] %vm740, %v827
      %834 = vst.msk [vmem:[%s832 + $0x4] sm:$0xf] %vm740, %v829
      %835 = vrot.lane.b32.xlu0 %v757, 104
      %v836 = vpop.permute.xlu0 %835
      %837 = vrot.lane.b32.xlu0 %v758, 104
      %v838 = vpop.permute.xlu0 %837
      %s841 = scalar_lea.vmem %s494, 24
      %842 = vst.msk [vmem:[%s841] sm:$0xf] %vm740, %v836
      %843 = vst.msk [vmem:[%s841 + $0x4] sm:$0xf] %vm740, %v838
      %s844 = smul.u32 2, %s28
      %p845 = scmp.lt.s32.totalorder %s27, 1
      %s846 = scalar_select %p845, %s27, 1
      %p847 = scmp.lt.s32.totalorder %s844, 1
      %s848 = scalar_select %p847, %s844, 1
      %s849 = smul.addr %s846, 2
      %s850 = sadd.s32 %s848, %s849
      %s851 = smul.addr %s850, 4
      %s852 = scalar_lea.vmem %s8, %s851
      %s853 = smul.u32 2, %s28
      %p854 = scmp.lt.s32.totalorder %s27, 1
      %s855 = scalar_select %p854, %s27, 1
      %p856 = scmp.lt.s32.totalorder %s853, 1
      %s857 = scalar_select %p856, %s853, 1
      %s858 = smul.addr %s855, 8
      %s859 = sadd.s32 %s857, %s858
      %s860 = smul.addr %s859, 4
      %s861 = scalar_lea.vmem %s9, %s860
      %s862 = smul.u32 2, %s28
      %p863 = scmp.lt.s32.totalorder %s27, 1
      %s864 = scalar_select %p863, %s27, 1
      %p865 = scmp.lt.s32.totalorder %s862, 1
      %s866 = scalar_select %p865, %s862, 1
      %s867 = smul.addr %s864, 8
      %s868 = sadd.s32 %s866, %s867
      %s869 = smul.addr %s868, 4
      %s870 = scalar_lea.vmem %s10, %s869
      %s871 = smul.u32 2, %s28
      %p872 = scmp.lt.s32.totalorder %s27, 1
      %s873 = scalar_select %p872, %s27, 1
      %p874 = scmp.lt.s32.totalorder %s871, 1
      %s875 = scalar_select %p874, %s871, 1
      %s876 = smul.addr %s873, 8
      %s877 = sadd.s32 %s875, %s876
      %s878 = smul.addr %s877, 4
      %s879 = scalar_lea.vmem %s11, %s878
      // Predicated region
      $region53: #{parallel_transformer_block.3} parent=51 // pred_check
        %p880 = pneg %p230
      $region54: #{parallel_transformer_block.3} parent=51 // pred_check_branch
        %882 = sbr.rel (%p880) target = $region56
      $region55: #{parallel_transformer_block.3} parent=51 // pred_region
        %s883 = smul.u32 2, %s28
      $region56: #{parallel_transformer_block.3} parent=51 // pred_fallthru
        _
      // Predicated region
      $region57: #{parallel_transformer_block.3} parent=51 // pred_check
        %p884 = pneg %p258
      $region58: #{parallel_transformer_block.3} parent=51 // pred_check_branch
        %886 = sbr.rel (%p884) target = $region60
      $region59: #{parallel_transformer_block.3} parent=51 // pred_region
        %s887 = smul.u32 2, %s28
      $region60: #{parallel_transformer_block.3} parent=51 // pred_fallthru
        _
      // Predicated region
      $region61: #{parallel_transformer_block.3} parent=51 // pred_check
        %p888 = pneg %p286
      $region62: #{parallel_transformer_block.3} parent=51 // pred_check_branch
        %890 = sbr.rel (%p888) target = $region64
      $region63: #{parallel_transformer_block.3} parent=51 // pred_region
        %s891 = smul.u32 2, %s28
      $region64: #{parallel_transformer_block.3} parent=51 // pred_fallthru
        _
      // Predicated region
      $region65: #{parallel_transformer_block.3} parent=51 // pred_check
        %p892 = pneg %p314
      $region66: #{parallel_transformer_block.3} parent=51 // pred_check_branch
        %894 = sbr.rel (%p892) target = $region68
      $region67: #{parallel_transformer_block.3} parent=51 // pred_region
        %s895 = smul.u32 2, %s28
      $region68: #{parallel_transformer_block.3} parent=51 // pred_fallthru
        _
    $region52: #{parallel_transformer_block.3} parent=5 // pred_fallthru
      _
    %p896 = scmp.le.s32.totalorder 2, %s18
    // Predicated region
    $region69: #{parallel_transformer_block.3} parent=5 // pred_check
      %p897 = pneg %p896
    $region70: #{parallel_transformer_block.3} parent=5 // pred_check_branch
      %899 = sbr.rel (%p897) target = $region72
    $region71: #{parallel_transformer_block.3} parent=5 // pred_region
      %s900 = ssub.s32 %s18, 2
      // Predicated region
      $region73: #{parallel_transformer_block.3} parent=71 // pred_check
        %p901 = pneg %p236
      $region74: #{parallel_transformer_block.3} parent=71 // pred_check_branch
        %903 = sbr.rel (%p901) target = $region76
      $region75: #{parallel_transformer_block.3} parent=71 // pred_region
        %s904 = smul.u32 2, %s30
        %p905 = scmp.lt.s32.totalorder %s29, 1
        %s906 = scalar_select %p905, %s29, 1
        %p907 = scmp.lt.s32.totalorder %s904, 1
        %s908 = scalar_select %p907, %s904, 1
        %s909 = smul.addr %s906, 2
        %s910 = sadd.s32 %s908, %s909
        %s911 = smul.addr %s910, 4
        %s912 = scalar_lea.vmem %s8, %s911
      $region76: #{parallel_transformer_block.3} parent=71 // pred_fallthru
        _
      // Predicated region
      $region77: #{parallel_transformer_block.3} parent=71 // pred_check
        %p913 = pneg %p264
      $region78: #{parallel_transformer_block.3} parent=71 // pred_check_branch
        %915 = sbr.rel (%p913) target = $region80
      $region79: #{parallel_transformer_block.3} parent=71 // pred_region
        %s916 = smul.u32 2, %s30
        %p917 = scmp.lt.s32.totalorder %s29, 1
        %s918 = scalar_select %p917, %s29, 1
        %p919 = scmp.lt.s32.totalorder %s916, 1
        %s920 = scalar_select %p919, %s916, 1
        %s921 = smul.addr %s918, 8
        %s922 = sadd.s32 %s920, %s921
        %s923 = smul.addr %s922, 4
        %s924 = scalar_lea.vmem %s9, %s923
      $region80: #{parallel_transformer_block.3} parent=71 // pred_fallthru
        _
      // Predicated region
      $region81: #{parallel_transformer_block.3} parent=71 // pred_check
        %p925 = pneg %p292
      $region82: #{parallel_transformer_block.3} parent=71 // pred_check_branch
        %927 = sbr.rel (%p925) target = $region84
      $region83: #{parallel_transformer_block.3} parent=71 // pred_region
        %s928 = smul.u32 2, %s30
        %p929 = scmp.lt.s32.totalorder %s29, 1
        %s930 = scalar_select %p929, %s29, 1
        %p931 = scmp.lt.s32.totalorder %s928, 1
        %s932 = scalar_select %p931, %s928, 1
        %s933 = smul.addr %s930, 8
        %s934 = sadd.s32 %s932, %s933
        %s935 = smul.addr %s934, 4
        %s936 = scalar_lea.vmem %s10, %s935
      $region84: #{parallel_transformer_block.3} parent=71 // pred_fallthru
        _
      // Predicated region
      $region85: #{parallel_transformer_block.3} parent=71 // pred_check
        %p937 = pneg %p320
      $region86: #{parallel_transformer_block.3} parent=71 // pred_check_branch
        %939 = sbr.rel (%p937) target = $region88
      $region87: #{parallel_transformer_block.3} parent=71 // pred_region
        %s940 = smul.u32 2, %s30
        %p941 = scmp.lt.s32.totalorder %s29, 1
        %s942 = scalar_select %p941, %s29, 1
        %p943 = scmp.lt.s32.totalorder %s940, 1
        %s944 = scalar_select %p943, %s940, 1
        %s945 = smul.addr %s942, 8
        %s946 = sadd.s32 %s944, %s945
        %s947 = smul.addr %s946, 4
        %s948 = scalar_lea.vmem %s11, %s947
      $region88: #{parallel_transformer_block.3} parent=71 // pred_fallthru
        _
    $region72: #{parallel_transformer_block.3} parent=5 // pred_fallthru
      _
  $region6: #{parallel_transformer_block.3} parent=0 // loop_footer
    %s22 = sadd.s32 1, %s18
  $region7: #{parallel_transformer_block.3} parent=0 // loop_footer_branch
    %17 = sbr.rel target = $region3
  $region8: #{parallel_transformer_block.3} parent=0 // loop_exit
    _

// kernel: parallel_transformer_block.4
$region0: #{parallel_transformer_block.4}
  #allocation0 [shape = 'u32[]', space=smem, size = 0x4, offset = 0x4, fixed_abs, tag = 'smem constant byte address 0x4 - core index']
  #allocation1 [shape = 'u32[144,128]{1,0:T(1,128)}', space=vmem, size = 0x12000, scoped, tag = 'internal scratch']
  #allocation2 [shape = 'f32[4,8,1]{2,1,0:T(8,128)}', space=vmem, size = 0x4000, scoped, tag = 'scratch operand']
  #allocation3 [shape = 'f32[4,8,1]{2,1,0:T(8,128)}', space=vmem, size = 0x4000, scoped, tag = 'scratch operand']
  #allocation4 [shape = 'f32[4,8,8]{2,1,0:T(8,128)}', space=vmem, size = 0x4000, scoped, tag = 'scratch operand']
  #allocation5 [shape = 'bf16[8,32]{1,0:T(8,128)(2,1)}', space=vmem, size = 0x800, scoped, tag = 'scratch operand']
  %s0 = inlined_call_operand.vmem [shape: f32[2,16,32], index: 0, kind: input, shape index: {}]
  %s1 = inlined_call_operand.vmem [shape: bf16[2,4,16,8], index: 1, kind: input, shape index: {}]
  %s2 = inlined_call_operand.vmem [shape: bf16[2,4,16,8], index: 2, kind: input, shape index: {}]
  %s3 = inlined_call_operand.vmem [shape: bf16[2,4,16,8], index: 3, kind: input, shape index: {}]
  %s4 = inlined_call_operand.vmem [shape: bf16[32,32], index: 4, kind: input, shape index: {}]
  %s5 = inlined_call_operand.vmem [shape: f32[1,32], index: 5, kind: input, shape index: {}]
  %s6 = inlined_call_operand.vmem [shape: f32[2,16,32], index: 6, kind: output, shape index: {}]
  %s7 = sld [smem:[#allocation0]]
  $region188: #{parallel_transformer_block.4} parent=0
    _
  %s9 = ssub.s32 1, %s7
  %s10 = scalar_select 0, %s9, %s7
  $region1: #{parallel_transformer_block.4} parent=0
    #allocation6 [shape = 'u8[16384]{0}', space=vmem, size = 0x4000, scoped, tag = 'input window, operand 1']
    #allocation7 [shape = 'u8[16384]{0}', space=vmem, size = 0x4000, scoped, tag = 'input window, operand 2']
    #allocation8 [shape = 'u8[16384]{0}', space=vmem, size = 0x4000, scoped, tag = 'input window, operand 3']
    loop: start=0, step=1, limit=10
    $region2: #{parallel_transformer_block.4} parent=1 // loop_pre_header
      _
    $region3: #{parallel_transformer_block.4} parent=1 // loop_header
      %s12 = sphi 0, %s16
      %p13 = scmp.ge.s32.totalorder %s12, 10
      %s19 = sphi 0, %s38
      %s20 = sphi 0, %s34
      %s21 = sphi 0, %s30
      %s22 = sphi 0, %s19
      %s23 = sphi 0, %s20
      %s24 = sphi 0, %s21
      %s25 = sphi 0, %s22
      %s26 = sphi 0, %s23
      %s27 = sphi 0, %s24
      %s43 = sphi 0, %s45
      %s46 = sphi 0, %s43
      %s47 = sphi 0, %s46
      %s63 = sphi 0, %s47
      %s71 = sphi 0, %s73
      %s74 = sphi 0, %s71
      %s75 = sphi 0, %s74
      %s91 = sphi 0, %s75
      %s99 = sphi 0, %s101
      %s102 = sphi 0, %s99
      %s103 = sphi 0, %s102
      %s119 = sphi 0, %s103
      %s127 = sphi 0, %s129
      %s130 = sphi 0, %s127
      %s131 = sphi 0, %s130
      %s147 = sphi 0, %s131
      %s151 = sphi 0, %s151
      %s153 = sphi 0, %s151
      %s154 = sphi 0, %s153
      %s168 = sphi 0, %s154
      %s172 = sphi 0, %s172
      %s174 = sphi 0, %s172
      %s175 = sphi 0, %s174
      %s189 = sphi 0, %s175
      %s197 = sphi 0, %s199
      %s200 = sphi 0, %s197
      %s201 = sphi 0, %s200
      %s217 = sphi 0, %s201
    $region4: #{parallel_transformer_block.4} parent=1 // loop_header_branch
      %15 = sbr.rel (%p13) target = $region8
    $region5: #{parallel_transformer_block.4} parent=1 // loop_body
      %s17 = ssub.s32 %s12, 1
      %s18 = ssub.s32 %s12, 2
      %s28 = sadd.s32 1, %s21
      %p29 = scmp.ge.s32.totalorder %s28, 2
      %s30 = scalar_select %p29, 0, %s28
      %s31 = sadd.s32 1, %s20
      %s32 = scalar_select %p29, %s31, %s20
      %p33 = scmp.ge.s32.totalorder %s32, 2
      %s34 = scalar_select %p33, 0, %s32
      %s35 = sadd.s32 1, %s19
      %s36 = scalar_select %p33, %s35, %s19
      %p37 = scmp.ge.s32.totalorder %s36, 2
      %s38 = scalar_select %p37, 0, %s36
      %s39 = ssub.s32 %s19, %s38
      %s40 = ssub.s32 %s20, %s34
      %s41 = sor.u32 %s39, %s40
      %p42 = scmp.eq.s32.totalorder %s41, 0
      %s44 = sadd.s32 %s43, 1
      %s45 = scalar_select %p42, %s43, %s44
      %p48 = pneg %p42
      %p49 = scmp.eq.s32.totalorder %s12, 7
      %p50 = por %p48, %p49
      %p51 = scmp.ne.s32.totalorder %s43, %s46
      %p52 = scmp.eq.s32.totalorder %s12, 0
      %p53 = por %p51, %p52
      %p54 = scmp.ne.s32.totalorder %s43, %s46
      %p55 = scmp.eq.s32.totalorder %s17, 7
      %p56 = por %p54, %p55
      %p57 = scmp.ne.s32.totalorder %s46, %s47
      %p58 = scmp.eq.s32.totalorder %s17, 0
      %p59 = por %p57, %p58
      %p60 = scmp.ne.s32.totalorder %s46, %s47
      %p61 = scmp.eq.s32.totalorder %s18, 7
      %p62 = por %p60, %p61
      %p64 = scmp.ne.s32.totalorder %s47, %s63
      %p65 = scmp.eq.s32.totalorder %s18, 0
      %p66 = por %p64, %p65
      %s67 = ssub.s32 %s19, %s38
      %s68 = ssub.s32 %s20, %s34
      %s69 = sor.u32 %s67, %s68
      %p70 = scmp.eq.s32.totalorder %s69, 0
      %s72 = sadd.s32 %s71, 1
      %s73 = scalar_select %p70, %s71, %s72
      %p76 = pneg %p70
      %p77 = scmp.eq.s32.totalorder %s12, 7
      %p78 = por %p76, %p77
      %p79 = scmp.ne.s32.totalorder %s71, %s74
      %p80 = scmp.eq.s32.totalorder %s12, 0
      %p81 = por %p79, %p80
      %p82 = scmp.ne.s32.totalorder %s71, %s74
      %p83 = scmp.eq.s32.totalorder %s17, 7
      %p84 = por %p82, %p83
      %p85 = scmp.ne.s32.totalorder %s74, %s75
      %p86 = scmp.eq.s32.totalorder %s17, 0
      %p87 = por %p85, %p86
      %p88 = scmp.ne.s32.totalorder %s74, %s75
      %p89 = scmp.eq.s32.totalorder %s18, 7
      %p90 = por %p88, %p89
      %p92 = scmp.ne.s32.totalorder %s75, %s91
      %p93 = scmp.eq.s32.totalorder %s18, 0
      %p94 = por %p92, %p93
      %s95 = ssub.s32 %s19, %s38
      %s96 = ssub.s32 %s21, %s30
      %s97 = sor.u32 %s95, %s96
      %p98 = scmp.eq.s32.totalorder %s97, 0
      %s100 = sadd.s32 %s99, 1
      %s101 = scalar_select %p98, %s99, %s100
      %p104 = pneg %p98
      %p105 = scmp.eq.s32.totalorder %s12, 7
      %p106 = por %p104, %p105
      %p107 = scmp.ne.s32.totalorder %s99, %s102
      %p108 = scmp.eq.s32.totalorder %s12, 0
      %p109 = por %p107, %p108
      %p110 = scmp.ne.s32.totalorder %s99, %s102
      %p111 = scmp.eq.s32.totalorder %s17, 7
      %p112 = por %p110, %p111
      %p113 = scmp.ne.s32.totalorder %s102, %s103
      %p114 = scmp.eq.s32.totalorder %s17, 0
      %p115 = por %p113, %p114
      %p116 = scmp.ne.s32.totalorder %s102, %s103
      %p117 = scmp.eq.s32.totalorder %s18, 7
      %p118 = por %p116, %p117
      %p120 = scmp.ne.s32.totalorder %s103, %s119
      %p121 = scmp.eq.s32.totalorder %s18, 0
      %p122 = por %p120, %p121
      %s123 = ssub.s32 %s19, %s38
      %s124 = ssub.s32 %s21, %s30
      %s125 = sor.u32 %s123, %s124
      %p126 = scmp.eq.s32.totalorder %s125, 0
      %s128 = sadd.s32 %s127, 1
      %s129 = scalar_select %p126, %s127, %s128
      %p132 = pneg %p126
      %p133 = scmp.eq.s32.totalorder %s12, 7
      %p134 = por %p132, %p133
      %p135 = scmp.ne.s32.totalorder %s127, %s130
      %p136 = scmp.eq.s32.totalorder %s12, 0
      %p137 = por %p135, %p136
      %p138 = scmp.ne.s32.totalorder %s127, %s130
      %p139 = scmp.eq.s32.totalorder %s17, 7
      %p140 = por %p138, %p139
      %p141 = scmp.ne.s32.totalorder %s130, %s131
      %p142 = scmp.eq.s32.totalorder %s17, 0
      %p143 = por %p141, %p142
      %p144 = scmp.ne.s32.totalorder %s130, %s131
      %p145 = scmp.eq.s32.totalorder %s18, 7
      %p146 = por %p144, %p145
      %p148 = scmp.ne.s32.totalorder %s131, %s147
      %p149 = scmp.eq.s32.totalorder %s18, 0
      %p150 = por %p148, %p149
      %s152 = sadd.s32 %s151, 1
      %p155 = scmp.eq.s32.totalorder %s12, 7
      %p156 = scmp.ne.s32.totalorder %s151, %s153
      %p157 = scmp.eq.s32.totalorder %s12, 0
      %p158 = por %p156, %p157
      %p159 = scmp.ne.s32.totalorder %s151, %s153
      %p160 = scmp.eq.s32.totalorder %s17, 7
      %p161 = por %p159, %p160
      %p162 = scmp.ne.s32.totalorder %s153, %s154
      %p163 = scmp.eq.s32.totalorder %s17, 0
      %p164 = por %p162, %p163
      %p165 = scmp.ne.s32.totalorder %s153, %s154
      %p166 = scmp.eq.s32.totalorder %s18, 7
      %p167 = por %p165, %p166
      %p169 = scmp.ne.s32.totalorder %s154, %s168
      %p170 = scmp.eq.s32.totalorder %s18, 0
      %p171 = por %p169, %p170
      %s173 = sadd.s32 %s172, 1
      %p176 = scmp.eq.s32.totalorder %s12, 7
      %p177 = scmp.ne.s32.totalorder %s172, %s174
      %p178 = scmp.eq.s32.totalorder %s12, 0
      %p179 = por %p177, %p178
      %p180 = scmp.ne.s32.totalorder %s172, %s174
      %p181 = scmp.eq.s32.totalorder %s17, 7
      %p182 = por %p180, %p181
      %p183 = scmp.ne.s32.totalorder %s174, %s175
      %p184 = scmp.eq.s32.totalorder %s17, 0
      %p185 = por %p183, %p184
      %p186 = scmp.ne.s32.totalorder %s174, %s175
      %p187 = scmp.eq.s32.totalorder %s18, 7
      %p188 = por %p186, %p187
      %p190 = scmp.ne.s32.totalorder %s175, %s189
      %p191 = scmp.eq.s32.totalorder %s18, 0
      %p192 = por %p190, %p191
      %s193 = ssub.s32 %s19, %s38
      %s194 = ssub.s32 %s20, %s34
      %s195 = sor.u32 %s193, %s194
      %p196 = scmp.eq.s32.totalorder %s195, 0
      %s198 = sadd.s32 %s197, 1
      %s199 = scalar_select %p196, %s197, %s198
      %p202 = pneg %p196
      %p203 = scmp.eq.s32.totalorder %s12, 7
      %p204 = por %p202, %p203
      %p205 = scmp.ne.s32.totalorder %s197, %s200
      %p206 = scmp.eq.s32.totalorder %s12, 0
      %p207 = por %p205, %p206
      %p208 = scmp.ne.s32.totalorder %s197, %s200
      %p209 = scmp.eq.s32.totalorder %s17, 7
      %p210 = por %p208, %p209
      %p211 = scmp.ne.s32.totalorder %s200, %s201
      %p212 = scmp.eq.s32.totalorder %s17, 0
      %p213 = por %p211, %p212
      %p214 = scmp.ne.s32.totalorder %s200, %s201
      %p215 = scmp.eq.s32.totalorder %s18, 7
      %p216 = por %p214, %p215
      %p218 = scmp.ne.s32.totalorder %s201, %s217
      %p219 = scmp.eq.s32.totalorder %s18, 0
      %p220 = por %p218, %p219
      %p221 = scmp.le.s32.totalorder 1, %s12
      %p222 = scmp.lt.s32.totalorder %s12, 9
      %p223 = pnand %p221, %p222
      %p224 = pneg %p223
      // Predicated region
      $region9: #{parallel_transformer_block.4} parent=5 // pred_check
        _
      $region10: #{parallel_transformer_block.4} parent=5 // pred_check_branch
        %226 = sbr.rel (%p223) target = $region12
      $region11: #{parallel_transformer_block.4} parent=5 // pred_region
        %s227 = ssub.s32 %s12, 1
        // Predicated region
        $region13: #{parallel_transformer_block.4} parent=11 // pred_check
          %p228 = pneg %p164
        $region14: #{parallel_transformer_block.4} parent=11 // pred_check_branch
          %230 = sbr.rel (%p228) target = $region16
        $region15: #{parallel_transformer_block.4} parent=11 // pred_region
          _
        $region16: #{parallel_transformer_block.4} parent=11 // pred_fallthru
          _
        // Predicated region
        $region17: #{parallel_transformer_block.4} parent=11 // pred_check
          %p231 = pneg %p185
        $region18: #{parallel_transformer_block.4} parent=11 // pred_check_branch
          %233 = sbr.rel (%p231) target = $region20
        $region19: #{parallel_transformer_block.4} parent=11 // pred_region
          _
        $region20: #{parallel_transformer_block.4} parent=11 // pred_fallthru
          _
      $region12: #{parallel_transformer_block.4} parent=5 // pred_fallthru
        _
      %p234 = scmp.lt.s32.totalorder %s12, 8
      // Predicated region
      $region21: #{parallel_transformer_block.4} parent=5 // pred_check
        %p235 = pneg %p234
      $region22: #{parallel_transformer_block.4} parent=5 // pred_check_branch
        %237 = sbr.rel (%p235) target = $region24
      $region23: #{parallel_transformer_block.4} parent=5 // pred_region
        // Predicated region
        $region25: #{parallel_transformer_block.4} parent=23 // pred_check
          %p238 = pneg %p53
        $region26: #{parallel_transformer_block.4} parent=23 // pred_check_branch
          %240 = sbr.rel (%p238) target = $region28
        $region27: #{parallel_transformer_block.4} parent=23 // pred_region
          %p241 = scmp.lt.s32.totalorder %s19, 1
          %s242 = scalar_select %p241, %s19, 1
          %p243 = scmp.lt.s32.totalorder %s20, 1
          %s244 = scalar_select %p243, %s20, 1
          %s245 = smul.addr %s242, 2
          %s246 = sadd.s32 %s244, %s245
          %s247 = smul.addr %s246, 8
          %s248 = scalar_lea.vmem %s0, %s247
        $region28: #{parallel_transformer_block.4} parent=23 // pred_fallthru
          _
        // Predicated region
        $region29: #{parallel_transformer_block.4} parent=23 // pred_check
          %p249 = pneg %p81
        $region30: #{parallel_transformer_block.4} parent=23 // pred_check_branch
          %251 = sbr.rel (%p249) target = $region32
        $region31: #{parallel_transformer_block.4} parent=23 // pred_region
          %s252 = sand.u32 %s71, 1
          %s253 = sand.u32 %s71, 1
          %s254 = smul.addr %s253, 16
          %s255 = scalar_lea.vmem [#allocation6], %s254
          %s256 = smul.addr %s19, 8
          %s257 = sadd.s32 %s20, %s256
          %s258 = smul.addr %s257, 4
          %s259 = scalar_lea.vmem %s1, %s258
          // Predicated region
          $region33: #{parallel_transformer_block.4} parent=31 // pred_check
            _
          $region34: #{parallel_transformer_block.4} parent=31 // pred_check_branch
            %261 = sbr.rel (0) target = $region36
          $region35: #{parallel_transformer_block.4} parent=31 // pred_region
            // Predicated region
            $region37: #{parallel_transformer_block.4} parent=35 // pred_check
              _
            $region38: #{parallel_transformer_block.4} parent=35 // pred_check_branch
              %263 = sbr.rel target = $region40
            $region39: #{parallel_transformer_block.4} parent=35 // pred_region
              // Predicated region
              $region52: #{parallel_transformer_block.4} parent=39 // pred_check
                _
              $region53: #{parallel_transformer_block.4} parent=39 // pred_check_branch
                %285 = sbr.rel (0) target = $region55
              $region54: #{parallel_transformer_block.4} parent=39 // pred_region
                loop: start=0, step=1, limit=1
                $region56: #{parallel_transformer_block.4} parent=54 // loop_pre_header
                  _
                $region57: #{parallel_transformer_block.4} parent=54 // loop_header
                  %s287 = sphi 0, %s291
                  %p288 = scmp.ge.s32.totalorder %s287, 1
                  %s292 = sphi %s259, %s259
                  %s293 = sphi %s255, %s255
                $region58: #{parallel_transformer_block.4} parent=54 // loop_header_branch
                  %290 = sbr.rel (%p288) target = $region62
                $region59: #{parallel_transformer_block.4} parent=54 // loop_body
                  _
                $region60: #{parallel_transformer_block.4} parent=54 // loop_footer
                  %s291 = sadd.s32 1, %s287
                $region61: #{parallel_transformer_block.4} parent=54 // loop_footer_branch
                  %286 = sbr.rel target = $region57
                $region62: #{parallel_transformer_block.4} parent=54 // loop_exit
                  _
                %s295 = ssub.s32 16, 1
                loop: start=0, step=1, limit=1
                $region63: #{parallel_transformer_block.4} parent=54 // loop_pre_header
                  _
                $region64: #{parallel_transformer_block.4} parent=54 // loop_header
                  %s297 = sphi 0, %s301
                  %p298 = scmp.ge.s32.totalorder %s297, 1
                  %s302 = sphi %s259, %s259
                  %s303 = sphi %s255, %s255
                $region65: #{parallel_transformer_block.4} parent=54 // loop_header_branch
                  %300 = sbr.rel (%p298) target = $region69
                $region66: #{parallel_transformer_block.4} parent=54 // loop_body
                  %v304 = vld [vmem:[%s302] sm:%s295]
                  %305 = vst [vmem:[%s303] sm:%s295] %v304
                  %v306 = vld [vmem:[%s302 + $0x8] sm:%s295]
                  %307 = vst [vmem:[%s303 + $0x4] sm:%s295] %v306
                  %v308 = vld [vmem:[%s302 + $0x10] sm:%s295]
                  %309 = vst [vmem:[%s303 + $0x8] sm:%s295] %v308
                  %v310 = vld [vmem:[%s302 + $0x18] sm:%s295]
                  %311 = vst [vmem:[%s303 + $0xc] sm:%s295] %v310
                $region67: #{parallel_transformer_block.4} parent=54 // loop_footer
                  %s301 = sadd.s32 1, %s297
                $region68: #{parallel_transformer_block.4} parent=54 // loop_footer_branch
                  %296 = sbr.rel target = $region64
                $region69: #{parallel_transformer_block.4} parent=54 // loop_exit
                  _
              $region55: #{parallel_transformer_block.4} parent=39 // pred_fallthru
                _
            $region40: #{parallel_transformer_block.4} parent=35 // pred_fallthru
              _
            // Predicated region
            $region41: #{parallel_transformer_block.4} parent=35 // pred_check
              _
            $region42: #{parallel_transformer_block.4} parent=35 // pred_check_branch
              %265 = sbr.rel (0) target = $region44
            $region43: #{parallel_transformer_block.4} parent=35 // pred_region
              %s267 = ssub.s32 16, 1
              loop: start=0, step=1, limit=1
              $region45: #{parallel_transformer_block.4} parent=43 // loop_pre_header
                _
              $region46: #{parallel_transformer_block.4} parent=43 // loop_header
                %s269 = sphi 0, %s273
                %p270 = scmp.ge.s32.totalorder %s269, 1
                %s274 = sphi %s259, %s259
                %s275 = sphi %s255, %s255
              $region47: #{parallel_transformer_block.4} parent=43 // loop_header_branch
                %272 = sbr.rel (%p270) target = $region51
              $region48: #{parallel_transformer_block.4} parent=43 // loop_body
                %v276 = vld [vmem:[%s274] sm:%s267]
                %277 = vst [vmem:[%s275] sm:%s267] %v276
                %v278 = vld [vmem:[%s274 + $0x8] sm:%s267]
                %279 = vst [vmem:[%s275 + $0x4] sm:%s267] %v278
                %v280 = vld [vmem:[%s274 + $0x10] sm:%s267]
                %281 = vst [vmem:[%s275 + $0x8] sm:%s267] %v280
                %v282 = vld [vmem:[%s274 + $0x18] sm:%s267]
                %283 = vst [vmem:[%s275 + $0xc] sm:%s267] %v282
              $region49: #{parallel_transformer_block.4} parent=43 // loop_footer
                %s273 = sadd.s32 1, %s269
              $region50: #{parallel_transformer_block.4} parent=43 // loop_footer_branch
                %268 = sbr.rel target = $region46
              $region51: #{parallel_transformer_block.4} parent=43 // loop_exit
                _
            $region44: #{parallel_transformer_block.4} parent=35 // pred_fallthru
              _
          $region36: #{parallel_transformer_block.4} parent=31 // pred_fallthru
            _
          %312 = vnop
        $region32: #{parallel_transformer_block.4} parent=23 // pred_fallthru
          _
        // Predicated region
        $region70: #{parallel_transformer_block.4} parent=23 // pred_check
          %p313 = pneg %p109
        $region71: #{parallel_transformer_block.4} parent=23 // pred_check_branch
          %315 = sbr.rel (%p313) target = $region73
        $region72: #{parallel_transformer_block.4} parent=23 // pred_region
          %s316 = sand.u32 %s99, 1
          %s317 = sand.u32 %s99, 1
          %s318 = smul.addr %s317, 16
          %s319 = scalar_lea.vmem [#allocation7], %s318
          %s320 = smul.addr %s19, 8
          %s321 = sadd.s32 %s21, %s320
          %s322 = smul.addr %s321, 4
          %s323 = scalar_lea.vmem %s2, %s322
          // Predicated region
          $region74: #{parallel_transformer_block.4} parent=72 // pred_check
            _
          $region75: #{parallel_transformer_block.4} parent=72 // pred_check_branch
            %325 = sbr.rel (0) target = $region77
          $region76: #{parallel_transformer_block.4} parent=72 // pred_region
            // Predicated region
            $region78: #{parallel_transformer_block.4} parent=76 // pred_check
              _
            $region79: #{parallel_transformer_block.4} parent=76 // pred_check_branch
              %327 = sbr.rel target = $region81
            $region80: #{parallel_transformer_block.4} parent=76 // pred_region
              // Predicated region
              $region93: #{parallel_transformer_block.4} parent=80 // pred_check
                _
              $region94: #{parallel_transformer_block.4} parent=80 // pred_check_branch
                %349 = sbr.rel (0) target = $region96
              $region95: #{parallel_transformer_block.4} parent=80 // pred_region
                loop: start=0, step=1, limit=1
                $region97: #{parallel_transformer_block.4} parent=95 // loop_pre_header
                  _
                $region98: #{parallel_transformer_block.4} parent=95 // loop_header
                  %s351 = sphi 0, %s355
                  %p352 = scmp.ge.s32.totalorder %s351, 1
                  %s356 = sphi %s323, %s323
                  %s357 = sphi %s319, %s319
                $region99: #{parallel_transformer_block.4} parent=95 // loop_header_branch
                  %354 = sbr.rel (%p352) target = $region103
                $region100: #{parallel_transformer_block.4} parent=95 // loop_body
                  _
                $region101: #{parallel_transformer_block.4} parent=95 // loop_footer
                  %s355 = sadd.s32 1, %s351
                $region102: #{parallel_transformer_block.4} parent=95 // loop_footer_branch
                  %350 = sbr.rel target = $region98
                $region103: #{parallel_transformer_block.4} parent=95 // loop_exit
                  _
                %s359 = ssub.s32 16, 1
                loop: start=0, step=1, limit=1
                $region104: #{parallel_transformer_block.4} parent=95 // loop_pre_header
                  _
                $region105: #{parallel_transformer_block.4} parent=95 // loop_header
                  %s361 = sphi 0, %s365
                  %p362 = scmp.ge.s32.totalorder %s361, 1
                  %s366 = sphi %s323, %s323
                  %s367 = sphi %s319, %s319
                $region106: #{parallel_transformer_block.4} parent=95 // loop_header_branch
                  %364 = sbr.rel (%p362) target = $region110
                $region107: #{parallel_transformer_block.4} parent=95 // loop_body
                  %v368 = vld [vmem:[%s366] sm:%s359]
                  %369 = vst [vmem:[%s367] sm:%s359] %v368
                  %v370 = vld [vmem:[%s366 + $0x8] sm:%s359]
                  %371 = vst [vmem:[%s367 + $0x4] sm:%s359] %v370
                  %v372 = vld [vmem:[%s366 + $0x10] sm:%s359]
                  %373 = vst [vmem:[%s367 + $0x8] sm:%s359] %v372
                  %v374 = vld [vmem:[%s366 + $0x18] sm:%s359]
                  %375 = vst [vmem:[%s367 + $0xc] sm:%s359] %v374
                $region108: #{parallel_transformer_block.4} parent=95 // loop_footer
                  %s365 = sadd.s32 1, %s361
                $region109: #{parallel_transformer_block.4} parent=95 // loop_footer_branch
                  %360 = sbr.rel target = $region105
                $region110: #{parallel_transformer_block.4} parent=95 // loop_exit
                  _
              $region96: #{parallel_transformer_block.4} parent=80 // pred_fallthru
                _
            $region81: #{parallel_transformer_block.4} parent=76 // pred_fallthru
              _
            // Predicated region
            $region82: #{parallel_transformer_block.4} parent=76 // pred_check
              _
            $region83: #{parallel_transformer_block.4} parent=76 // pred_check_branch
              %329 = sbr.rel (0) target = $region85
            $region84: #{parallel_transformer_block.4} parent=76 // pred_region
              %s331 = ssub.s32 16, 1
              loop: start=0, step=1, limit=1
              $region86: #{parallel_transformer_block.4} parent=84 // loop_pre_header
                _
              $region87: #{parallel_transformer_block.4} parent=84 // loop_header
                %s333 = sphi 0, %s337
                %p334 = scmp.ge.s32.totalorder %s333, 1
                %s338 = sphi %s323, %s323
                %s339 = sphi %s319, %s319
              $region88: #{parallel_transformer_block.4} parent=84 // loop_header_branch
                %336 = sbr.rel (%p334) target = $region92
              $region89: #{parallel_transformer_block.4} parent=84 // loop_body
                %v340 = vld [vmem:[%s338] sm:%s331]
                %341 = vst [vmem:[%s339] sm:%s331] %v340
                %v342 = vld [vmem:[%s338 + $0x8] sm:%s331]
                %343 = vst [vmem:[%s339 + $0x4] sm:%s331] %v342
                %v344 = vld [vmem:[%s338 + $0x10] sm:%s331]
                %345 = vst [vmem:[%s339 + $0x8] sm:%s331] %v344
                %v346 = vld [vmem:[%s338 + $0x18] sm:%s331]
                %347 = vst [vmem:[%s339 + $0xc] sm:%s331] %v346
              $region90: #{parallel_transformer_block.4} parent=84 // loop_footer
                %s337 = sadd.s32 1, %s333
              $region91: #{parallel_transformer_block.4} parent=84 // loop_footer_branch
                %332 = sbr.rel target = $region87
              $region92: #{parallel_transformer_block.4} parent=84 // loop_exit
                _
            $region85: #{parallel_transformer_block.4} parent=76 // pred_fallthru
              _
          $region77: #{parallel_transformer_block.4} parent=72 // pred_fallthru
            _
          %376 = vnop
        $region73: #{parallel_transformer_block.4} parent=23 // pred_fallthru
          _
        // Predicated region
        $region111: #{parallel_transformer_block.4} parent=23 // pred_check
          %p377 = pneg %p137
        $region112: #{parallel_transformer_block.4} parent=23 // pred_check_branch
          %379 = sbr.rel (%p377) target = $region114
        $region113: #{parallel_transformer_block.4} parent=23 // pred_region
          %s380 = sand.u32 %s127, 1
          %s381 = sand.u32 %s127, 1
          %s382 = smul.addr %s381, 16
          %s383 = scalar_lea.vmem [#allocation8], %s382
          %s384 = smul.addr %s19, 8
          %s385 = sadd.s32 %s21, %s384
          %s386 = smul.addr %s385, 4
          %s387 = scalar_lea.vmem %s3, %s386
          // Predicated region
          $region115: #{parallel_transformer_block.4} parent=113 // pred_check
            _
          $region116: #{parallel_transformer_block.4} parent=113 // pred_check_branch
            %389 = sbr.rel (0) target = $region118
          $region117: #{parallel_transformer_block.4} parent=113 // pred_region
            // Predicated region
            $region119: #{parallel_transformer_block.4} parent=117 // pred_check
              _
            $region120: #{parallel_transformer_block.4} parent=117 // pred_check_branch
              %391 = sbr.rel target = $region122
            $region121: #{parallel_transformer_block.4} parent=117 // pred_region
              // Predicated region
              $region134: #{parallel_transformer_block.4} parent=121 // pred_check
                _
              $region135: #{parallel_transformer_block.4} parent=121 // pred_check_branch
                %413 = sbr.rel (0) target = $region137
              $region136: #{parallel_transformer_block.4} parent=121 // pred_region
                loop: start=0, step=1, limit=1
                $region138: #{parallel_transformer_block.4} parent=136 // loop_pre_header
                  _
                $region139: #{parallel_transformer_block.4} parent=136 // loop_header
                  %s415 = sphi 0, %s419
                  %p416 = scmp.ge.s32.totalorder %s415, 1
                  %s420 = sphi %s387, %s387
                  %s421 = sphi %s383, %s383
                $region140: #{parallel_transformer_block.4} parent=136 // loop_header_branch
                  %418 = sbr.rel (%p416) target = $region144
                $region141: #{parallel_transformer_block.4} parent=136 // loop_body
                  _
                $region142: #{parallel_transformer_block.4} parent=136 // loop_footer
                  %s419 = sadd.s32 1, %s415
                $region143: #{parallel_transformer_block.4} parent=136 // loop_footer_branch
                  %414 = sbr.rel target = $region139
                $region144: #{parallel_transformer_block.4} parent=136 // loop_exit
                  _
                %s423 = ssub.s32 16, 1
                loop: start=0, step=1, limit=1
                $region145: #{parallel_transformer_block.4} parent=136 // loop_pre_header
                  _
                $region146: #{parallel_transformer_block.4} parent=136 // loop_header
                  %s425 = sphi 0, %s429
                  %p426 = scmp.ge.s32.totalorder %s425, 1
                  %s430 = sphi %s387, %s387
                  %s431 = sphi %s383, %s383
                $region147: #{parallel_transformer_block.4} parent=136 // loop_header_branch
                  %428 = sbr.rel (%p426) target = $region151
                $region148: #{parallel_transformer_block.4} parent=136 // loop_body
                  %v432 = vld [vmem:[%s430] sm:%s423]
                  %433 = vst [vmem:[%s431] sm:%s423] %v432
                  %v434 = vld [vmem:[%s430 + $0x8] sm:%s423]
                  %435 = vst [vmem:[%s431 + $0x4] sm:%s423] %v434
                  %v436 = vld [vmem:[%s430 + $0x10] sm:%s423]
                  %437 = vst [vmem:[%s431 + $0x8] sm:%s423] %v436
                  %v438 = vld [vmem:[%s430 + $0x18] sm:%s423]
                  %439 = vst [vmem:[%s431 + $0xc] sm:%s423] %v438
                $region149: #{parallel_transformer_block.4} parent=136 // loop_footer
                  %s429 = sadd.s32 1, %s425
                $region150: #{parallel_transformer_block.4} parent=136 // loop_footer_branch
                  %424 = sbr.rel target = $region146
                $region151: #{parallel_transformer_block.4} parent=136 // loop_exit
                  _
              $region137: #{parallel_transformer_block.4} parent=121 // pred_fallthru
                _
            $region122: #{parallel_transformer_block.4} parent=117 // pred_fallthru
              _
            // Predicated region
            $region123: #{parallel_transformer_block.4} parent=117 // pred_check
              _
            $region124: #{parallel_transformer_block.4} parent=117 // pred_check_branch
              %393 = sbr.rel (0) target = $region126
            $region125: #{parallel_transformer_block.4} parent=117 // pred_region
              %s395 = ssub.s32 16, 1
              loop: start=0, step=1, limit=1
              $region127: #{parallel_transformer_block.4} parent=125 // loop_pre_header
                _
              $region128: #{parallel_transformer_block.4} parent=125 // loop_header
                %s397 = sphi 0, %s401
                %p398 = scmp.ge.s32.totalorder %s397, 1
                %s402 = sphi %s387, %s387
                %s403 = sphi %s383, %s383
              $region129: #{parallel_transformer_block.4} parent=125 // loop_header_branch
                %400 = sbr.rel (%p398) target = $region133
              $region130: #{parallel_transformer_block.4} parent=125 // loop_body
                %v404 = vld [vmem:[%s402] sm:%s395]
                %405 = vst [vmem:[%s403] sm:%s395] %v404
                %v406 = vld [vmem:[%s402 + $0x8] sm:%s395]
                %407 = vst [vmem:[%s403 + $0x4] sm:%s395] %v406
                %v408 = vld [vmem:[%s402 + $0x10] sm:%s395]
                %409 = vst [vmem:[%s403 + $0x8] sm:%s395] %v408
                %v410 = vld [vmem:[%s402 + $0x18] sm:%s395]
                %411 = vst [vmem:[%s403 + $0xc] sm:%s395] %v410
              $region131: #{parallel_transformer_block.4} parent=125 // loop_footer
                %s401 = sadd.s32 1, %s397
              $region132: #{parallel_transformer_block.4} parent=125 // loop_footer_branch
                %396 = sbr.rel target = $region128
              $region133: #{parallel_transformer_block.4} parent=125 // loop_exit
                _
            $region126: #{parallel_transformer_block.4} parent=117 // pred_fallthru
              _
          $region118: #{parallel_transformer_block.4} parent=113 // pred_fallthru
            _
          %440 = vnop
        $region114: #{parallel_transformer_block.4} parent=23 // pred_fallthru
          _
      $region24: #{parallel_transformer_block.4} parent=5 // pred_fallthru
        _
      %p441 = scmp.le.s32.totalorder 1, %s12
      %p442 = scmp.lt.s32.totalorder %s12, 9
      %p443 = pnand %p441, %p442
      %p444 = pneg %p443
      // Predicated region
      $region152: #{parallel_transformer_block.4} parent=5 // pred_check
        _
      $region153: #{parallel_transformer_block.4} parent=5 // pred_check_branch
        %446 = sbr.rel (%p443) target = $region155
      $region154: #{parallel_transformer_block.4} parent=5 // pred_region
        %s447 = ssub.s32 %s12, 1
        %s448 = sand.u32 %s74, 1
        %s449 = sand.u32 %s74, 1
        %s450 = smul.addr %s449, 16
        %s451 = scalar_lea.vmem [#allocation6], %s450
        // Predicated region
        $region156: #{parallel_transformer_block.4} parent=154 // pred_check
          %p452 = pneg %p87
        $region157: #{parallel_transformer_block.4} parent=154 // pred_check_branch
          %454 = sbr.rel (%p452) target = $region159
        $region158: #{parallel_transformer_block.4} parent=154 // pred_region
          _
        $region159: #{parallel_transformer_block.4} parent=154 // pred_fallthru
          _
        %s455 = sand.u32 %s102, 1
        %s456 = sand.u32 %s102, 1
        %s457 = smul.addr %s456, 16
        %s458 = scalar_lea.vmem [#allocation7], %s457
        // Predicated region
        $region160: #{parallel_transformer_block.4} parent=154 // pred_check
          %p459 = pneg %p115
        $region161: #{parallel_transformer_block.4} parent=154 // pred_check_branch
          %461 = sbr.rel (%p459) target = $region163
        $region162: #{parallel_transformer_block.4} parent=154 // pred_region
          _
        $region163: #{parallel_transformer_block.4} parent=154 // pred_fallthru
          _
        %s462 = sand.u32 %s130, 1
        %s463 = sand.u32 %s130, 1
        %s464 = smul.addr %s463, 16
        %s465 = scalar_lea.vmem [#allocation8], %s464
        // Predicated region
        $region164: #{parallel_transformer_block.4} parent=154 // pred_check
          %p466 = pneg %p143
        $region165: #{parallel_transformer_block.4} parent=154 // pred_check_branch
          %468 = sbr.rel (%p466) target = $region167
        $region166: #{parallel_transformer_block.4} parent=154 // pred_region
          _
        $region167: #{parallel_transformer_block.4} parent=154 // pred_fallthru
          _
        %p469 = scmp.lt.s32.totalorder %s22, 1
        %s470 = scalar_select %p469, %s22, 1
        %p471 = scmp.lt.s32.totalorder %s23, 1
        %s472 = scalar_select %p471, %s23, 1
        %s473 = smul.addr %s470, 2
        %s474 = sadd.s32 %s472, %s473
        %s475 = smul.addr %s474, 8
        %s476 = scalar_lea.vmem %s0, %s475
        %p477 = pneg %p59
        %p478 = pneg %p56
        %s479 = sand.u32 %s74, 1
        %s480 = sand.u32 %s74, 1
        %s481 = smul.addr %s480, 16
        %s482 = scalar_lea.vmem [#allocation6], %s481
        %p483 = pneg %p87
        %p484 = pneg %p84
        %s485 = sand.u32 %s102, 1
        %s486 = sand.u32 %s102, 1
        %s487 = smul.addr %s486, 16
        %s488 = scalar_lea.vmem [#allocation7], %s487
        %p489 = pneg %p115
        %p490 = pneg %p112
        %s491 = sand.u32 %s130, 1
        %s492 = sand.u32 %s130, 1
        %s493 = smul.addr %s492, 16
        %s494 = scalar_lea.vmem [#allocation8], %s493
        %p495 = pneg %p143
        %p496 = pneg %p140
        %p497 = pneg %p164
        %p498 = pneg %p161
        %p499 = pneg %p185
        %p500 = pneg %p182
        %p501 = pneg %p213
        %p502 = pneg %p210
        %p503 = scmp.lt.s32.totalorder %s22, 1
        %s504 = scalar_select %p503, %s22, 1
        %p505 = scmp.lt.s32.totalorder %s23, 1
        %s506 = scalar_select %p505, %s23, 1
        %s507 = smul.addr %s504, 2
        %s508 = sadd.s32 %s506, %s507
        %s509 = smul.addr %s508, 8
        %s510 = scalar_lea.vmem %s6, %s509
        %p511 = scmp.lt.s32.totalorder %s22, 1
        %s512 = scalar_select %p511, %s22, 1
        %p513 = scmp.lt.s32.totalorder %s23, 1
        %s514 = scalar_select %p513, %s23, 1
        %s515 = smul.addr %s512, 2
        %s516 = sadd.s32 %s514, %s515
        %s517 = smul.addr %s516, 8
        %s518 = scalar_lea.vmem %s0, %s517
        %p519 = scmp.lt.s32.totalorder %s22, 1
        %s520 = scalar_select %p519, %s22, 1
        %p521 = scmp.lt.s32.totalorder %s23, 1
        %s522 = scalar_select %p521, %s23, 1
        %s523 = smul.addr %s520, 2
        %s524 = sadd.s32 %s522, %s523
        %s525 = smul.addr %s524, 8
        %s526 = scalar_lea.vmem %s6, %s525
        %p528 = scmp.eq.s32.totalorder %s24, 0
        // Predicated region
        $region168: #{parallel_transformer_block.4} parent=154 // pred_check
          %p529 = pneg %p528
        $region169: #{parallel_transformer_block.4} parent=154 // pred_check_branch
          %531 = sbr.rel (%p529) target = $region171
        $region170: #{parallel_transformer_block.4} parent=154 // pred_region
          %vm532 = vcmask 7168
          %533 = vst.msk [vmem:[#allocation2] sm:$0xff] %vm532, -inf
          %534 = vst.msk [vmem:[#allocation2 + $0x8] sm:$0xff] %vm532, -inf
          %535 = vst.msk [vmem:[#allocation2 + $0x10] sm:$0xff] %vm532, -inf
          %536 = vst.msk [vmem:[#allocation2 + $0x18] sm:$0xff] %vm532, -inf
          %537 = vst.msk [vmem:[#allocation3] sm:$0xff] %vm532, 0.0
          %538 = vst.msk [vmem:[#allocation3 + $0x8] sm:$0xff] %vm532, 0.0
          %539 = vst.msk [vmem:[#allocation3 + $0x10] sm:$0xff] %vm532, 0.0
          %540 = vst.msk [vmem:[#allocation3 + $0x18] sm:$0xff] %vm532, 0.0
          %vm541 = vcmask 64512
          %542 = vst.msk [vmem:[#allocation4] sm:$0xff] %vm541, 0.0
          %543 = vst.msk [vmem:[#allocation4 + $0x8] sm:$0xff] %vm541, 0.0
          %544 = vst.msk [vmem:[#allocation4 + $0x10] sm:$0xff] %vm541, 0.0
          %545 = vst.msk [vmem:[#allocation4 + $0x18] sm:$0xff] %vm541, 0.0
        $region171: #{parallel_transformer_block.4} parent=154 // pred_fallthru
          _
        %v546 = vld [vmem:[%s451] sm:$0xf]
        %v547 = vld [vmem:[%s451 + $0x4] sm:$0xf]
        %v548 = vld [vmem:[%s451 + $0x8] sm:$0xf]
        %v549 = vld [vmem:[%s451 + $0xc] sm:$0xf]
        %v550 = vld [vmem:[%s458] sm:$0xf]
        %v551 = vld [vmem:[%s458 + $0x4] sm:$0xf]
        %v552 = vld [vmem:[%s458 + $0x8] sm:$0xf]
        %v553 = vld [vmem:[%s458 + $0xc] sm:$0xf]
        %v554 = vld [vmem:[%s465] sm:$0xf]
        %v555 = vld [vmem:[%s465 + $0x4] sm:$0xf]
        %v556 = vld [vmem:[%s465 + $0x8] sm:$0xf]
        %v557 = vld [vmem:[%s465 + $0xc] sm:$0xf]
        %vm558 = vcmask 64512
        %v560 = vsel %vm558, %v546, 0
        %v563 = vsel %vm558, %v550, 0
        %565 = vmatprep.subr.bf16.mxu0 0
        %566 = vmatpush1.bf16.xpose.msra.mxu0 0
        %567 = vmatprep.subr.bf16.mxu0 0
        %568 = vmatpush1.bf16.xpose.msra.mxu0 0
        %569 = vmatprep.subr.bf16.mxu0 0
        %570 = vmatpush1.bf16.xpose.msra.mxu0 0
        %571 = vmatprep.subr.bf16.mxu0 0
        %572 = vmatpush1.bf16.xpose.msra.mxu0 0
        %573 = vmatprep.subr.bf16.mxu0 0
        %574 = vmatpush1.bf16.xpose.msra.mxu0 0
        %575 = vmatprep.subr.bf16.mxu0 0
        %576 = vmatpush1.bf16.xpose.msra.mxu0 0
        %577 = vmatprep.subr.bf16.mxu0 0
        %578 = vmatpush1.bf16.xpose.msra.mxu0 0
        %579 = vmatprep.subr.bf16.mxu0 0
        %580 = vmatpush1.bf16.xpose.msra.mxu0 %v563
        %581 = vmatprep.subr.bf16.mxu0 0
        %582 = vmatpush2.bf16.xpose.msra.mxu0 0
        %583 = vmatprep.subr.bf16.mxu0 0
        %584 = vmatpush2.bf16.xpose.msra.mxu0 0
        %585 = vmatprep.subr.bf16.mxu0 0
        %586 = vmatpush2.bf16.xpose.msra.mxu0 0
        %587 = vmatprep.subr.bf16.mxu0 0
        %588 = vmatpush2.bf16.xpose.msra.mxu0 0
        %589 = vmatprep.subr.bf16.mxu0 0
        %590 = vmatpush2.bf16.xpose.msra.mxu0 0
        %591 = vmatprep.subr.bf16.mxu0 0
        %592 = vmatpush2.bf16.xpose.msra.mxu0 0
        %593 = vmatprep.subr.bf16.mxu0 0
        %594 = vmatpush2.bf16.xpose.msra.mxu0 0
        %595 = vmatprep.subr.bf16.mxu0 0
        %596 = vmatpush2.bf16.xpose.msra.mxu0 0
        %597 = vmatprep.mubr.bf16.mxu0 0
        %598 = vmatmul.mubr.bf16.gmra.mxu0 %v560
        %v599 = vpop.f32.mrf.mxu0
        %v600 = vadd.f32 0.0, %v599
        %v601 = vpop.f32.mrf.mxu0
        %v602 = vpop.f32.mrf.mxu0
        %v603 = vpop.f32.mrf.mxu0
        %604 = vdwg.mxu0
        %v606 = vsel %vm558, %v547, 0
        %v609 = vsel %vm558, %v551, 0
        %611 = vmatprep.subr.bf16.mxu0 0
        %612 = vmatpush1.bf16.xpose.msra.mxu0 0
        %613 = vmatprep.subr.bf16.mxu0 0
        %614 = vmatpush1.bf16.xpose.msra.mxu0 0
        %615 = vmatprep.subr.bf16.mxu0 0
        %616 = vmatpush1.bf16.xpose.msra.mxu0 0
        %617 = vmatprep.subr.bf16.mxu0 0
        %618 = vmatpush1.bf16.xpose.msra.mxu0 0
        %619 = vmatprep.subr.bf16.mxu0 0
        %620 = vmatpush1.bf16.xpose.msra.mxu0 0
        %621 = vmatprep.subr.bf16.mxu0 0
        %622 = vmatpush1.bf16.xpose.msra.mxu0 0
        %623 = vmatprep.subr.bf16.mxu0 0
        %624 = vmatpush1.bf16.xpose.msra.mxu0 0
        %625 = vmatprep.subr.bf16.mxu0 0
        %626 = vmatpush1.bf16.xpose.msra.mxu0 %v609
        %627 = vmatprep.subr.bf16.mxu0 0
        %628 = vmatpush2.bf16.xpose.msra.mxu0 0
        %629 = vmatprep.subr.bf16.mxu0 0
        %630 = vmatpush2.bf16.xpose.msra.mxu0 0
        %631 = vmatprep.subr.bf16.mxu0 0
        %632 = vmatpush2.bf16.xpose.msra.mxu0 0
        %633 = vmatprep.subr.bf16.mxu0 0
        %634 = vmatpush2.bf16.xpose.msra.mxu0 0
        %635 = vmatprep.subr.bf16.mxu0 0
        %636 = vmatpush2.bf16.xpose.msra.mxu0 0
        %637 = vmatprep.subr.bf16.mxu0 0
        %638 = vmatpush2.bf16.xpose.msra.mxu0 0
        %639 = vmatprep.subr.bf16.mxu0 0
        %640 = vmatpush2.bf16.xpose.msra.mxu0 0
        %641 = vmatprep.subr.bf16.mxu0 0
        %642 = vmatpush2.bf16.xpose.msra.mxu0 0
        %643 = vmatprep.mubr.bf16.mxu0 0
        %644 = vmatmul.mubr.bf16.gmra.mxu0 %v606
        %v645 = vpop.f32.mrf.mxu0
        %v646 = vadd.f32 0.0, %v645
        %v647 = vpop.f32.mrf.mxu0
        %v648 = vpop.f32.mrf.mxu0
        %v649 = vpop.f32.mrf.mxu0
        %650 = vdwg.mxu0
        %v652 = vsel %vm558, %v548, 0
        %v655 = vsel %vm558, %v552, 0
        %657 = vmatprep.subr.bf16.mxu0 0
        %658 = vmatpush1.bf16.xpose.msra.mxu0 0
        %659 = vmatprep.subr.bf16.mxu0 0
        %660 = vmatpush1.bf16.xpose.msra.mxu0 0
        %661 = vmatprep.subr.bf16.mxu0 0
        %662 = vmatpush1.bf16.xpose.msra.mxu0 0
        %663 = vmatprep.subr.bf16.mxu0 0
        %664 = vmatpush1.bf16.xpose.msra.mxu0 0
        %665 = vmatprep.subr.bf16.mxu0 0
        %666 = vmatpush1.bf16.xpose.msra.mxu0 0
        %667 = vmatprep.subr.bf16.mxu0 0
        %668 = vmatpush1.bf16.xpose.msra.mxu0 0
        %669 = vmatprep.subr.bf16.mxu0 0
        %670 = vmatpush1.bf16.xpose.msra.mxu0 0
        %671 = vmatprep.subr.bf16.mxu0 0
        %672 = vmatpush1.bf16.xpose.msra.mxu0 %v655
        %673 = vmatprep.subr.bf16.mxu0 0
        %674 = vmatpush2.bf16.xpose.msra.mxu0 0
        %675 = vmatprep.subr.bf16.mxu0 0
        %676 = vmatpush2.bf16.xpose.msra.mxu0 0
        %677 = vmatprep.subr.bf16.mxu0 0
        %678 = vmatpush2.bf16.xpose.msra.mxu0 0
        %679 = vmatprep.subr.bf16.mxu0 0
        %680 = vmatpush2.bf16.xpose.msra.mxu0 0
        %681 = vmatprep.subr.bf16.mxu0 0
        %682 = vmatpush2.bf16.xpose.msra.mxu0 0
        %683 = vmatprep.subr.bf16.mxu0 0
        %684 = vmatpush2.bf16.xpose.msra.mxu0 0
        %685 = vmatprep.subr.bf16.mxu0 0
        %686 = vmatpush2.bf16.xpose.msra.mxu0 0
        %687 = vmatprep.subr.bf16.mxu0 0
        %688 = vmatpush2.bf16.xpose.msra.mxu0 0
        %689 = vmatprep.mubr.bf16.mxu0 0
        %690 = vmatmul.mubr.bf16.gmra.mxu0 %v652
        %v691 = vpop.f32.mrf.mxu0
        %v692 = vadd.f32 0.0, %v691
        %v693 = vpop.f32.mrf.mxu0
        %v694 = vpop.f32.mrf.mxu0
        %v695 = vpop.f32.mrf.mxu0
        %696 = vdwg.mxu0
        %v698 = vsel %vm558, %v549, 0
        %v701 = vsel %vm558, %v553, 0
        %703 = vmatprep.subr.bf16.mxu0 0
        %704 = vmatpush1.bf16.xpose.msra.mxu0 0
        %705 = vmatprep.subr.bf16.mxu0 0
        %706 = vmatpush1.bf16.xpose.msra.mxu0 0
        %707 = vmatprep.subr.bf16.mxu0 0
        %708 = vmatpush1.bf16.xpose.msra.mxu0 0
        %709 = vmatprep.subr.bf16.mxu0 0
        %710 = vmatpush1.bf16.xpose.msra.mxu0 0
        %711 = vmatprep.subr.bf16.mxu0 0
        %712 = vmatpush1.bf16.xpose.msra.mxu0 0
        %713 = vmatprep.subr.bf16.mxu0 0
        %714 = vmatpush1.bf16.xpose.msra.mxu0 0
        %715 = vmatprep.subr.bf16.mxu0 0
        %716 = vmatpush1.bf16.xpose.msra.mxu0 0
        %717 = vmatprep.subr.bf16.mxu0 0
        %718 = vmatpush1.bf16.xpose.msra.mxu0 %v701
        %719 = vmatprep.subr.bf16.mxu0 0
        %720 = vmatpush2.bf16.xpose.msra.mxu0 0
        %721 = vmatprep.subr.bf16.mxu0 0
        %722 = vmatpush2.bf16.xpose.msra.mxu0 0
        %723 = vmatprep.subr.bf16.mxu0 0
        %724 = vmatpush2.bf16.xpose.msra.mxu0 0
        %725 = vmatprep.subr.bf16.mxu0 0
        %726 = vmatpush2.bf16.xpose.msra.mxu0 0
        %727 = vmatprep.subr.bf16.mxu0 0
        %728 = vmatpush2.bf16.xpose.msra.mxu0 0
        %729 = vmatprep.subr.bf16.mxu0 0
        %730 = vmatpush2.bf16.xpose.msra.mxu0 0
        %731 = vmatprep.subr.bf16.mxu0 0
        %732 = vmatpush2.bf16.xpose.msra.mxu0 0
        %733 = vmatprep.subr.bf16.mxu0 0
        %734 = vmatpush2.bf16.xpose.msra.mxu0 0
        %735 = vmatprep.mubr.bf16.mxu0 0
        %736 = vmatmul.mubr.bf16.gmra.mxu0 %v698
        %v737 = vpop.f32.mrf.mxu0
        %v738 = vadd.f32 0.0, %v737
        %v739 = vpop.f32.mrf.mxu0
        %v740 = vpop.f32.mrf.mxu0
        %v741 = vpop.f32.mrf.mxu0
        %742 = vdwg.mxu0
        %v743 = vld [vmem:[#allocation2] sm:$0xff]
        %v744 = vld [vmem:[#allocation2 + $0x8] sm:$0xff]
        %v745 = vld [vmem:[#allocation2 + $0x10] sm:$0xff]
        %v746 = vld [vmem:[#allocation2 + $0x18] sm:$0xff]
        %v747 = vsel %vm558, %v600, -inf
        %748 = vmax.xlane.f32.xlu0 %v747
        %v749 = vpop.xlane.xlu0 %748
        %v750 = vsel %vm558, %v646, -inf
        %751 = vmax.xlane.f32.xlu0 %v750
        %v752 = vpop.xlane.xlu0 %751
        %v753 = vsel %vm558, %v692, -inf
        %754 = vmax.xlane.f32.xlu0 %v753
        %v755 = vpop.xlane.xlu0 %754
        %v756 = vsel %vm558, %v738, -inf
        %757 = vmax.xlane.f32.xlu0 %v756
        %v758 = vpop.xlane.xlu0 %757
        %v759 = vmax.f32 %v743, %v749
        %v760 = vmax.f32 %v744, %v752
        %v761 = vmax.f32 %v745, %v755
        %v762 = vmax.f32 %v746, %v758
        %v763 = vsub.f32 %v743, %v759
        %v764 = vsub.f32 %v744, %v760
        %v765 = vsub.f32 %v745, %v761
        %v766 = vsub.f32 %v746, %v762
        %v767 = vmul.f32 %v763, 1.442695
        %v768 = vpow.pop %v767
        %v769 = vmul.f32 %v764, 1.442695
        %v770 = vpow.pop %v769
        %v771 = vmul.f32 %v765, 1.442695
        %v772 = vpow.pop %v771
        %v773 = vmul.f32 %v766, 1.442695
        %v774 = vpow.pop %v773
        %776 = vset.pattern.permute.xlu0 0
        %777 = vperm.xlu0 %776, %v759
        %v778 = vpop.permute.xlu0 %777
        %781 = vset.pattern.permute.xlu0 0
        %782 = vperm.xlu0 %781, %v760
        %v783 = vpop.permute.xlu0 %782
        %786 = vset.pattern.permute.xlu0 0
        %787 = vperm.xlu0 %786, %v761
        %v788 = vpop.permute.xlu0 %787
        %791 = vset.pattern.permute.xlu0 0
        %792 = vperm.xlu0 %791, %v762
        %v793 = vpop.permute.xlu0 %792
        %v795 = vsub.f32 %v600, %v778
        %v796 = vsub.f32 %v646, %v783
        %v797 = vsub.f32 %v692, %v788
        %v798 = vsub.f32 %v738, %v793
        %v799 = vpack.c.bf16 %v795, %v795
        %v800 = vpack.c.bf16 %v796, %v796
        %v801 = vpack.c.bf16 %v797, %v797
        %v802 = vpack.c.bf16 %v798, %v798
        %v804 = vmul.bf16 %v799, 1069105081
        %v805 = vpow.bf16.pop %v804
        %v807 = vmul.bf16 %v800, 1069105081
        %v808 = vpow.bf16.pop %v807
        %v810 = vmul.bf16 %v801, 1069105081
        %v811 = vpow.bf16.pop %v810
        %v813 = vmul.bf16 %v802, 1069105081
        %v814 = vpow.bf16.pop %v813
        %v815 = vld [vmem:[#allocation3] sm:$0xff]
        %v816 = vld [vmem:[#allocation3 + $0x8] sm:$0xff]
        %v817 = vld [vmem:[#allocation3 + $0x10] sm:$0xff]
        %v818 = vld [vmem:[#allocation3 + $0x18] sm:$0xff]
        %v819 = vmul.f32 %v768, %v815
        %v820 = vmul.f32 %v770, %v816
        %v821 = vmul.f32 %v772, %v817
        %v822 = vmul.f32 %v774, %v818
        %v823 = vunpack.c.l.bf16 %v805
        %v824 = vunpack.c.l.bf16 %v808
        %v825 = vunpack.c.l.bf16 %v811
        %v826 = vunpack.c.l.bf16 %v814
        %v827 = vsel %vm558, %v823, 0.0
        %828 = vadd.xlane.f32.xlu0 %v827
        %v829 = vpop.xlane.xlu0 %828
        %v830 = vsel %vm558, %v824, 0.0
        %831 = vadd.xlane.f32.xlu0 %v830
        %v832 = vpop.xlane.xlu0 %831
        %v833 = vsel %vm558, %v825, 0.0
        %834 = vadd.xlane.f32.xlu0 %v833
        %v835 = vpop.xlane.xlu0 %834
        %v836 = vsel %vm558, %v826, 0.0
        %837 = vadd.xlane.f32.xlu0 %v836
        %v838 = vpop.xlane.xlu0 %837
        %v839 = vadd.f32 %v819, %v829
        %v840 = vadd.f32 %v820, %v832
        %v841 = vadd.f32 %v821, %v835
        %v842 = vadd.f32 %v822, %v838
        %vm843 = vcmask 7168
        %844 = vst.msk [vmem:[#allocation3] sm:$0xff] %vm843, %v839
        %845 = vst.msk [vmem:[#allocation3 + $0x8] sm:$0xff] %vm843, %v840
        %846 = vst.msk [vmem:[#allocation3 + $0x10] sm:$0xff] %vm843, %v841
        %847 = vst.msk [vmem:[#allocation3 + $0x18] sm:$0xff] %vm843, %v842
        %v848 = vld [vmem:[#allocation4] sm:$0xff]
        %v849 = vld [vmem:[#allocation4 + $0x8] sm:$0xff]
        %v850 = vld [vmem:[#allocation4 + $0x10] sm:$0xff]
        %v851 = vld [vmem:[#allocation4 + $0x18] sm:$0xff]
        %853 = vset.pattern.permute.xlu0 0
        %854 = vperm.xlu0 %853, %v768
        %v855 = vpop.permute.xlu0 %854
        %858 = vset.pattern.permute.xlu0 0
        %859 = vperm.xlu0 %858, %v770
        %v860 = vpop.permute.xlu0 %859
        %863 = vset.pattern.permute.xlu0 0
        %864 = vperm.xlu0 %863, %v772
        %v865 = vpop.permute.xlu0 %864
        %868 = vset.pattern.permute.xlu0 0
        %869 = vperm.xlu0 %868, %v774
        %v870 = vpop.permute.xlu0 %869
        %v872 = vmul.f32 %v855, %v848
        %v873 = vmul.f32 %v860, %v849
        %v874 = vmul.f32 %v865, %v850
        %v875 = vmul.f32 %v870, %v851
        %v877 = vsel %vm558, %v805, 0
        %vm879 = vcmask 1043456
        %v881 = vsel %vm879, %v554, 0
        %883 = vmatprep.subr.bf16.mxu0 0
        %884 = vmatpush1.bf16.msra.mxu0 0
        %885 = vmatprep.subr.bf16.mxu0 0
        %886 = vmatpush1.bf16.msra.mxu0 0
        %887 = vmatprep.subr.bf16.mxu0 0
        %888 = vmatpush1.bf16.msra.mxu0 0
        %889 = vmatprep.subr.bf16.mxu0 0
        %890 = vmatpush1.bf16.msra.mxu0 0
        %891 = vmatprep.subr.bf16.mxu0 0
        %892 = vmatpush1.bf16.msra.mxu0 0
        %893 = vmatprep.subr.bf16.mxu0 0
        %894 = vmatpush1.bf16.msra.mxu0 0
        %895 = vmatprep.subr.bf16.mxu0 0
        %896 = vmatpush1.bf16.msra.mxu0 0
        %897 = vmatprep.subr.bf16.mxu0 0
        %898 = vmatpush1.bf16.msra.mxu0 %v881
        %899 = vmatprep.subr.bf16.mxu0 0
        %900 = vmatpush2.bf16.msra.mxu0 0
        %901 = vmatprep.subr.bf16.mxu0 0
        %902 = vmatpush2.bf16.msra.mxu0 0
        %903 = vmatprep.subr.bf16.mxu0 0
        %904 = vmatpush2.bf16.msra.mxu0 0
        %905 = vmatprep.subr.bf16.mxu0 0
        %906 = vmatpush2.bf16.msra.mxu0 0
        %907 = vmatprep.subr.bf16.mxu0 0
        %908 = vmatpush2.bf16.msra.mxu0 0
        %909 = vmatprep.subr.bf16.mxu0 0
        %910 = vmatpush2.bf16.msra.mxu0 0
        %911 = vmatprep.subr.bf16.mxu0 0
        %912 = vmatpush2.bf16.msra.mxu0 0
        %913 = vmatprep.subr.bf16.mxu0 0
        %914 = vmatpush2.bf16.msra.mxu0 0
        %915 = vmatprep.mubr.bf16.mxu0 0
        %916 = vmatmul.mubr.bf16.gmra.mxu0 %v877
        %v917 = vpop.f32.mrf.mxu0
        %v918 = vadd.f32 0.0, %v917
        %v919 = vpop.f32.mrf.mxu0
        %v920 = vpop.f32.mrf.mxu0
        %v921 = vpop.f32.mrf.mxu0
        %922 = vdwg.mxu0
        %v924 = vsel %vm558, %v808, 0
        %v927 = vsel %vm879, %v555, 0
        %929 = vmatprep.subr.bf16.mxu0 0
        %930 = vmatpush1.bf16.msra.mxu0 0
        %931 = vmatprep.subr.bf16.mxu0 0
        %932 = vmatpush1.bf16.msra.mxu0 0
        %933 = vmatprep.subr.bf16.mxu0 0
        %934 = vmatpush1.bf16.msra.mxu0 0
        %935 = vmatprep.subr.bf16.mxu0 0
        %936 = vmatpush1.bf16.msra.mxu0 0
        %937 = vmatprep.subr.bf16.mxu0 0
        %938 = vmatpush1.bf16.msra.mxu0 0
        %939 = vmatprep.subr.bf16.mxu0 0
        %940 = vmatpush1.bf16.msra.mxu0 0
        %941 = vmatprep.subr.bf16.mxu0 0
        %942 = vmatpush1.bf16.msra.mxu0 0
        %943 = vmatprep.subr.bf16.mxu0 0
        %944 = vmatpush1.bf16.msra.mxu0 %v927
        %945 = vmatprep.subr.bf16.mxu0 0
        %946 = vmatpush2.bf16.msra.mxu0 0
        %947 = vmatprep.subr.bf16.mxu0 0
        %948 = vmatpush2.bf16.msra.mxu0 0
        %949 = vmatprep.subr.bf16.mxu0 0
        %950 = vmatpush2.bf16.msra.mxu0 0
        %951 = vmatprep.subr.bf16.mxu0 0
        %952 = vmatpush2.bf16.msra.mxu0 0
        %953 = vmatprep.subr.bf16.mxu0 0
        %954 = vmatpush2.bf16.msra.mxu0 0
        %955 = vmatprep.subr.bf16.mxu0 0
        %956 = vmatpush2.bf16.msra.mxu0 0
        %957 = vmatprep.subr.bf16.mxu0 0
        %958 = vmatpush2.bf16.msra.mxu0 0
        %959 = vmatprep.subr.bf16.mxu0 0
        %960 = vmatpush2.bf16.msra.mxu0 0
        %961 = vmatprep.mubr.bf16.mxu0 0
        %962 = vmatmul.mubr.bf16.gmra.mxu0 %v924
        %v963 = vpop.f32.mrf.mxu0
        %v964 = vadd.f32 0.0, %v963
        %v965 = vpop.f32.mrf.mxu0
        %v966 = vpop.f32.mrf.mxu0
        %v967 = vpop.f32.mrf.mxu0
        %968 = vdwg.mxu0
        %v970 = vsel %vm558, %v811, 0
        %v973 = vsel %vm879, %v556, 0
        %975 = vmatprep.subr.bf16.mxu0 0
        %976 = vmatpush1.bf16.msra.mxu0 0
        %977 = vmatprep.subr.bf16.mxu0 0
        %978 = vmatpush1.bf16.msra.mxu0 0
        %979 = vmatprep.subr.bf16.mxu0 0
        %980 = vmatpush1.bf16.msra.mxu0 0
        %981 = vmatprep.subr.bf16.mxu0 0
        %982 = vmatpush1.bf16.msra.mxu0 0
        %983 = vmatprep.subr.bf16.mxu0 0
        %984 = vmatpush1.bf16.msra.mxu0 0
        %985 = vmatprep.subr.bf16.mxu0 0
        %986 = vmatpush1.bf16.msra.mxu0 0
        %987 = vmatprep.subr.bf16.mxu0 0
        %988 = vmatpush1.bf16.msra.mxu0 0
        %989 = vmatprep.subr.bf16.mxu0 0
        %990 = vmatpush1.bf16.msra.mxu0 %v973
        %991 = vmatprep.subr.bf16.mxu0 0
        %992 = vmatpush2.bf16.msra.mxu0 0
        %993 = vmatprep.subr.bf16.mxu0 0
        %994 = vmatpush2.bf16.msra.mxu0 0
        %995 = vmatprep.subr.bf16.mxu0 0
        %996 = vmatpush2.bf16.msra.mxu0 0
        %997 = vmatprep.subr.bf16.mxu0 0
        %998 = vmatpush2.bf16.msra.mxu0 0
        %999 = vmatprep.subr.bf16.mxu0 0
        %1000 = vmatpush2.bf16.msra.mxu0 0
        %1001 = vmatprep.subr.bf16.mxu0 0
        %1002 = vmatpush2.bf16.msra.mxu0 0
        %1003 = vmatprep.subr.bf16.mxu0 0
        %1004 = vmatpush2.bf16.msra.mxu0 0
        %1005 = vmatprep.subr.bf16.mxu0 0
        %1006 = vmatpush2.bf16.msra.mxu0 0
        %1007 = vmatprep.mubr.bf16.mxu0 0
        %1008 = vmatmul.mubr.bf16.gmra.mxu0 %v970
        %v1009 = vpop.f32.mrf.mxu0
        %v1010 = vadd.f32 0.0, %v1009
        %v1011 = vpop.f32.mrf.mxu0
        %v1012 = vpop.f32.mrf.mxu0
        %v1013 = vpop.f32.mrf.mxu0
        %1014 = vdwg.mxu0
        %v1016 = vsel %vm558, %v814, 0
        %v1019 = vsel %vm879, %v557, 0
        %1021 = vmatprep.subr.bf16.mxu0 0
        %1022 = vmatpush1.bf16.msra.mxu0 0
        %1023 = vmatprep.subr.bf16.mxu0 0
        %1024 = vmatpush1.bf16.msra.mxu0 0
        %1025 = vmatprep.subr.bf16.mxu0 0
        %1026 = vmatpush1.bf16.msra.mxu0 0
        %1027 = vmatprep.subr.bf16.mxu0 0
        %1028 = vmatpush1.bf16.msra.mxu0 0
        %1029 = vmatprep.subr.bf16.mxu0 0
        %1030 = vmatpush1.bf16.msra.mxu0 0
        %1031 = vmatprep.subr.bf16.mxu0 0
        %1032 = vmatpush1.bf16.msra.mxu0 0
        %1033 = vmatprep.subr.bf16.mxu0 0
        %1034 = vmatpush1.bf16.msra.mxu0 0
        %1035 = vmatprep.subr.bf16.mxu0 0
        %1036 = vmatpush1.bf16.msra.mxu0 %v1019
        %1037 = vmatprep.subr.bf16.mxu0 0
        %1038 = vmatpush2.bf16.msra.mxu0 0
        %1039 = vmatprep.subr.bf16.mxu0 0
        %1040 = vmatpush2.bf16.msra.mxu0 0
        %1041 = vmatprep.subr.bf16.mxu0 0
        %1042 = vmatpush2.bf16.msra.mxu0 0
        %1043 = vmatprep.subr.bf16.mxu0 0
        %1044 = vmatpush2.bf16.msra.mxu0 0
        %1045 = vmatprep.subr.bf16.mxu0 0
        %1046 = vmatpush2.bf16.msra.mxu0 0
        %1047 = vmatprep.subr.bf16.mxu0 0
        %1048 = vmatpush2.bf16.msra.mxu0 0
        %1049 = vmatprep.subr.bf16.mxu0 0
        %1050 = vmatpush2.bf16.msra.mxu0 0
        %1051 = vmatprep.subr.bf16.mxu0 0
        %1052 = vmatpush2.bf16.msra.mxu0 0
        %1053 = vmatprep.mubr.bf16.mxu0 0
        %1054 = vmatmul.mubr.bf16.gmra.mxu0 %v1016
        %v1055 = vpop.f32.mrf.mxu0
        %v1056 = vadd.f32 0.0, %v1055
        %v1057 = vpop.f32.mrf.mxu0
        %v1058 = vpop.f32.mrf.mxu0
        %v1059 = vpop.f32.mrf.mxu0
        %1060 = vdwg.mxu0
        %v1061 = vadd.f32 %v872, %v918
        %v1062 = vadd.f32 %v873, %v964
        %v1063 = vadd.f32 %v874, %v1010
        %v1064 = vadd.f32 %v875, %v1056
        %1065 = vst.msk [vmem:[#allocation4] sm:$0xff] %vm558, %v1061
        %1066 = vst.msk [vmem:[#allocation4 + $0x8] sm:$0xff] %vm558, %v1062
        %1067 = vst.msk [vmem:[#allocation4 + $0x10] sm:$0xff] %vm558, %v1063
        %1068 = vst.msk [vmem:[#allocation4 + $0x18] sm:$0xff] %vm558, %v1064
        %1069 = vst.msk [vmem:[#allocation2] sm:$0xff] %vm843, %v759
        %1070 = vst.msk [vmem:[#allocation2 + $0x8] sm:$0xff] %vm843, %v760
        %1071 = vst.msk [vmem:[#allocation2 + $0x10] sm:$0xff] %vm843, %v761
        %1072 = vst.msk [vmem:[#allocation2 + $0x18] sm:$0xff] %vm843, %v762
        %p1073 = scmp.eq.s32.totalorder %s24, 1
        // Predicated region
        $region172: #{parallel_transformer_block.4} parent=154 // pred_check
          %p1074 = pneg %p1073
        $region173: #{parallel_transformer_block.4} parent=154 // pred_check_branch
          %1076 = sbr.rel (%p1074) target = $region175
        $region174: #{parallel_transformer_block.4} parent=154 // pred_region
          %v1077 = vld [vmem:[#allocation3] sm:$0xff]
          %v1078 = vld [vmem:[#allocation3 + $0x8] sm:$0xff]
          %v1079 = vld [vmem:[#allocation3 + $0x10] sm:$0xff]
          %v1080 = vld [vmem:[#allocation3 + $0x18] sm:$0xff]
          %v1081 = vrcp.pop %v1077
          %v1082 = vrcp.pop %v1078
          %v1083 = vrcp.pop %v1079
          %v1084 = vrcp.pop %v1080
          %v1085 = vld [vmem:[#allocation4] sm:$0xff]
          %v1086 = vld [vmem:[#allocation4 + $0x8] sm:$0xff]
          %v1087 = vld [vmem:[#allocation4 + $0x10] sm:$0xff]
          %v1088 = vld [vmem:[#allocation4 + $0x18] sm:$0xff]
          %1090 = vset.pattern.permute.xlu0 0
          %1091 = vperm.xlu0 %1090, %v1081
          %v1092 = vpop.permute.xlu0 %1091
          %1095 = vset.pattern.permute.xlu0 0
          %1096 = vperm.xlu0 %1095, %v1082
          %v1097 = vpop.permute.xlu0 %1096
          %1100 = vset.pattern.permute.xlu0 0
          %1101 = vperm.xlu0 %1100, %v1083
          %v1102 = vpop.permute.xlu0 %1101
          %1105 = vset.pattern.permute.xlu0 0
          %1106 = vperm.xlu0 %1105, %v1084
          %v1107 = vpop.permute.xlu0 %1106
          %v1109 = vmul.f32 %v1085, %v1092
          %v1110 = vmul.f32 %v1086, %v1097
          %v1111 = vmul.f32 %v1087, %v1102
          %v1112 = vmul.f32 %v1088, %v1107
          %v1113 = vpack.c.bf16 %v1109, %v1109
          %v1114 = vpack.c.bf16 %v1110, %v1110
          %v1115 = vpack.c.bf16 %v1111, %v1111
          %v1116 = vpack.c.bf16 %v1112, %v1112
          %vm1117 = vcmask 60416
          %1118 = vst.msk [vmem:[#allocation5] sm:$0xf] %vm1117, %v1113
          %v1120 = vunpack.c.l.b16 %v1114
          %v1121 = vpack.c.b16 %v1120, %v1120
          %1122 = vrot.lane.b32.xlu0 %v1121, 8
          %v1123 = vpop.permute.xlu0 %1122
          %vm1125 = vcmask 126016
          %1126 = vst.msk [vmem:[#allocation5] sm:$0xf] %vm1125, %v1123
          %v1128 = vunpack.c.l.b16 %v1115
          %v1129 = vpack.c.b16 %v1128, %v1128
          %1130 = vrot.lane.b32.xlu0 %v1129, 16
          %v1131 = vpop.permute.xlu0 %1130
          %vm1133 = vcmask 191616
          %1134 = vst.msk [vmem:[#allocation5] sm:$0xf] %vm1133, %v1131
          %v1136 = vunpack.c.l.b16 %v1116
          %v1137 = vpack.c.b16 %v1136, %v1136
          %1138 = vrot.lane.b32.xlu0 %v1137, 24
          %v1139 = vpop.permute.xlu0 %1138
          %vm1141 = vcmask 257216
          %1142 = vst.msk [vmem:[#allocation5] sm:$0xf] %vm1141, %v1139
          %v1143 = vld [vmem:[#allocation5] sm:$0xf]
          %v1144 = vld [vmem:[%s4] sm:$0xf]
          %v1145 = vld [vmem:[%s4 + $0x4] sm:$0xf]
          %v1146 = vld [vmem:[%s4 + $0x8] sm:$0xf]
          %v1147 = vld [vmem:[%s4 + $0xc] sm:$0xf]
          %v1148 = vld [vmem:[%s5] sm:$0x1]
          %v1150 = vlaneseq
          %v1151 = vshrl.u32 %v1150, 7
          %v1152 = vsub.s32 0, %v1151
          %v1153 = vrot.slane %v1148, %v1152
          %v1159 = vunpack.c.l.b16 %v1144
          %v1160 = vunpack.c.l.b16 %v1145
          %v1161 = vunpack.c.l.b16 %v1146
          %v1162 = vunpack.c.l.b16 %v1147
          %v1163 = vpack.c.b16 %v1160, %v1159
          %v1164 = vpack.c.b16 %v1162, %v1161
          %vm1167 = vcmask 261120
          %v1169 = vsel %vm1167, %v1143, 0
          %1171 = vmatprep.subr.bf16.mxu0 0
          %1172 = vmatpush1.bf16.msra.mxu0 0
          %1173 = vmatprep.subr.bf16.mxu0 0
          %1174 = vmatpush1.bf16.msra.mxu0 0
          %1175 = vmatprep.subr.bf16.mxu0 0
          %1176 = vmatpush1.bf16.msra.mxu0 0
          %1177 = vmatprep.subr.bf16.mxu0 0
          %1178 = vmatpush1.bf16.msra.mxu0 0
          %1179 = vmatprep.subr.bf16.mxu0 0
          %1180 = vmatpush1.bf16.msra.mxu0 0
          %1181 = vmatprep.subr.bf16.mxu0 0
          %1182 = vmatpush1.bf16.msra.mxu0 0
          %1183 = vmatprep.subr.bf16.mxu0 0
          %1184 = vmatpush1.bf16.msra.mxu0 %v1164
          %1185 = vmatprep.subr.bf16.mxu0 0
          %1186 = vmatpush1.bf16.msra.mxu0 %v1163
          %1187 = vmatprep.subr.bf16.mxu0 0
          %1188 = vmatpush2.bf16.msra.mxu0 0
          %1189 = vmatprep.subr.bf16.mxu0 0
          %1190 = vmatpush2.bf16.msra.mxu0 0
          %1191 = vmatprep.subr.bf16.mxu0 0
          %1192 = vmatpush2.bf16.msra.mxu0 0
          %1193 = vmatprep.subr.bf16.mxu0 0
          %1194 = vmatpush2.bf16.msra.mxu0 0
          %1195 = vmatprep.subr.bf16.mxu0 0
          %1196 = vmatpush2.bf16.msra.mxu0 0
          %1197 = vmatprep.subr.bf16.mxu0 0
          %1198 = vmatpush2.bf16.msra.mxu0 0
          %1199 = vmatprep.subr.bf16.mxu0 0
          %1200 = vmatpush2.bf16.msra.mxu0 0
          %1201 = vmatprep.subr.bf16.mxu0 0
          %1202 = vmatpush2.bf16.msra.mxu0 0
          %1203 = vmatprep.mubr.bf16.mxu0 0
          %1204 = vmatmul.mubr.bf16.gmra.mxu0 %v1169
          %v1205 = vpop.f32.mrf.mxu0
          %v1206 = vadd.f32 %v1153, %v1205
          %v1207 = vpop.f32.mrf.mxu0
          %v1208 = vpop.f32.mrf.mxu0
          %v1209 = vpop.f32.mrf.mxu0
          %1210 = vdwg.mxu0
          %v1211 = vld [vmem:[%s518] sm:$0xff]
          %v1212 = vadd.f32 %v1211, %v1206
          %1213 = vst.msk [vmem:[%s526] sm:$0xff] %vm1167, %v1212
        $region175: #{parallel_transformer_block.4} parent=154 // pred_fallthru
          _
        %p1214 = scmp.lt.s32.totalorder %s22, 1
        %s1215 = scalar_select %p1214, %s22, 1
        %p1216 = scmp.lt.s32.totalorder %s23, 1
        %s1217 = scalar_select %p1216, %s23, 1
        %s1218 = smul.addr %s1215, 2
        %s1219 = sadd.s32 %s1217, %s1218
        %s1220 = smul.addr %s1219, 8
        %s1221 = scalar_lea.vmem %s6, %s1220
        // Predicated region
        $region176: #{parallel_transformer_block.4} parent=154 // pred_check
          %p1222 = pneg %p210
        $region177: #{parallel_transformer_block.4} parent=154 // pred_check_branch
          %1224 = sbr.rel (%p1222) target = $region179
        $region178: #{parallel_transformer_block.4} parent=154 // pred_region
          _
        $region179: #{parallel_transformer_block.4} parent=154 // pred_fallthru
          _
      $region155: #{parallel_transformer_block.4} parent=5 // pred_fallthru
        _
      %p1225 = scmp.le.s32.totalorder 2, %s12
      // Predicated region
      $region180: #{parallel_transformer_block.4} parent=5 // pred_check
        %p1226 = pneg %p1225
      $region181: #{parallel_transformer_block.4} parent=5 // pred_check_branch
        %1228 = sbr.rel (%p1226) target = $region183
      $region182: #{parallel_transformer_block.4} parent=5 // pred_region
        %s1229 = ssub.s32 %s12, 2
        // Predicated region
        $region184: #{parallel_transformer_block.4} parent=182 // pred_check
          %p1230 = pneg %p216
        $region185: #{parallel_transformer_block.4} parent=182 // pred_check_branch
          %1232 = sbr.rel (%p1230) target = $region187
        $region186: #{parallel_transformer_block.4} parent=182 // pred_region
          %p1233 = scmp.lt.s32.totalorder %s25, 1
          %s1234 = scalar_select %p1233, %s25, 1
          %p1235 = scmp.lt.s32.totalorder %s26, 1
          %s1236 = scalar_select %p1235, %s26, 1
          %s1237 = smul.addr %s1234, 2
          %s1238 = sadd.s32 %s1236, %s1237
          %s1239 = smul.addr %s1238, 8
          %s1240 = scalar_lea.vmem %s6, %s1239
        $region187: #{parallel_transformer_block.4} parent=182 // pred_fallthru
          _
      $region183: #{parallel_transformer_block.4} parent=5 // pred_fallthru
        _
    $region6: #{parallel_transformer_block.4} parent=1 // loop_footer
      %s16 = sadd.s32 1, %s12
    $region7: #{parallel_transformer_block.4} parent=1 // loop_footer_branch
      %11 = sbr.rel target = $region3
    $region8: #{parallel_transformer_block.4} parent=1 // loop_exit
      _

</llo_original>
